<compile_context>
chip_gen: v6e
topology: v6e:2x2x1
jax: 0.10.0
libtpu: 0.0.40
codegen_flags: <defaults>
</compile_context>

<pallas_src>
import functools
import math

import jax
import jax.numpy as jnp
from jax import lax
from jax.experimental import pallas as pl
from jax.experimental.pallas import tpu as pltpu

LANE = 128


# ------------------------------ small helpers -------------------------------

def _rup(v, m):
    return ((v + m - 1) // m) * m


def _pad_to(a, shape):
    return jnp.pad(a, [(0, t - s) for s, t in zip(a.shape, shape)])


def fold_bn(gamma, beta, mean, var, eps=1e-5):
    inv = 1.0 / jnp.sqrt(var + eps)
    scale = gamma * inv
    return scale, beta - mean * scale


def _vmem_limit_bytes():
    # Generation-aware VMEM budget: ~75% of per-core physical VMEM
    # (v5e/v6e: 128 MiB -> 96 MiB, v7x: 64 MiB -> 48 MiB).
    try:
        cap = int(pltpu.get_tpu_info().vmem_capacity_bytes)
        return max(32 * 1024 * 1024, (cap * 3) // 4)
    except Exception:
        return 64 * 1024 * 1024


# ---------------- kernel 1: 1x1 conv + BN + ReLU (tiled matmul) --------------

def _conv1x1_bn_relu_kernel(x_ref, w_ref, s_ref, b_ref, o_ref):
    acc = jnp.dot(x_ref[...], w_ref[...], preferred_element_type=jnp.float32)
    acc = acc * s_ref[...] + b_ref[...]
    o_ref[...] = jnp.maximum(acc, 0.0).astype(o_ref.dtype)


def _pick_tm(m):
    if m >= 8 * 1024:
        return 1024
    if m >= 8 * 512:
        return 512
    if m >= 8 * 256:
        return 256
    for tm in (128, 64, 32, 16, 8):
        if m >= tm:
            return tm
    return 8


def conv1x1_bn_relu(x2d, w, scale, bias):
    """(M, K) @ (K, Co) + per-channel affine + ReLU; K, Co multiples of 128."""
    M, K = x2d.shape
    Co = w.shape[1]
    tm = _pick_tm(M)
    Mp = _rup(M, tm)
    if Mp != M:
        x2d = jnp.pad(x2d, ((0, Mp - M), (0, 0)))
    cost = pl.CostEstimate(
        flops=int(2 * Mp * K * Co),
        transcendentals=0,
        bytes_accessed=int(2 * (Mp * K + K * Co + Mp * Co) + 8 * Co))
    out = pl.pallas_call(
        _conv1x1_bn_relu_kernel,
        out_shape=jax.ShapeDtypeStruct((Mp, Co), jnp.bfloat16),
        grid_spec=pltpu.PrefetchScalarGridSpec(
            num_scalar_prefetch=0,
            grid=(Mp // tm,),
            in_specs=[
                pl.BlockSpec((tm, K), lambda i: (i, 0)),
                pl.BlockSpec((K, Co), lambda i: (0, 0)),
                pl.BlockSpec((1, Co), lambda i: (0, 0)),
                pl.BlockSpec((1, Co), lambda i: (0, 0)),
            ],
            out_specs=pl.BlockSpec((tm, Co), lambda i: (i, 0)),
        ),
        compiler_params=pltpu.CompilerParams(
            dimension_semantics=("parallel",),
            vmem_limit_bytes=_vmem_limit_bytes()),
        cost_estimate=cost,
    )(x2d.astype(jnp.bfloat16), w, scale.reshape(1, Co), bias.reshape(1, Co))
    return out[:M]


# ------ kernel 2: fused conv2(3x3) + bn2 + relu + conv3 + bn3 + shortcut -----

def _fused_conv2_conv3_kernel(*refs, stride, TH, Wo, Pp, has_sc, kw_off):
    if has_sc:
        (body_ref, halo_ref, res_ref, w2_ref, s2_ref, b2_ref,
         w3_ref, s3_ref, b3_ref, wsc_ref, ssc_ref, bsc_ref, o_ref, zbuf) = refs
    else:
        (body_ref, halo_ref, res_ref, w2_ref, s2_ref, b2_ref,
         w3_ref, s3_ref, b3_ref, o_ref, zbuf) = refs

    M = TH * Wo

    # Stitch the (TH*stride + 2)-row halo tile into one contiguous scratch.
    # For stride 2 rows are stored as (row_pair, parity) so every tap below is
    # a plain contiguous slice (no strided / unaligned DMA).
    if stride == 1:
        zbuf[0:TH] = body_ref[0]
        zbuf[TH:TH + 2] = halo_ref[0]
    else:
        zbuf[0:TH] = body_ref[0].reshape(TH, 2, zbuf.shape[-2], zbuf.shape[-1])
        zbuf[TH] = halo_ref[0]

    # conv2 (3x3, stride) as 9 accumulated MXU matmuls with M = TH*Wo.
    acc = jnp.zeros((M, Pp), jnp.float32)
    for kh in range(3):
        for kw in range(3):
            c0 = kw_off[kw]
            if stride == 1:
                patch = zbuf[kh:kh + TH, c0:c0 + Wo, :]
            else:
                r0, par = ((0, 0), (0, 1), (1, 0))[kh]
                patch = zbuf[r0:r0 + TH, par, c0:c0 + Wo, :]
            acc = acc + jnp.dot(patch.reshape(M, Pp), w2_ref[kh, kw],
                                preferred_element_type=jnp.float32)

    h2 = jnp.maximum(acc * s2_ref[...] + b2_ref[...], 0.0)       # (M, Pp) f32

    # conv3 (1x1) + bn3
    y = jnp.dot(h2.astype(jnp.bfloat16), w3_ref[...],
                preferred_element_type=jnp.float32)              # (M, Qp)
    y = y * s3_ref[...] + b3_ref[...]

    # shortcut
    if has_sc:
        sc = jnp.dot(res_ref[0, 0], wsc_ref[...],
                     preferred_element_type=jnp.float32)
        sc = sc * ssc_ref[...] + bsc_ref[...]
    else:
        sc = res_ref[0, 0].astype(jnp.float32)

    o_ref[0, 0] = jnp.maximum(y + sc, 0.0).astype(o_ref.dtype)


def _pick_th(Ho, Wo, stride, target_m=256):
    # Constraints: TH*stride even (2-row halo block index), TH*Wo multiple of 8
    # (sublane-dense flattened row blocks).
    unit = 2 if (stride % 2) else 1
    unit = max(unit, 8 // math.gcd(Wo, 8))
    th = max(1, target_m // max(Wo, 1))
    th = max(unit, (th // unit) * unit)
    th_cap = _rup(max(Ho, 1), unit)
    return min(th, th_cap)


# ------------------------------- full forward --------------------------------

@functools.partial(jax.jit, static_argnums=(2,))
def bottleneck_forward(x_nchw, params, stride):
    assert stride in (1, 2), "TODO(synk): only stride 1 and 2 are implemented"
    expansion = 4
    N, Cin, H, W = x_nchw.shape
    w1 = params["w1"]
    planes = w1.shape[0]
    Cout = expansion * planes
    Ho = (H - 1) // stride + 1
    Wo = (W - 1) // stride + 1

    Cp = _rup(max(Cin, LANE), LANE)
    Pp = _rup(max(planes, LANE), LANE)
    Qp = _rup(max(Cout, LANE), LANE)

    # TODO(synk): chained Bottleneck blocks should keep activations NHWC and
    # channel-padded between blocks so these transposes/pads amortize.
    x = jnp.transpose(x_nchw, (0, 2, 3, 1))                  # NCHW -> NHWC
    xp = _pad_to(x, (N, H, W, Cp))                           # lane-pad channels

    # folded BN params (zero-padded -> padded channels stay exactly zero)
    s1, b1 = fold_bn(*params["bn1"])
    s1, b1 = _pad_to(s1, (Pp,)), _pad_to(b1, (Pp,))
    s2, b2 = fold_bn(*params["bn2"])
    s2, b2 = _pad_to(s2, (Pp,)), _pad_to(b2, (Pp,))
    s3, b3 = fold_bn(*params["bn3"])
    s3, b3 = _pad_to(s3, (Qp,)), _pad_to(b3, (Qp,))

    # weights: (K, N) layout, zero-padded, bf16
    w1m = _pad_to(w1.reshape(planes, Cin).T, (Cp, Pp)).astype(jnp.bfloat16)
    w2k = jnp.transpose(params["w2"], (2, 3, 1, 0))          # (3,3,Ci,Co)
    w2k = _pad_to(w2k, (3, 3, Pp, Pp)).astype(jnp.bfloat16)
    w3m = _pad_to(params["w3"].reshape(Cout, planes).T,
                  (Pp, Qp)).astype(jnp.bfloat16)

    # row tiling for the fused kernel
    TH = _pick_th(Ho, Wo, stride)
    Tiles = -(-Ho // TH)
    Ho_pad = Tiles * TH
    THs = TH * stride
    Hp2 = Tiles * THs + 2
    W2 = W + 2
    M = TH * Wo

    # ---- stage 1: conv1 (1x1) + bn1 + relu -> out1 (bf16, lane padded) ----
    out1 = conv1x1_bn_relu(xp.reshape(N * H * W, Cp), w1m, s1, b1)
    out1 = out1.reshape(N, H, W, Pp)

    # Spatial zero-pad (bottom padded so every row tile is full).
    # TODO(synk): fold this pad into conv1's output write to save one HBM pass.
    zin = jnp.pad(out1, ((0, 0), (1, Hp2 - 1 - H), (1, 1), (0, 0)))
    if stride == 1:
        kw_off = (0, 1, 2)
    else:
        # Reorder columns as [even | odd] so the stride-2 column taps become
        # contiguous slices in-kernel; this fuses with the pad above (no extra
        # im2col/gather materialization of the conv1 activation).
        zin = jnp.concatenate([zin[:, :, 0::2, :], zin[:, :, 1::2, :]], axis=2)
        kw_off = (0, (W + 3) // 2, 1)

    # shortcut inputs (bf16 in both cases to halve residual DMA)
    has_sc = "w_sc" in params
    if has_sc:
        s_sc, b_sc = fold_bn(*params["bn_sc"])
        s_sc, b_sc = _pad_to(s_sc, (Qp,)), _pad_to(b_sc, (Qp,))
        wscm = _pad_to(params["w_sc"].reshape(Cout, Cin).T,
                       (Cp, Qp)).astype(jnp.bfloat16)
        res = xp[:, ::stride, ::stride, :]                   # (N, Ho, Wo, Cp)
        Cres = Cp
    else:
        assert stride == 1 and Cin == Cout, "identity shortcut shape mismatch"
        res = _pad_to(x, (N, H, W, Qp))                      # (N, Ho, Wo, Qp)
        Cres = Qp
    res = res.astype(jnp.bfloat16)
    if Ho_pad != Ho:
        res = jnp.pad(res, ((0, 0), (0, Ho_pad - Ho), (0, 0), (0, 0)))
    res = res.reshape(N, Tiles, M, Cres)

    # ---- stage 2: fused conv2 + bn2 + relu + conv3 + bn3 + shortcut + relu ----
    hs2 = THs // 2
    c2 = lambda n, t: (0, 0)
    in_specs = [
        pl.BlockSpec((1, THs, W2, Pp), lambda n, t: (n, t, 0, 0)),
        pl.BlockSpec((1, 2, W2, Pp), lambda n, t: (n, (t + 1) * hs2, 0, 0)),
        pl.BlockSpec((1, 1, M, Cres), lambda n, t: (n, t, 0, 0)),
        pl.BlockSpec((3, 3, Pp, Pp), lambda n, t: (0, 0, 0, 0)),
        pl.BlockSpec((1, Pp), c2), pl.BlockSpec((1, Pp), c2),
        pl.BlockSpec((Pp, Qp), c2),
        pl.BlockSpec((1, Qp), c2), pl.BlockSpec((1, Qp), c2),
    ]
    inputs = [zin, zin, res, w2k, s2.reshape(1, Pp), b2.reshape(1, Pp),
              w3m, s3.reshape(1, Qp), b3.reshape(1, Qp)]
    if has_sc:
        in_specs += [pl.BlockSpec((Cp, Qp), c2),
                     pl.BlockSpec((1, Qp), c2), pl.BlockSpec((1, Qp), c2)]
        inputs += [wscm, s_sc.reshape(1, Qp), b_sc.reshape(1, Qp)]

    if stride == 1:
        zbuf = pltpu.VMEM((TH + 2, W2, Pp), jnp.bfloat16)
    else:
        zbuf = pltpu.VMEM((TH + 1, 2, W2, Pp), jnp.bfloat16)

    w_bytes = (w2k.size + w3m.size + (wscm.size if has_sc else 0)) * 2
    cost = pl.CostEstimate(
        flops=int(2 * N * Tiles * M *
                  (9 * Pp * Pp + Pp * Qp + (Cp * Qp if has_sc else 0))),
        transcendentals=0,
        bytes_accessed=int(N * Tiles * ((THs + 2) * W2 * Pp * 2
                                        + M * Cres * 2 + M * Qp * 2) + w_bytes))

    kern = functools.partial(_fused_conv2_conv3_kernel, stride=stride, TH=TH,
                             Wo=Wo, Pp=Pp, has_sc=has_sc, kw_off=kw_off)
    out = pl.pallas_call(
        kern,
        out_shape=jax.ShapeDtypeStruct((N, Tiles, M, Qp), jnp.bfloat16),
        grid_spec=pltpu.PrefetchScalarGridSpec(
            num_scalar_prefetch=0,
            grid=(N, Tiles),
            in_specs=in_specs,
            out_specs=pl.BlockSpec((1, 1, M, Qp), lambda n, t: (n, t, 0, 0)),
            scratch_shapes=[zbuf],
        ),
        compiler_params=pltpu.CompilerParams(
            dimension_semantics=("parallel", "parallel"),
            vmem_limit_bytes=_vmem_limit_bytes()),
        cost_estimate=cost,
    )(*inputs)

    out = out.reshape(N, Ho_pad, Wo, Qp)[:, :Ho, :, :Cout]   # drop padding
    return jnp.transpose(out, (0, 3, 1, 2)).astype(jnp.float32)  # NHWC -> NCHW


# --------------------------- reference (pure JAX) ----------------------------

def ref_forward(x, params, stride, eps=1e-5):
    def conv(x, w, s=1, p=0):
        return lax.conv_general_dilated(
            x, w, (s, s), [(p, p), (p, p)],
            dimension_numbers=("NCHW", "OIHW", "NCHW"))

    def bn(x, pr):
        g, b, m, v = pr
        inv = 1.0 / jnp.sqrt(v + eps)
        return ((x - m[None, :, None, None]) * inv[None, :, None, None]
                * g[None, :, None, None] + b[None, :, None, None])

    out = jax.nn.relu(bn(conv(x, params["w1"]), params["bn1"]))
    out = jax.nn.relu(bn(conv(out, params["w2"], stride, 1), params["bn2"]))
    out = bn(conv(out, params["w3"]), params["bn3"])
    if "w_sc" in params:
        sc = bn(conv(x, params["w_sc"], stride), params["bn_sc"])
    else:
        sc = x
    return jax.nn.relu(out + sc)


# ---------------------------------- main -------------------------------------

def make_params(key, in_planes, planes, stride):
    expansion = 4
    ks = jax.random.split(key, 16)

    def bn_params(k, c):
        k1, k2, k3, k4 = jax.random.split(k, 4)
        gamma = 1.0 + 0.1 * jax.random.normal(k1, (c,), jnp.float32)
        beta = 0.1 * jax.random.normal(k2, (c,), jnp.float32)
        mean = 0.1 * jax.random.normal(k3, (c,), jnp.float32)
        var = 0.5 + 0.5 * jnp.abs(jax.random.normal(k4, (c,), jnp.float32))
        return (gamma, beta, mean, var)

    params = {
        "w1": 0.1 * jax.random.normal(ks[0], (planes, in_planes, 1, 1), jnp.float32),
        "bn1": bn_params(ks[1], planes),
        "w2": 0.1 * jax.random.normal(ks[2], (planes, planes, 3, 3), jnp.float32),
        "bn2": bn_params(ks[3], planes),
        "w3": 0.1 * jax.random.normal(ks[4], (expansion * planes, planes, 1, 1), jnp.float32),
        "bn3": bn_params(ks[5], expansion * planes),
    }
    if stride != 1 or in_planes != expansion * planes:
        params["w_sc"] = 0.1 * jax.random.normal(
            ks[6], (expansion * planes, in_planes, 1, 1), jnp.float32)
        params["bn_sc"] = bn_params(ks[7], expansion * planes)
    return params


if __name__ == "__main__":
    in_planes, planes, stride = 16, 8, 2
    N, H, W = 2, 16, 16

    key = jax.random.PRNGKey(0)
    kx, kp = jax.random.split(key)
    x = jax.random.normal(kx, (N, in_planes, H, W), jnp.float32)
    params = make_params(kp, in_planes, planes, stride)

    out = jax.block_until_ready(bottleneck_forward(x, params, stride))
    ref = jax.block_until_ready(ref_forward(x, params, stride))

    assert out.shape == ref.shape, (out.shape, ref.shape)
    # bf16 matmul/residual path -> looser tolerance than the pure-f32 reference.
    max_err = float(jnp.max(jnp.abs(out - ref)))
    assert jnp.allclose(out, ref, rtol=5e-2, atol=5e-2), max_err

    print("KERNEL_OK")
</pallas_src>

<mosaic_0001>
module attributes {stable_mosaic.version = 11 : i64} {
  func.func @_conv1x1_bn_relu_kernel(%arg0: i32, %arg1: memref<128x128xbf16, #tpu.memory_space<vmem>>, %arg2: memref<128x128xbf16, #tpu.memory_space<vmem>>, %arg3: memref<1x128xf32, #tpu.memory_space<vmem>>, %arg4: memref<1x128xf32, #tpu.memory_space<vmem>>, %arg5: memref<128x128xbf16, #tpu.memory_space<vmem>>) attributes {dimension_semantics = [#tpu.dimension_semantics<parallel>], iteration_bounds = array<i64: 4>, scalar_prefetch = 0 : i64, scratch_operands = 0 : i64, tpu.core_type = #tpu.core_type<tc>, window_params = [{transform_indices = @transform_0, window_bounds = array<i64: 128, 128>}, {pipeline_mode = #tpu.pipeline_mode<synchronous>, transform_indices = @transform_1, window_bounds = array<i64: 128, 128>}, {pipeline_mode = #tpu.pipeline_mode<synchronous>, transform_indices = @transform_2, window_bounds = array<i64: 1, 128>}, {pipeline_mode = #tpu.pipeline_mode<synchronous>, transform_indices = @transform_3, window_bounds = array<i64: 1, 128>}, {transform_indices = @transform_4, window_bounds = array<i64: 128, 128>}]} {
    %c0 = arith.constant 0 : index
    %c0_0 = arith.constant 0 : index
    %0 = vector.load %arg1[%c0, %c0_0] : memref<128x128xbf16, #tpu.memory_space<vmem>>, vector<128x128xbf16>
    %c0_1 = arith.constant 0 : index
    %c0_2 = arith.constant 0 : index
    %1 = vector.load %arg2[%c0_1, %c0_2] : memref<128x128xbf16, #tpu.memory_space<vmem>>, vector<128x128xbf16>
    %cst = arith.constant dense<0.000000e+00> : vector<128x128xf32>
    %2 = tpu.matmul %0, %1, %cst {dimension_numbers = #tpu.dot_dimension_numbers<[1], [0], [0], [1], [0, 0, 1, 1], [], []>} : vector<128x128xbf16>, vector<128x128xbf16>, vector<128x128xf32> -> vector<128x128xf32>
    %c0_3 = arith.constant 0 : index
    %c0_4 = arith.constant 0 : index
    %3 = vector.load %arg3[%c0_3, %c0_4] : memref<1x128xf32, #tpu.memory_space<vmem>>, vector<1x128xf32>
    %4 = vector.broadcast %3 : vector<1x128xf32> to vector<128x128xf32>
    %5 = arith.mulf %2, %4 : vector<128x128xf32>
    %c0_5 = arith.constant 0 : index
    %c0_6 = arith.constant 0 : index
    %6 = vector.load %arg4[%c0_5, %c0_6] : memref<1x128xf32, #tpu.memory_space<vmem>>, vector<1x128xf32>
    %7 = vector.broadcast %6 : vector<1x128xf32> to vector<128x128xf32>
    %8 = arith.addf %5, %7 : vector<128x128xf32>
    %cst_7 = arith.constant 0.000000e+00 : f32
    %9 = vector.broadcast %cst_7 : f32 to vector<128x128xf32>
    %10 = arith.maximumf %8, %9 : vector<128x128xf32>
    %11 = arith.truncf %10 : vector<128x128xf32> to vector<128x128xbf16>
    %c0_8 = arith.constant 0 : index
    %c0_9 = arith.constant 0 : index
    %12 = vector.load %arg5[%c0_8, %c0_9] : memref<128x128xbf16, #tpu.memory_space<vmem>>, vector<128x128xbf16>
    tpu.vector_store %arg5[%c0_8, %c0_9], %11 {strides = array<i32>} : memref<128x128xbf16, #tpu.memory_space<vmem>>, vector<128x128xbf16>,
    return
  }
  func.func @transform_0(%arg0: i32) -> (i32, i32) {
    %c0_i32 = arith.constant 0 : i32
    %c0_i32_0 = arith.constant 0 : i32
    return %arg0, %c0_i32 : i32, i32
  }
  func.func @transform_1(%arg0: i32) -> (i32, i32) {
    %c0_i32 = arith.constant 0 : i32
    %c0_i32_0 = arith.constant 0 : i32
    %c0_i32_1 = arith.constant 0 : i32
    return %c0_i32, %c0_i32_0 : i32, i32
  }
  func.func @transform_2(%arg0: i32) -> (i32, i32) {
    %c0_i32 = arith.constant 0 : i32
    %c0_i32_0 = arith.constant 0 : i32
    %c0_i32_1 = arith.constant 0 : i32
    return %c0_i32, %c0_i32_0 : i32, i32
  }
  func.func @transform_3(%arg0: i32) -> (i32, i32) {
    %c0_i32 = arith.constant 0 : i32
    %c0_i32_0 = arith.constant 0 : i32
    %c0_i32_1 = arith.constant 0 : i32
    return %c0_i32, %c0_i32_0 : i32, i32
  }
  func.func @transform_4(%arg0: i32) -> (i32, i32) {
    %c0_i32 = arith.constant 0 : i32
    %c0_i32_0 = arith.constant 0 : i32
    return %arg0, %c0_i32 : i32, i32
  }
}

module attributes {stable_mosaic.version = 11 : i64} {
  func.func @_fused_conv2_conv3_kernel(%arg0: i32, %arg1: i32, %arg2: memref<1x16x18x128xbf16, #tpu.memory_space<vmem>>, %arg3: memref<1x2x18x128xbf16, #tpu.memory_space<vmem>>, %arg4: memref<1x1x64x128xbf16, #tpu.memory_space<vmem>>, %arg5: memref<3x3x128x128xbf16, #tpu.memory_space<vmem>>, %arg6: memref<1x128xf32, #tpu.memory_space<vmem>>, %arg7: memref<1x128xf32, #tpu.memory_space<vmem>>, %arg8: memref<128x128xbf16, #tpu.memory_space<vmem>>, %arg9: memref<1x128xf32, #tpu.memory_space<vmem>>, %arg10: memref<1x128xf32, #tpu.memory_space<vmem>>, %arg11: memref<128x128xbf16, #tpu.memory_space<vmem>>, %arg12: memref<1x128xf32, #tpu.memory_space<vmem>>, %arg13: memref<1x128xf32, #tpu.memory_space<vmem>>, %arg14: memref<1x1x64x128xbf16, #tpu.memory_space<vmem>>, %arg15: memref<9x2x18x128xbf16, #tpu.memory_space<vmem>>) attributes {dimension_semantics = [#tpu.dimension_semantics<parallel>, #tpu.dimension_semantics<parallel>], iteration_bounds = array<i64: 2, 1>, scalar_prefetch = 0 : i64, scratch_operands = 1 : i64, tpu.core_type = #tpu.core_type<tc>, window_params = [{transform_indices = @transform_0, window_bounds = array<i64: 1, 16, 18, 128>}, {transform_indices = @transform_1, window_bounds = array<i64: 1, 2, 18, 128>}, {transform_indices = @transform_2, window_bounds = array<i64: 1, 1, 64, 128>}, {pipeline_mode = #tpu.pipeline_mode<synchronous>, transform_indices = @transform_3, window_bounds = array<i64: 3, 3, 128, 128>}, {pipeline_mode = #tpu.pipeline_mode<synchronous>, transform_indices = @transform_4, window_bounds = array<i64: 1, 128>}, {pipeline_mode = #tpu.pipeline_mode<synchronous>, transform_indices = @transform_5, window_bounds = array<i64: 1, 128>}, {pipeline_mode = #tpu.pipeline_mode<synchronous>, transform_indices = @transform_6, window_bounds = array<i64: 128, 128>}, {pipeline_mode = #tpu.pipeline_mode<synchronous>, transform_indices = @transform_7, window_bounds = array<i64: 1, 128>}, {pipeline_mode = #tpu.pipeline_mode<synchronous>, transform_indices = @transform_8, window_bounds = array<i64: 1, 128>}, {pipeline_mode = #tpu.pipeline_mode<synchronous>, transform_indices = @transform_9, window_bounds = array<i64: 128, 128>}, {pipeline_mode = #tpu.pipeline_mode<synchronous>, transform_indices = @transform_10, window_bounds = array<i64: 1, 128>}, {pipeline_mode = #tpu.pipeline_mode<synchronous>, transform_indices = @transform_11, window_bounds = array<i64: 1, 128>}, {transform_indices = @transform_12, window_bounds = array<i64: 1, 1, 64, 128>}]} {
    %c0 = arith.constant 0 : index
    %c0_0 = arith.constant 0 : index
    %c0_1 = arith.constant 0 : index
    %c0_2 = arith.constant 0 : index
    %0 = vector.load %arg2[%c0, %c0_0, %c0_1, %c0_2] : memref<1x16x18x128xbf16, #tpu.memory_space<vmem>>, vector<1x16x18x128xbf16>
    %1 = vector.shape_cast %0 : vector<1x16x18x128xbf16> to vector<16x18x128xbf16>
    %2 = vector.shape_cast %1 : vector<16x18x128xbf16> to vector<8x2x18x128xbf16>
    %c0_3 = arith.constant 0 : index
    %c0_4 = arith.constant 0 : index
    %c0_5 = arith.constant 0 : index
    %c0_6 = arith.constant 0 : index
    %3 = vector.load %arg15[%c0_3, %c0_4, %c0_5, %c0_6] : memref<9x2x18x128xbf16, #tpu.memory_space<vmem>>, vector<8x2x18x128xbf16>
    tpu.vector_store %arg15[%c0_3, %c0_4, %c0_5, %c0_6], %2 {strides = array<i32>} : memref<9x2x18x128xbf16, #tpu.memory_space<vmem>>, vector<8x2x18x128xbf16>,
    %c0_7 = arith.constant 0 : index
    %c0_8 = arith.constant 0 : index
    %c0_9 = arith.constant 0 : index
    %c0_10 = arith.constant 0 : index
    %4 = vector.load %arg3[%c0_7, %c0_8, %c0_9, %c0_10] : memref<1x2x18x128xbf16, #tpu.memory_space<vmem>>, vector<1x2x18x128xbf16>
    %5 = vector.shape_cast %4 : vector<1x2x18x128xbf16> to vector<2x18x128xbf16>
    %c8 = arith.constant 8 : index
    %c0_11 = arith.constant 0 : index
    %c0_12 = arith.constant 0 : index
    %c0_13 = arith.constant 0 : index
    %6 = vector.load %arg15[%c8, %c0_11, %c0_12, %c0_13] : memref<9x2x18x128xbf16, #tpu.memory_space<vmem>>, vector<1x2x18x128xbf16>
    %7 = vector.shape_cast %6 : vector<1x2x18x128xbf16> to vector<2x18x128xbf16>
    %8 = vector.shape_cast %5 : vector<2x18x128xbf16> to vector<1x2x18x128xbf16>
    tpu.vector_store %arg15[%c8, %c0_11, %c0_12, %c0_13], %8 {strides = array<i32>} : memref<9x2x18x128xbf16, #tpu.memory_space<vmem>>, vector<1x2x18x128xbf16>,
    %cst = arith.constant 0.000000e+00 : f32
    %9 = vector.broadcast %cst : f32 to vector<64x128xf32>
    %c0_14 = arith.constant 0 : index
    %c0_15 = arith.constant 0 : index
    %c0_16 = arith.constant 0 : index
    %c0_17 = arith.constant 0 : index
    %10 = vector.load %arg15[%c0_14, %c0_15, %c0_16, %c0_17] : memref<9x2x18x128xbf16, #tpu.memory_space<vmem>>, vector<8x1x8x128xbf16>
    %11 = vector.shape_cast %10 : vector<8x1x8x128xbf16> to vector<8x8x128xbf16>
    %12 = vector.shape_cast %11 : vector<8x8x128xbf16> to vector<64x128xbf16>
    %c0_18 = arith.constant 0 : index
    %c0_19 = arith.constant 0 : index
    %c0_20 = arith.constant 0 : index
    %c0_21 = arith.constant 0 : index
    %13 = vector.load %arg5[%c0_18, %c0_19, %c0_20, %c0_21] : memref<3x3x128x128xbf16, #tpu.memory_space<vmem>>, vector<1x1x128x128xbf16>
    %14 = vector.shape_cast %13 : vector<1x1x128x128xbf16> to vector<128x128xbf16>
    %cst_22 = arith.constant dense<0.000000e+00> : vector<64x128xf32>
    %15 = tpu.matmul %12, %14, %cst_22 {dimension_numbers = #tpu.dot_dimension_numbers<[1], [0], [0], [1], [0, 0, 1, 1], [], []>} : vector<64x128xbf16>, vector<128x128xbf16>, vector<64x128xf32> -> vector<64x128xf32>
    %16 = arith.addf %9, %15 : vector<64x128xf32>
    %c0_23 = arith.constant 0 : index
    %c0_24 = arith.constant 0 : index
    %c9 = arith.constant 9 : index
    %c0_25 = arith.constant 0 : index
    %17 = vector.load %arg15[%c0_23, %c0_24, %c9, %c0_25] : memref<9x2x18x128xbf16, #tpu.memory_space<vmem>>, vector<8x1x8x128xbf16>
    %18 = vector.shape_cast %17 : vector<8x1x8x128xbf16> to vector<8x8x128xbf16>
    %19 = vector.shape_cast %18 : vector<8x8x128xbf16> to vector<64x128xbf16>
    %c0_26 = arith.constant 0 : index
    %c1 = arith.constant 1 : index
    %c0_27 = arith.constant 0 : index
    %c0_28 = arith.constant 0 : index
    %20 = vector.load %arg5[%c0_26, %c1, %c0_27, %c0_28] : memref<3x3x128x128xbf16, #tpu.memory_space<vmem>>, vector<1x1x128x128xbf16>
    %21 = vector.shape_cast %20 : vector<1x1x128x128xbf16> to vector<128x128xbf16>
    %cst_29 = arith.constant dense<0.000000e+00> : vector<64x128xf32>
    %22 = tpu.matmul %19, %21, %cst_29 {dimension_numbers = #tpu.dot_dimension_numbers<[1], [0], [0], [1], [0, 0, 1, 1], [], []>} : vector<64x128xbf16>, vector<128x128xbf16>, vector<64x128xf32> -> vector<64x128xf32>
    %23 = arith.addf %16, %22 : vector<64x128xf32>
    %c0_30 = arith.constant 0 : index
    %c0_31 = arith.constant 0 : index
    %c1_32 = arith.constant 1 : index
    %c0_33 = arith.constant 0 : index
    %24 = vector.load %arg15[%c0_30, %c0_31, %c1_32, %c0_33] : memref<9x2x18x128xbf16, #tpu.memory_space<vmem>>, vector<8x1x8x128xbf16>
    %25 = vector.shape_cast %24 : vector<8x1x8x128xbf16> to vector<8x8x128xbf16>
    %26 = vector.shape_cast %25 : vector<8x8x128xbf16> to vector<64x128xbf16>
    %c0_34 = arith.constant 0 : index
    %c2 = arith.constant 2 : index
    %c0_35 = arith.constant 0 : index
    %c0_36 = arith.constant 0 : index
    %27 = vector.load %arg5[%c0_34, %c2, %c0_35, %c0_36] : memref<3x3x128x128xbf16, #tpu.memory_space<vmem>>, vector<1x1x128x128xbf16>
    %28 = vector.shape_cast %27 : vector<1x1x128x128xbf16> to vector<128x128xbf16>
    %cst_37 = arith.constant dense<0.000000e+00> : vector<64x128xf32>
    %29 = tpu.matmul %26, %28, %cst_37 {dimension_numbers = #tpu.dot_dimension_numbers<[1], [0], [0], [1], [0, 0, 1, 1], [], []>} : vector<64x128xbf16>, vector<128x128xbf16>, vector<64x128xf32> -> vector<64x128xf32>
    %30 = arith.addf %23, %29 : vector<64x128xf32>
    %c0_38 = arith.constant 0 : index
    %c1_39 = arith.constant 1 : index
    %c0_40 = arith.constant 0 : index
    %c0_41 = arith.constant 0 : index
    %31 = vector.load %arg15[%c0_38, %c1_39, %c0_40, %c0_41] : memref<9x2x18x128xbf16, #tpu.memory_space<vmem>>, vector<8x1x8x128xbf16>
    %32 = vector.shape_cast %31 : vector<8x1x8x128xbf16> to vector<8x8x128xbf16>
    %33 = vector.shape_cast %32 : vector<8x8x128xbf16> to vector<64x128xbf16>
    %c1_42 = arith.constant 1 : index
    %c0_43 = arith.constant 0 : index
    %c0_44 = arith.constant 0 : index
    %c0_45 = arith.constant 0 : index
    %34 = vector.load %arg5[%c1_42, %c0_43, %c0_44, %c0_45] : memref<3x3x128x128xbf16, #tpu.memory_space<vmem>>, vector<1x1x128x128xbf16>
    %35 = vector.shape_cast %34 : vector<1x1x128x128xbf16> to vector<128x128xbf16>
    %cst_46 = arith.constant dense<0.000000e+00> : vector<64x128xf32>
    %36 = tpu.matmul %33, %35, %cst_46 {dimension_numbers = #tpu.dot_dimension_numbers<[1], [0], [0], [1], [0, 0, 1, 1], [], []>} : vector<64x128xbf16>, vector<128x128xbf16>, vector<64x128xf32> -> vector<64x128xf32>
    %37 = arith.addf %30, %36 : vector<64x128xf32>
    %c0_47 = arith.constant 0 : index
    %c1_48 = arith.constant 1 : index
    %c9_49 = arith.constant 9 : index
    %c0_50 = arith.constant 0 : index
    %38 = vector.load %arg15[%c0_47, %c1_48, %c9_49, %c0_50] : memref<9x2x18x128xbf16, #tpu.memory_space<vmem>>, vector<8x1x8x128xbf16>
    %39 = vector.shape_cast %38 : vector<8x1x8x128xbf16> to vector<8x8x128xbf16>
    %40 = vector.shape_cast %39 : vector<8x8x128xbf16> to vector<64x128xbf16>
    %c1_51 = arith.constant 1 : index
    %c1_52 = arith.constant 1 : index
    %c0_53 = arith.constant 0 : index
    %c0_54 = arith.constant 0 : index
    %41 = vector.load %arg5[%c1_51, %c1_52, %c0_53, %c0_54] : memref<3x3x128x128xbf16, #tpu.memory_space<vmem>>, vector<1x1x128x128xbf16>
    %42 = vector.shape_cast %41 : vector<1x1x128x128xbf16> to vector<128x128xbf16>
    %cst_55 = arith.constant dense<0.000000e+00> : vector<64x128xf32>
    %43 = tpu.matmul %40, %42, %cst_55 {dimension_numbers = #tpu.dot_dimension_numbers<[1], [0], [0], [1], [0, 0, 1, 1], [], []>} : vector<64x128xbf16>, vector<128x128xbf16>, vector<64x128xf32> -> vector<64x128xf32>
    %44 = arith.addf %37, %43 : vector<64x128xf32>
    %c0_56 = arith.constant 0 : index
    %c1_57 = arith.constant 1 : index
    %c1_58 = arith.constant 1 : index
    %c0_59 = arith.constant 0 : index
    %45 = vector.load %arg15[%c0_56, %c1_57, %c1_58, %c0_59] : memref<9x2x18x128xbf16, #tpu.memory_space<vmem>>, vector<8x1x8x128xbf16>
    %46 = vector.shape_cast %45 : vector<8x1x8x128xbf16> to vector<8x8x128xbf16>
    %47 = vector.shape_cast %46 : vector<8x8x128xbf16> to vector<64x128xbf16>
    %c1_60 = arith.constant 1 : index
    %c2_61 = arith.constant 2 : index
    %c0_62 = arith.constant 0 : index
    %c0_63 = arith.constant 0 : index
    %48 = vector.load %arg5[%c1_60, %c2_61, %c0_62, %c0_63] : memref<3x3x128x128xbf16, #tpu.memory_space<vmem>>, vector<1x1x128x128xbf16>
    %49 = vector.shape_cast %48 : vector<1x1x128x128xbf16> to vector<128x128xbf16>
    %cst_64 = arith.constant dense<0.000000e+00> : vector<64x128xf32>
    %50 = tpu.matmul %47, %49, %cst_64 {dimension_numbers = #tpu.dot_dimension_numbers<[1], [0], [0], [1], [0, 0, 1, 1], [], []>} : vector<64x128xbf16>, vector<128x128xbf16>, vector<64x128xf32> -> vector<64x128xf32>
    %51 = arith.addf %44, %50 : vector<64x128xf32>
    %c1_65 = arith.constant 1 : index
    %c0_66 = arith.constant 0 : index
    %c0_67 = arith.constant 0 : index
    %c0_68 = arith.constant 0 : index
    %52 = vector.load %arg15[%c1_65, %c0_66, %c0_67, %c0_68] : memref<9x2x18x128xbf16, #tpu.memory_space<vmem>>, vector<8x1x8x128xbf16>
    %53 = vector.shape_cast %52 : vector<8x1x8x128xbf16> to vector<8x8x128xbf16>
    %54 = vector.shape_cast %53 : vector<8x8x128xbf16> to vector<64x128xbf16>
    %c2_69 = arith.constant 2 : index
    %c0_70 = arith.constant 0 : index
    %c0_71 = arith.constant 0 : index
    %c0_72 = arith.constant 0 : index
    %55 = vector.load %arg5[%c2_69, %c0_70, %c0_71, %c0_72] : memref<3x3x128x128xbf16, #tpu.memory_space<vmem>>, vector<1x1x128x128xbf16>
    %56 = vector.shape_cast %55 : vector<1x1x128x128xbf16> to vector<128x128xbf16>
    %cst_73 = arith.constant dense<0.000000e+00> : vector<64x128xf32>
    %57 = tpu.matmul %54, %56, %cst_73 {dimension_numbers = #tpu.dot_dimension_numbers<[1], [0], [0], [1], [0, 0, 1, 1], [], []>} : vector<64x128xbf16>, vector<128x128xbf16>, vector<64x128xf32> -> vector<64x128xf32>
    %58 = arith.addf %51, %57 : vector<64x128xf32>
    %c1_74 = arith.constant 1 : index
    %c0_75 = arith.constant 0 : index
    %c9_76 = arith.constant 9 : index
    %c0_77 = arith.constant 0 : index
    %59 = vector.load %arg15[%c1_74, %c0_75, %c9_76, %c0_77] : memref<9x2x18x128xbf16, #tpu.memory_space<vmem>>, vector<8x1x8x128xbf16>
    %60 = vector.shape_cast %59 : vector<8x1x8x128xbf16> to vector<8x8x128xbf16>
    %61 = vector.shape_cast %60 : vector<8x8x128xbf16> to vector<64x128xbf16>
    %c2_78 = arith.constant 2 : index
    %c1_79 = arith.constant 1 : index
    %c0_80 = arith.constant 0 : index
    %c0_81 = arith.constant 0 : index
    %62 = vector.load %arg5[%c2_78, %c1_79, %c0_80, %c0_81] : memref<3x3x128x128xbf16, #tpu.memory_space<vmem>>, vector<1x1x128x128xbf16>
    %63 = vector.shape_cast %62 : vector<1x1x128x128xbf16> to vector<128x128xbf16>
    %cst_82 = arith.constant dense<0.000000e+00> : vector<64x128xf32>
    %64 = tpu.matmul %61, %63, %cst_82 {dimension_numbers = #tpu.dot_dimension_numbers<[1], [0], [0], [1], [0, 0, 1, 1], [], []>} : vector<64x128xbf16>, vector<128x128xbf16>, vector<64x128xf32> -> vector<64x128xf32>
    %65 = arith.addf %58, %64 : vector<64x128xf32>
    %c1_83 = arith.constant 1 : index
    %c0_84 = arith.constant 0 : index
    %c1_85 = arith.constant 1 : index
    %c0_86 = arith.constant 0 : index
    %66 = vector.load %arg15[%c1_83, %c0_84, %c1_85, %c0_86] : memref<9x2x18x128xbf16, #tpu.memory_space<vmem>>, vector<8x1x8x128xbf16>
    %67 = vector.shape_cast %66 : vector<8x1x8x128xbf16> to vector<8x8x128xbf16>
    %68 = vector.shape_cast %67 : vector<8x8x128xbf16> to vector<64x128xbf16>
    %c2_87 = arith.constant 2 : index
    %c2_88 = arith.constant 2 : index
    %c0_89 = arith.constant 0 : index
    %c0_90 = arith.constant 0 : index
    %69 = vector.load %arg5[%c2_87, %c2_88, %c0_89, %c0_90] : memref<3x3x128x128xbf16, #tpu.memory_space<vmem>>, vector<1x1x128x128xbf16>
    %70 = vector.shape_cast %69 : vector<1x1x128x128xbf16> to vector<128x128xbf16>
    %cst_91 = arith.constant dense<0.000000e+00> : vector<64x128xf32>
    %71 = tpu.matmul %68, %70, %cst_91 {dimension_numbers = #tpu.dot_dimension_numbers<[1], [0], [0], [1], [0, 0, 1, 1], [], []>} : vector<64x128xbf16>, vector<128x128xbf16>, vector<64x128xf32> -> vector<64x128xf32>
    %72 = arith.addf %65, %71 : vector<64x128xf32>
    %c0_92 = arith.constant 0 : index
    %c0_93 = arith.constant 0 : index
    %73 = vector.load %arg6[%c0_92, %c0_93] : memref<1x128xf32, #tpu.memory_space<vmem>>, vector<1x128xf32>
    %74 = vector.broadcast %73 : vector<1x128xf32> to vector<64x128xf32>
    %75 = arith.mulf %72, %74 : vector<64x128xf32>
    %c0_94 = arith.constant 0 : index
    %c0_95 = arith.constant 0 : index
    %76 = vector.load %arg7[%c0_94, %c0_95] : memref<1x128xf32, #tpu.memory_space<vmem>>, vector<1x128xf32>
    %77 = vector.broadcast %76 : vector<1x128xf32> to vector<64x128xf32>
    %78 = arith.addf %75, %77 : vector<64x128xf32>
    %cst_96 = arith.constant 0.000000e+00 : f32
    %79 = vector.broadcast %cst_96 : f32 to vector<64x128xf32>
    %80 = arith.maximumf %78, %79 : vector<64x128xf32>
    %81 = arith.truncf %80 : vector<64x128xf32> to vector<64x128xbf16>
    %c0_97 = arith.constant 0 : index
    %c0_98 = arith.constant 0 : index
    %82 = vector.load %arg8[%c0_97, %c0_98] : memref<128x128xbf16, #tpu.memory_space<vmem>>, vector<128x128xbf16>
    %cst_99 = arith.constant dense<0.000000e+00> : vector<64x128xf32>
    %83 = tpu.matmul %81, %82, %cst_99 {dimension_numbers = #tpu.dot_dimension_numbers<[1], [0], [0], [1], [0, 0, 1, 1], [], []>} : vector<64x128xbf16>, vector<128x128xbf16>, vector<64x128xf32> -> vector<64x128xf32>
    %c0_100 = arith.constant 0 : index
    %c0_101 = arith.constant 0 : index
    %84 = vector.load %arg9[%c0_100, %c0_101] : memref<1x128xf32, #tpu.memory_space<vmem>>, vector<1x128xf32>
    %85 = vector.broadcast %84 : vector<1x128xf32> to vector<64x128xf32>
    %86 = arith.mulf %83, %85 : vector<64x128xf32>
    %c0_102 = arith.constant 0 : index
    %c0_103 = arith.constant 0 : index
    %87 = vector.load %arg10[%c0_102, %c0_103] : memref<1x128xf32, #tpu.memory_space<vmem>>, vector<1x128xf32>
    %88 = vector.broadcast %87 : vector<1x128xf32> to vector<64x128xf32>
    %89 = arith.addf %86, %88 : vector<64x128xf32>
    %c0_104 = arith.constant 0 : index
    %c0_105 = arith.constant 0 : index
    %c0_106 = arith.constant 0 : index
    %c0_107 = arith.constant 0 : index
    %90 = vector.load %arg4[%c0_104, %c0_105, %c0_106, %c0_107] : memref<1x1x64x128xbf16, #tpu.memory_space<vmem>>, vector<1x1x64x128xbf16>
    %91 = vector.shape_cast %90 : vector<1x1x64x128xbf16> to vector<64x128xbf16>
    %c0_108 = arith.constant 0 : index
    %c0_109 = arith.constant 0 : index
    %92 = vector.load %arg11[%c0_108, %c0_109] : memref<128x128xbf16, #tpu.memory_space<vmem>>, vector<128x128xbf16>
    %cst_110 = arith.constant dense<0.000000e+00> : vector<64x128xf32>
    %93 = tpu.matmul %91, %92, %cst_110 {dimension_numbers = #tpu.dot_dimension_numbers<[1], [0], [0], [1], [0, 0, 1, 1], [], []>} : vector<64x128xbf16>, vector<128x128xbf16>, vector<64x128xf32> -> vector<64x128xf32>
    %c0_111 = arith.constant 0 : index
    %c0_112 = arith.constant 0 : index
    %94 = vector.load %arg12[%c0_111, %c0_112] : memref<1x128xf32, #tpu.memory_space<vmem>>, vector<1x128xf32>
    %95 = vector.broadcast %94 : vector<1x128xf32> to vector<64x128xf32>
    %96 = arith.mulf %93, %95 : vector<64x128xf32>
    %c0_113 = arith.constant 0 : index
    %c0_114 = arith.constant 0 : index
    %97 = vector.load %arg13[%c0_113, %c0_114] : memref<1x128xf32, #tpu.memory_space<vmem>>, vector<1x128xf32>
    %98 = vector.broadcast %97 : vector<1x128xf32> to vector<64x128xf32>
    %99 = arith.addf %96, %98 : vector<64x128xf32>
    %100 = arith.addf %89, %99 : vector<64x128xf32>
    %cst_115 = arith.constant 0.000000e+00 : f32
    %101 = vector.broadcast %cst_115 : f32 to vector<64x128xf32>
    %102 = arith.maximumf %100, %101 : vector<64x128xf32>
    %103 = arith.truncf %102 : vector<64x128xf32> to vector<64x128xbf16>
    %c0_116 = arith.constant 0 : index
    %c0_117 = arith.constant 0 : index
    %c0_118 = arith.constant 0 : index
    %c0_119 = arith.constant 0 : index
    %104 = vector.load %arg14[%c0_116, %c0_117, %c0_118, %c0_119] : memref<1x1x64x128xbf16, #tpu.memory_space<vmem>>, vector<1x1x64x128xbf16>
    %105 = vector.shape_cast %104 : vector<1x1x64x128xbf16> to vector<64x128xbf16>
    %106 = vector.shape_cast %103 : vector<64x128xbf16> to vector<1x1x64x128xbf16>
    tpu.vector_store %arg14[%c0_116, %c0_117, %c0_118, %c0_119], %106 {strides = array<i32>} : memref<1x1x64x128xbf16, #tpu.memory_space<vmem>>, vector<1x1x64x128xbf16>,
    return
  }
  func.func @transform_0(%arg0: i32, %arg1: i32) -> (i32, i32, i32, i32) {
    %c0_i32 = arith.constant 0 : i32
    %c0_i32_0 = arith.constant 0 : i32
    %c0_i32_1 = arith.constant 0 : i32
    return %arg0, %arg1, %c0_i32, %c0_i32_0 : i32, i32, i32, i32
  }
  func.func @transform_1(%arg0: i32, %arg1: i32) -> (i32, i32, i32, i32) {
    %c1_i32 = arith.constant 1 : i32
    %0 = arith.addi %arg1, %c1_i32 : i32
    %c8_i32 = arith.constant 8 : i32
    %1 = arith.muli %0, %c8_i32 : i32
    %c0_i32 = arith.constant 0 : i32
    %c0_i32_0 = arith.constant 0 : i32
    %c0_i32_1 = arith.constant 0 : i32
    return %arg0, %1, %c0_i32, %c0_i32_0 : i32, i32, i32, i32
  }
  func.func @transform_2(%arg0: i32, %arg1: i32) -> (i32, i32, i32, i32) {
    %c0_i32 = arith.constant 0 : i32
    %c0_i32_0 = arith.constant 0 : i32
    %c0_i32_1 = arith.constant 0 : i32
    return %arg0, %arg1, %c0_i32, %c0_i32_0 : i32, i32, i32, i32
  }
  func.func @transform_3(%arg0: i32, %arg1: i32) -> (i32, i32, i32, i32) {
    %c0_i32 = arith.constant 0 : i32
    %c0_i32_0 = arith.constant 0 : i32
    %c0_i32_1 = arith.constant 0 : i32
    %c0_i32_2 = arith.constant 0 : i32
    %c0_i32_3 = arith.constant 0 : i32
    return %c0_i32, %c0_i32_0, %c0_i32_1, %c0_i32_2 : i32, i32, i32, i32
  }
  func.func @transform_4(%arg0: i32, %arg1: i32) -> (i32, i32) {
    %c0_i32 = arith.constant 0 : i32
    %c0_i32_0 = arith.constant 0 : i32
    %c0_i32_1 = arith.constant 0 : i32
    return %c0_i32, %c0_i32_0 : i32, i32
  }
  func.func @transform_5(%arg0: i32, %arg1: i32) -> (i32, i32) {
    %c0_i32 = arith.constant 0 : i32
    %c0_i32_0 = arith.constant 0 : i32
    %c0_i32_1 = arith.constant 0 : i32
    return %c0_i32, %c0_i32_0 : i32, i32
  }
  func.func @transform_6(%arg0: i32, %arg1: i32) -> (i32, i32) {
    %c0_i32 = arith.constant 0 : i32
    %c0_i32_0 = arith.constant 0 : i32
    %c0_i32_1 = arith.constant 0 : i32
    return %c0_i32, %c0_i32_0 : i32, i32
  }
  func.func @transform_7(%arg0: i32, %arg1: i32) -> (i32, i32) {
    %c0_i32 = arith.constant 0 : i32
    %c0_i32_0 = arith.constant 0 : i32
    %c0_i32_1 = arith.constant 0 : i32
    return %c0_i32, %c0_i32_0 : i32, i32
  }
  func.func @transform_8(%arg0: i32, %arg1: i32) -> (i32, i32) {
    %c0_i32 = arith.constant 0 : i32
    %c0_i32_0 = arith.constant 0 : i32
    %c0_i32_1 = arith.constant 0 : i32
    return %c0_i32, %c0_i32_0 : i32, i32
  }
  func.func @transform_9(%arg0: i32, %arg1: i32) -> (i32, i32) {
    %c0_i32 = arith.constant 0 : i32
    %c0_i32_0 = arith.constant 0 : i32
    %c0_i32_1 = arith.constant 0 : i32
    return %c0_i32, %c0_i32_0 : i32, i32
  }
  func.func @transform_10(%arg0: i32, %arg1: i32) -> (i32, i32) {
    %c0_i32 = arith.constant 0 : i32
    %c0_i32_0 = arith.constant 0 : i32
    %c0_i32_1 = arith.constant 0 : i32
    return %c0_i32, %c0_i32_0 : i32, i32
  }
  func.func @transform_11(%arg0: i32, %arg1: i32) -> (i32, i32) {
    %c0_i32 = arith.constant 0 : i32
    %c0_i32_0 = arith.constant 0 : i32
    %c0_i32_1 = arith.constant 0 : i32
    return %c0_i32, %c0_i32_0 : i32, i32
  }
  func.func @transform_12(%arg0: i32, %arg1: i32) -> (i32, i32, i32, i32) {
    %c0_i32 = arith.constant 0 : i32
    %c0_i32_0 = arith.constant 0 : i32
    %c0_i32_1 = arith.constant 0 : i32
    return %arg0, %arg1, %c0_i32, %c0_i32_0 : i32, i32, i32, i32
  }
}

</mosaic_0001>

<llo_original>
// kernel: bottleneck_forward.2
$region0: #{bottleneck_forward.2}
  #allocation0 [shape = 'u32[]', space=smem, size = 0x4, offset = 0x4, fixed_abs, tag = 'smem constant byte address 0x4 - core index']
  #allocation1 [shape = 'u32[144,128]{1,0:T(1,128)}', space=vmem, size = 0x12000, scoped, tag = 'internal scratch']
  %s0 = inlined_call_operand.vmem [shape: bf16[512,128], index: 0, kind: input, shape index: {}]
  %s1 = inlined_call_operand.vmem [shape: bf16[128,128], index: 1, kind: input, shape index: {}]
  %s2 = inlined_call_operand.vmem [shape: f32[1,128], index: 2, kind: input, shape index: {}]
  %s3 = inlined_call_operand.vmem [shape: f32[1,128], index: 3, kind: input, shape index: {}]
  %s4 = inlined_call_operand.vmem [shape: bf16[512,128], index: 4, kind: output, shape index: {}]
  %s5 = sld [smem:[#allocation0]]
  $region49: #{bottleneck_forward.2} parent=0
    _
  %s7 = ssub.s32 1, %s5
  %s8 = scalar_select 0, %s7, %s5
  loop: start=0, step=1, limit=6
  $region2: #{bottleneck_forward.2} parent=0 // loop_pre_header
    _
  $region3: #{bottleneck_forward.2} parent=0 // loop_header
    %s10 = sphi 0, %s14
    %p11 = scmp.ge.s32.totalorder %s10, 6
    %s20 = sphi 0, %s22
    %s23 = sphi 0, %s20
    %s24 = sphi 0, %s23
    %s40 = sphi 0, %s24
    %s44 = sphi 0, %s44
    %s46 = sphi 0, %s44
    %s47 = sphi 0, %s46
    %s61 = sphi 0, %s47
    %s65 = sphi 0, %s65
    %s67 = sphi 0, %s65
    %s68 = sphi 0, %s67
    %s82 = sphi 0, %s68
    %s86 = sphi 0, %s86
    %s88 = sphi 0, %s86
    %s89 = sphi 0, %s88
    %s103 = sphi 0, %s89
    %s109 = sphi 0, %s111
    %s112 = sphi 0, %s109
    %s113 = sphi 0, %s112
    %s129 = sphi 0, %s113
  $region4: #{bottleneck_forward.2} parent=0 // loop_header_branch
    %13 = sbr.rel (%p11) target = $region8
  $region5: #{bottleneck_forward.2} parent=0 // loop_body
    %s15 = ssub.s32 %s10, 1
    %s16 = ssub.s32 %s10, 2
    %s17 = sadd.s32 %s10, 1
    %s18 = ssub.s32 %s10, %s17
    %p19 = scmp.eq.s32.totalorder %s18, 0
    %s21 = sadd.s32 %s20, 1
    %s22 = scalar_select %p19, %s20, %s21
    %p25 = pneg %p19
    %p26 = scmp.eq.s32.totalorder %s10, 3
    %p27 = por %p25, %p26
    %p28 = scmp.ne.s32.totalorder %s20, %s23
    %p29 = scmp.eq.s32.totalorder %s10, 0
    %p30 = por %p28, %p29
    %p31 = scmp.ne.s32.totalorder %s20, %s23
    %p32 = scmp.eq.s32.totalorder %s15, 3
    %p33 = por %p31, %p32
    %p34 = scmp.ne.s32.totalorder %s23, %s24
    %p35 = scmp.eq.s32.totalorder %s15, 0
    %p36 = por %p34, %p35
    %p37 = scmp.ne.s32.totalorder %s23, %s24
    %p38 = scmp.eq.s32.totalorder %s16, 3
    %p39 = por %p37, %p38
    %p41 = scmp.ne.s32.totalorder %s24, %s40
    %p42 = scmp.eq.s32.totalorder %s16, 0
    %p43 = por %p41, %p42
    %s45 = sadd.s32 %s44, 1
    %p48 = scmp.eq.s32.totalorder %s10, 3
    %p49 = scmp.ne.s32.totalorder %s44, %s46
    %p50 = scmp.eq.s32.totalorder %s10, 0
    %p51 = por %p49, %p50
    %p52 = scmp.ne.s32.totalorder %s44, %s46
    %p53 = scmp.eq.s32.totalorder %s15, 3
    %p54 = por %p52, %p53
    %p55 = scmp.ne.s32.totalorder %s46, %s47
    %p56 = scmp.eq.s32.totalorder %s15, 0
    %p57 = por %p55, %p56
    %p58 = scmp.ne.s32.totalorder %s46, %s47
    %p59 = scmp.eq.s32.totalorder %s16, 3
    %p60 = por %p58, %p59
    %p62 = scmp.ne.s32.totalorder %s47, %s61
    %p63 = scmp.eq.s32.totalorder %s16, 0
    %p64 = por %p62, %p63
    %s66 = sadd.s32 %s65, 1
    %p69 = scmp.eq.s32.totalorder %s10, 3
    %p70 = scmp.ne.s32.totalorder %s65, %s67
    %p71 = scmp.eq.s32.totalorder %s10, 0
    %p72 = por %p70, %p71
    %p73 = scmp.ne.s32.totalorder %s65, %s67
    %p74 = scmp.eq.s32.totalorder %s15, 3
    %p75 = por %p73, %p74
    %p76 = scmp.ne.s32.totalorder %s67, %s68
    %p77 = scmp.eq.s32.totalorder %s15, 0
    %p78 = por %p76, %p77
    %p79 = scmp.ne.s32.totalorder %s67, %s68
    %p80 = scmp.eq.s32.totalorder %s16, 3
    %p81 = por %p79, %p80
    %p83 = scmp.ne.s32.totalorder %s68, %s82
    %p84 = scmp.eq.s32.totalorder %s16, 0
    %p85 = por %p83, %p84
    %s87 = sadd.s32 %s86, 1
    %p90 = scmp.eq.s32.totalorder %s10, 3
    %p91 = scmp.ne.s32.totalorder %s86, %s88
    %p92 = scmp.eq.s32.totalorder %s10, 0
    %p93 = por %p91, %p92
    %p94 = scmp.ne.s32.totalorder %s86, %s88
    %p95 = scmp.eq.s32.totalorder %s15, 3
    %p96 = por %p94, %p95
    %p97 = scmp.ne.s32.totalorder %s88, %s89
    %p98 = scmp.eq.s32.totalorder %s15, 0
    %p99 = por %p97, %p98
    %p100 = scmp.ne.s32.totalorder %s88, %s89
    %p101 = scmp.eq.s32.totalorder %s16, 3
    %p102 = por %p100, %p101
    %p104 = scmp.ne.s32.totalorder %s89, %s103
    %p105 = scmp.eq.s32.totalorder %s16, 0
    %p106 = por %p104, %p105
    %s107 = ssub.s32 %s10, %s17
    %p108 = scmp.eq.s32.totalorder %s107, 0
    %s110 = sadd.s32 %s109, 1
    %s111 = scalar_select %p108, %s109, %s110
    %p114 = pneg %p108
    %p115 = scmp.eq.s32.totalorder %s10, 3
    %p116 = por %p114, %p115
    %p117 = scmp.ne.s32.totalorder %s109, %s112
    %p118 = scmp.eq.s32.totalorder %s10, 0
    %p119 = por %p117, %p118
    %p120 = scmp.ne.s32.totalorder %s109, %s112
    %p121 = scmp.eq.s32.totalorder %s15, 3
    %p122 = por %p120, %p121
    %p123 = scmp.ne.s32.totalorder %s112, %s113
    %p124 = scmp.eq.s32.totalorder %s15, 0
    %p125 = por %p123, %p124
    %p126 = scmp.ne.s32.totalorder %s112, %s113
    %p127 = scmp.eq.s32.totalorder %s16, 3
    %p128 = por %p126, %p127
    %p130 = scmp.ne.s32.totalorder %s113, %s129
    %p131 = scmp.eq.s32.totalorder %s16, 0
    %p132 = por %p130, %p131
    %p133 = scmp.le.s32.totalorder 1, %s10
    %p134 = scmp.lt.s32.totalorder %s10, 5
    %p135 = pnand %p133, %p134
    %p136 = pneg %p135
    // Predicated region
    $region9: #{bottleneck_forward.2} parent=5 // pred_check
      _
    $region10: #{bottleneck_forward.2} parent=5 // pred_check_branch
      %138 = sbr.rel (%p135) target = $region12
    $region11: #{bottleneck_forward.2} parent=5 // pred_region
      %s139 = ssub.s32 %s10, 1
      // Predicated region
      $region13: #{bottleneck_forward.2} parent=11 // pred_check
        %p140 = pneg %p57
      $region14: #{bottleneck_forward.2} parent=11 // pred_check_branch
        %142 = sbr.rel (%p140) target = $region16
      $region15: #{bottleneck_forward.2} parent=11 // pred_region
        _
      $region16: #{bottleneck_forward.2} parent=11 // pred_fallthru
        _
      // Predicated region
      $region17: #{bottleneck_forward.2} parent=11 // pred_check
        %p143 = pneg %p78
      $region18: #{bottleneck_forward.2} parent=11 // pred_check_branch
        %145 = sbr.rel (%p143) target = $region20
      $region19: #{bottleneck_forward.2} parent=11 // pred_region
        _
      $region20: #{bottleneck_forward.2} parent=11 // pred_fallthru
        _
      // Predicated region
      $region21: #{bottleneck_forward.2} parent=11 // pred_check
        %p146 = pneg %p99
      $region22: #{bottleneck_forward.2} parent=11 // pred_check_branch
        %148 = sbr.rel (%p146) target = $region24
      $region23: #{bottleneck_forward.2} parent=11 // pred_region
        _
      $region24: #{bottleneck_forward.2} parent=11 // pred_fallthru
        _
    $region12: #{bottleneck_forward.2} parent=5 // pred_fallthru
      _
    %p149 = scmp.lt.s32.totalorder %s10, 4
    // Predicated region
    $region25: #{bottleneck_forward.2} parent=5 // pred_check
      %p150 = pneg %p149
    $region26: #{bottleneck_forward.2} parent=5 // pred_check_branch
      %152 = sbr.rel (%p150) target = $region28
    $region27: #{bottleneck_forward.2} parent=5 // pred_region
      // Predicated region
      $region29: #{bottleneck_forward.2} parent=27 // pred_check
        %p153 = pneg %p30
      $region30: #{bottleneck_forward.2} parent=27 // pred_check_branch
        %155 = sbr.rel (%p153) target = $region32
      $region31: #{bottleneck_forward.2} parent=27 // pred_region
        %s156 = smul.u32 16, %s10
        %p157 = scmp.lt.s32.totalorder %s156, 63
        %s158 = scalar_select %p157, %s156, 63
        %s159 = smul.addr %s158, 4
        %s160 = scalar_lea.vmem %s0, %s159
        %s161 = smul.u32 16, %s10
      $region32: #{bottleneck_forward.2} parent=27 // pred_fallthru
        _
    $region28: #{bottleneck_forward.2} parent=5 // pred_fallthru
      _
    %p162 = scmp.le.s32.totalorder 1, %s10
    %p163 = scmp.lt.s32.totalorder %s10, 5
    %p164 = pnand %p162, %p163
    %p165 = pneg %p164
    // Predicated region
    $region33: #{bottleneck_forward.2} parent=5 // pred_check
      _
    $region34: #{bottleneck_forward.2} parent=5 // pred_check_branch
      %167 = sbr.rel (%p164) target = $region36
    $region35: #{bottleneck_forward.2} parent=5 // pred_region
      %s168 = ssub.s32 %s10, 1
      %s169 = smul.u32 16, %s15
      %p170 = scmp.lt.s32.totalorder %s169, 63
      %s171 = scalar_select %p170, %s169, 63
      %s172 = smul.addr %s171, 4
      %s173 = scalar_lea.vmem %s0, %s172
      %p174 = pneg %p36
      %p175 = pneg %p33
      %p176 = pneg %p57
      %p177 = pneg %p54
      %p178 = pneg %p78
      %p179 = pneg %p75
      %p180 = pneg %p99
      %p181 = pneg %p96
      %p182 = pneg %p125
      %p183 = pneg %p122
      %s184 = smul.u32 16, %s15
      %p185 = scmp.lt.s32.totalorder %s184, 63
      %s186 = scalar_select %p185, %s184, 63
      %s187 = smul.addr %s186, 4
      %s188 = scalar_lea.vmem %s4, %s187
      %s189 = smul.u32 16, %s15
      %p190 = scmp.lt.s32.totalorder %s189, 63
      %s191 = scalar_select %p190, %s189, 63
      %s192 = smul.addr %s191, 4
      %s193 = scalar_lea.vmem %s0, %s192
      %s194 = smul.u32 16, %s15
      %s195 = smul.u32 16, %s15
      %p196 = scmp.lt.s32.totalorder %s195, 63
      %s197 = scalar_select %p196, %s195, 63
      %s198 = smul.addr %s197, 4
      %s199 = scalar_lea.vmem %s4, %s198
      %s200 = smul.u32 16, %s15
      %v202 = vld [vmem:[%s193] sm:$0xf]
      %v203 = vld [vmem:[%s193 + $0x4] sm:$0xf]
      %v204 = vld [vmem:[%s193 + $0x8] sm:$0xf]
      %v205 = vld [vmem:[%s193 + $0xc] sm:$0xf]
      %v206 = vld [vmem:[%s193 + $0x10] sm:$0xf]
      %v207 = vld [vmem:[%s193 + $0x14] sm:$0xf]
      %v208 = vld [vmem:[%s193 + $0x18] sm:$0xf]
      %v209 = vld [vmem:[%s193 + $0x1c] sm:$0xf]
      %v210 = vld [vmem:[%s193 + $0x20] sm:$0xf]
      %v211 = vld [vmem:[%s193 + $0x24] sm:$0xf]
      %v212 = vld [vmem:[%s193 + $0x28] sm:$0xf]
      %v213 = vld [vmem:[%s193 + $0x2c] sm:$0xf]
      %v214 = vld [vmem:[%s193 + $0x30] sm:$0xf]
      %v215 = vld [vmem:[%s193 + $0x34] sm:$0xf]
      %v216 = vld [vmem:[%s193 + $0x38] sm:$0xf]
      %v217 = vld [vmem:[%s193 + $0x3c] sm:$0xf]
      %v218 = vld [vmem:[%s1] sm:$0xf]
      %v219 = vld [vmem:[%s1 + $0x4] sm:$0xf]
      %v220 = vld [vmem:[%s1 + $0x8] sm:$0xf]
      %v221 = vld [vmem:[%s1 + $0xc] sm:$0xf]
      %v222 = vld [vmem:[%s1 + $0x10] sm:$0xf]
      %v223 = vld [vmem:[%s1 + $0x14] sm:$0xf]
      %v224 = vld [vmem:[%s1 + $0x18] sm:$0xf]
      %v225 = vld [vmem:[%s1 + $0x1c] sm:$0xf]
      %v226 = vld [vmem:[%s1 + $0x20] sm:$0xf]
      %v227 = vld [vmem:[%s1 + $0x24] sm:$0xf]
      %v228 = vld [vmem:[%s1 + $0x28] sm:$0xf]
      %v229 = vld [vmem:[%s1 + $0x2c] sm:$0xf]
      %v230 = vld [vmem:[%s1 + $0x30] sm:$0xf]
      %v231 = vld [vmem:[%s1 + $0x34] sm:$0xf]
      %v232 = vld [vmem:[%s1 + $0x38] sm:$0xf]
      %v233 = vld [vmem:[%s1 + $0x3c] sm:$0xf]
      %v250 = vunpack.c.l.b16 %v202
      %v251 = vunpack.c.l.b16 %v203
      %v252 = vunpack.c.l.b16 %v204
      %v253 = vunpack.c.l.b16 %v205
      %v254 = vunpack.c.l.b16 %v206
      %v255 = vunpack.c.l.b16 %v207
      %v256 = vunpack.c.l.b16 %v208
      %v257 = vunpack.c.l.b16 %v209
      %v258 = vunpack.c.l.b16 %v210
      %v259 = vunpack.c.l.b16 %v211
      %v260 = vunpack.c.l.b16 %v212
      %v261 = vunpack.c.l.b16 %v213
      %v262 = vunpack.c.l.b16 %v214
      %v263 = vunpack.c.l.b16 %v215
      %v264 = vunpack.c.l.b16 %v216
      %v265 = vunpack.c.l.b16 %v217
      %v266 = vpack.c.b16 %v251, %v250
      %v267 = vpack.c.b16 %v253, %v252
      %v268 = vpack.c.b16 %v255, %v254
      %v269 = vpack.c.b16 %v257, %v256
      %v270 = vpack.c.b16 %v259, %v258
      %v271 = vpack.c.b16 %v261, %v260
      %v272 = vpack.c.b16 %v263, %v262
      %v273 = vpack.c.b16 %v265, %v264
      %v298 = vunpack.c.l.b16 %v218
      %v299 = vunpack.c.l.b16 %v219
      %v300 = vunpack.c.l.b16 %v220
      %v301 = vunpack.c.l.b16 %v221
      %v302 = vunpack.c.l.b16 %v222
      %v303 = vunpack.c.l.b16 %v223
      %v304 = vunpack.c.l.b16 %v224
      %v305 = vunpack.c.l.b16 %v225
      %v306 = vunpack.c.l.b16 %v226
      %v307 = vunpack.c.l.b16 %v227
      %v308 = vunpack.c.l.b16 %v228
      %v309 = vunpack.c.l.b16 %v229
      %v310 = vunpack.c.l.b16 %v230
      %v311 = vunpack.c.l.b16 %v231
      %v312 = vunpack.c.l.b16 %v232
      %v313 = vunpack.c.l.b16 %v233
      %v314 = vpack.c.b16 %v299, %v298
      %v315 = vpack.c.b16 %v301, %v300
      %v316 = vpack.c.b16 %v303, %v302
      %v317 = vpack.c.b16 %v305, %v304
      %v318 = vpack.c.b16 %v307, %v306
      %v319 = vpack.c.b16 %v309, %v308
      %v320 = vpack.c.b16 %v311, %v310
      %v321 = vpack.c.b16 %v313, %v312
      %330 = vmatprep.subr.bf16.mxu0 0
      %331 = vmatpush1.bf16.msra.mxu0 %v321
      %332 = vmatprep.subr.bf16.mxu0 0
      %333 = vmatpush1.bf16.msra.mxu0 %v320
      %334 = vmatprep.subr.bf16.mxu0 0
      %335 = vmatpush1.bf16.msra.mxu0 %v319
      %336 = vmatprep.subr.bf16.mxu0 0
      %337 = vmatpush1.bf16.msra.mxu0 %v318
      %338 = vmatprep.subr.bf16.mxu0 0
      %339 = vmatpush1.bf16.msra.mxu0 %v317
      %340 = vmatprep.subr.bf16.mxu0 0
      %341 = vmatpush1.bf16.msra.mxu0 %v316
      %342 = vmatprep.subr.bf16.mxu0 0
      %343 = vmatpush1.bf16.msra.mxu0 %v315
      %344 = vmatprep.subr.bf16.mxu0 0
      %345 = vmatpush1.bf16.msra.mxu0 %v314
      %346 = vmatprep.subr.bf16.mxu0 0
      %347 = vmatpush2.bf16.msra.mxu0 0
      %348 = vmatprep.subr.bf16.mxu0 0
      %349 = vmatpush2.bf16.msra.mxu0 0
      %350 = vmatprep.subr.bf16.mxu0 0
      %351 = vmatpush2.bf16.msra.mxu0 0
      %352 = vmatprep.subr.bf16.mxu0 0
      %353 = vmatpush2.bf16.msra.mxu0 0
      %354 = vmatprep.subr.bf16.mxu0 0
      %355 = vmatpush2.bf16.msra.mxu0 0
      %356 = vmatprep.subr.bf16.mxu0 0
      %357 = vmatpush2.bf16.msra.mxu0 0
      %358 = vmatprep.subr.bf16.mxu0 0
      %359 = vmatpush2.bf16.msra.mxu0 0
      %360 = vmatprep.subr.bf16.mxu0 0
      %361 = vmatpush2.bf16.msra.mxu0 0
      %362 = vmatprep.mubr.bf16.mxu0 0
      %363 = vmatmul.mubr.bf16.gmra.mxu0 %v266
      %v364 = vpop.f32.mrf.mxu0
      %v365 = vadd.f32 0.0, %v364
      %v366 = vpop.f32.mrf.mxu0
      %v367 = vpop.f32.mrf.mxu0
      %v368 = vadd.f32 0.0, %v367
      %v369 = vpop.f32.mrf.mxu0
      %370 = vmatprep.mubr.bf16.mxu0 0
      %371 = vmatmul.mubr.bf16.gmra.mxu0 %v267
      %v372 = vpop.f32.mrf.mxu0
      %v373 = vadd.f32 0.0, %v372
      %v374 = vpop.f32.mrf.mxu0
      %v375 = vpop.f32.mrf.mxu0
      %v376 = vadd.f32 0.0, %v375
      %v377 = vpop.f32.mrf.mxu0
      %378 = vmatprep.mubr.bf16.mxu0 0
      %379 = vmatmul.mubr.bf16.gmra.mxu0 %v268
      %v380 = vpop.f32.mrf.mxu0
      %v381 = vadd.f32 0.0, %v380
      %v382 = vpop.f32.mrf.mxu0
      %v383 = vpop.f32.mrf.mxu0
      %v384 = vadd.f32 0.0, %v383
      %v385 = vpop.f32.mrf.mxu0
      %386 = vmatprep.mubr.bf16.mxu0 0
      %387 = vmatmul.mubr.bf16.gmra.mxu0 %v269
      %v388 = vpop.f32.mrf.mxu0
      %v389 = vadd.f32 0.0, %v388
      %v390 = vpop.f32.mrf.mxu0
      %v391 = vpop.f32.mrf.mxu0
      %v392 = vadd.f32 0.0, %v391
      %v393 = vpop.f32.mrf.mxu0
      %394 = vmatprep.mubr.bf16.mxu0 0
      %395 = vmatmul.mubr.bf16.gmra.mxu0 %v270
      %v396 = vpop.f32.mrf.mxu0
      %v397 = vadd.f32 0.0, %v396
      %v398 = vpop.f32.mrf.mxu0
      %v399 = vpop.f32.mrf.mxu0
      %v400 = vadd.f32 0.0, %v399
      %v401 = vpop.f32.mrf.mxu0
      %402 = vmatprep.mubr.bf16.mxu0 0
      %403 = vmatmul.mubr.bf16.gmra.mxu0 %v271
      %v404 = vpop.f32.mrf.mxu0
      %v405 = vadd.f32 0.0, %v404
      %v406 = vpop.f32.mrf.mxu0
      %v407 = vpop.f32.mrf.mxu0
      %v408 = vadd.f32 0.0, %v407
      %v409 = vpop.f32.mrf.mxu0
      %410 = vmatprep.mubr.bf16.mxu0 0
      %411 = vmatmul.mubr.bf16.gmra.mxu0 %v272
      %v412 = vpop.f32.mrf.mxu0
      %v413 = vadd.f32 0.0, %v412
      %v414 = vpop.f32.mrf.mxu0
      %v415 = vpop.f32.mrf.mxu0
      %v416 = vadd.f32 0.0, %v415
      %v417 = vpop.f32.mrf.mxu0
      %418 = vmatprep.mubr.bf16.mxu0 0
      %419 = vmatmul.mubr.bf16.gmra.mxu0 %v273
      %v420 = vpop.f32.mrf.mxu0
      %v421 = vadd.f32 0.0, %v420
      %v422 = vpop.f32.mrf.mxu0
      %v423 = vpop.f32.mrf.mxu0
      %v424 = vadd.f32 0.0, %v423
      %v425 = vpop.f32.mrf.mxu0
      %426 = vdwg.mxu0
      %v427 = vld [vmem:[%s2] sm:$0x1]
      %v429 = vlaneseq
      %v430 = vshrl.u32 %v429, 7
      %v431 = vsub.s32 0, %v430
      %v432 = vrot.slane %v427, %v431
      %v434 = vmul.f32 %v365, %v432
      %v435 = vmul.f32 %v368, %v432
      %v436 = vmul.f32 %v373, %v432
      %v437 = vmul.f32 %v376, %v432
      %v438 = vmul.f32 %v381, %v432
      %v439 = vmul.f32 %v384, %v432
      %v440 = vmul.f32 %v389, %v432
      %v441 = vmul.f32 %v392, %v432
      %v442 = vmul.f32 %v397, %v432
      %v443 = vmul.f32 %v400, %v432
      %v444 = vmul.f32 %v405, %v432
      %v445 = vmul.f32 %v408, %v432
      %v446 = vmul.f32 %v413, %v432
      %v447 = vmul.f32 %v416, %v432
      %v448 = vmul.f32 %v421, %v432
      %v449 = vmul.f32 %v424, %v432
      %v450 = vld [vmem:[%s3] sm:$0x1]
      %v452 = vlaneseq
      %v453 = vshrl.u32 %v452, 7
      %v454 = vsub.s32 0, %v453
      %v455 = vrot.slane %v450, %v454
      %v457 = vadd.f32 %v434, %v455
      %v458 = vadd.f32 %v435, %v455
      %v459 = vadd.f32 %v436, %v455
      %v460 = vadd.f32 %v437, %v455
      %v461 = vadd.f32 %v438, %v455
      %v462 = vadd.f32 %v439, %v455
      %v463 = vadd.f32 %v440, %v455
      %v464 = vadd.f32 %v441, %v455
      %v465 = vadd.f32 %v442, %v455
      %v466 = vadd.f32 %v443, %v455
      %v467 = vadd.f32 %v444, %v455
      %v468 = vadd.f32 %v445, %v455
      %v469 = vadd.f32 %v446, %v455
      %v470 = vadd.f32 %v447, %v455
      %v471 = vadd.f32 %v448, %v455
      %v472 = vadd.f32 %v449, %v455
      %v473 = vmax.f32 %v457, 0.0
      %v474 = vmax.f32 %v458, 0.0
      %v475 = vmax.f32 %v459, 0.0
      %v476 = vmax.f32 %v460, 0.0
      %v477 = vmax.f32 %v461, 0.0
      %v478 = vmax.f32 %v462, 0.0
      %v479 = vmax.f32 %v463, 0.0
      %v480 = vmax.f32 %v464, 0.0
      %v481 = vmax.f32 %v465, 0.0
      %v482 = vmax.f32 %v466, 0.0
      %v483 = vmax.f32 %v467, 0.0
      %v484 = vmax.f32 %v468, 0.0
      %v485 = vmax.f32 %v469, 0.0
      %v486 = vmax.f32 %v470, 0.0
      %v487 = vmax.f32 %v471, 0.0
      %v488 = vmax.f32 %v472, 0.0
      %v489 = vpack.c.bf16 %v474, %v473
      %v490 = vpack.c.bf16 %v476, %v475
      %v491 = vpack.c.bf16 %v478, %v477
      %v492 = vpack.c.bf16 %v480, %v479
      %v493 = vpack.c.bf16 %v482, %v481
      %v494 = vpack.c.bf16 %v484, %v483
      %v495 = vpack.c.bf16 %v486, %v485
      %v496 = vpack.c.bf16 %v488, %v487
      %v505 = vunpack.c.l.b16 %v489
      %v506 = vunpack.c.h.b16 %v489
      %v507 = vunpack.c.l.b16 %v490
      %v508 = vunpack.c.h.b16 %v490
      %v509 = vunpack.c.l.b16 %v491
      %v510 = vunpack.c.h.b16 %v491
      %v511 = vunpack.c.l.b16 %v492
      %v512 = vunpack.c.h.b16 %v492
      %v513 = vunpack.c.l.b16 %v493
      %v514 = vunpack.c.h.b16 %v493
      %v515 = vunpack.c.l.b16 %v494
      %v516 = vunpack.c.h.b16 %v494
      %v517 = vunpack.c.l.b16 %v495
      %v518 = vunpack.c.h.b16 %v495
      %v519 = vunpack.c.l.b16 %v496
      %v520 = vunpack.c.h.b16 %v496
      %v521 = vpack.c.b16 %v505, %v505
      %v522 = vpack.c.b16 %v506, %v506
      %v523 = vpack.c.b16 %v507, %v507
      %v524 = vpack.c.b16 %v508, %v508
      %v525 = vpack.c.b16 %v509, %v509
      %v526 = vpack.c.b16 %v510, %v510
      %v527 = vpack.c.b16 %v511, %v511
      %v528 = vpack.c.b16 %v512, %v512
      %v529 = vpack.c.b16 %v513, %v513
      %v530 = vpack.c.b16 %v514, %v514
      %v531 = vpack.c.b16 %v515, %v515
      %v532 = vpack.c.b16 %v516, %v516
      %v533 = vpack.c.b16 %v517, %v517
      %v534 = vpack.c.b16 %v518, %v518
      %v535 = vpack.c.b16 %v519, %v519
      %v536 = vpack.c.b16 %v520, %v520
      %553 = vst [vmem:[%s199] sm:$0xf] %v521
      %554 = vst [vmem:[%s199 + $0x4] sm:$0xf] %v522
      %555 = vst [vmem:[%s199 + $0x8] sm:$0xf] %v523
      %556 = vst [vmem:[%s199 + $0xc] sm:$0xf] %v524
      %557 = vst [vmem:[%s199 + $0x10] sm:$0xf] %v525
      %558 = vst [vmem:[%s199 + $0x14] sm:$0xf] %v526
      %559 = vst [vmem:[%s199 + $0x18] sm:$0xf] %v527
      %560 = vst [vmem:[%s199 + $0x1c] sm:$0xf] %v528
      %561 = vst [vmem:[%s199 + $0x20] sm:$0xf] %v529
      %562 = vst [vmem:[%s199 + $0x24] sm:$0xf] %v530
      %563 = vst [vmem:[%s199 + $0x28] sm:$0xf] %v531
      %564 = vst [vmem:[%s199 + $0x2c] sm:$0xf] %v532
      %565 = vst [vmem:[%s199 + $0x30] sm:$0xf] %v533
      %566 = vst [vmem:[%s199 + $0x34] sm:$0xf] %v534
      %567 = vst [vmem:[%s199 + $0x38] sm:$0xf] %v535
      %568 = vst [vmem:[%s199 + $0x3c] sm:$0xf] %v536
      %s569 = smul.u32 16, %s15
      %p570 = scmp.lt.s32.totalorder %s569, 63
      %s571 = scalar_select %p570, %s569, 63
      %s572 = smul.addr %s571, 4
      %s573 = scalar_lea.vmem %s4, %s572
      // Predicated region
      $region37: #{bottleneck_forward.2} parent=35 // pred_check
        %p574 = pneg %p122
      $region38: #{bottleneck_forward.2} parent=35 // pred_check_branch
        %576 = sbr.rel (%p574) target = $region40
      $region39: #{bottleneck_forward.2} parent=35 // pred_region
        %s577 = smul.u32 16, %s15
      $region40: #{bottleneck_forward.2} parent=35 // pred_fallthru
        _
    $region36: #{bottleneck_forward.2} parent=5 // pred_fallthru
      _
    %p578 = scmp.le.s32.totalorder 2, %s10
    // Predicated region
    $region41: #{bottleneck_forward.2} parent=5 // pred_check
      %p579 = pneg %p578
    $region42: #{bottleneck_forward.2} parent=5 // pred_check_branch
      %581 = sbr.rel (%p579) target = $region44
    $region43: #{bottleneck_forward.2} parent=5 // pred_region
      %s582 = ssub.s32 %s10, 2
      // Predicated region
      $region45: #{bottleneck_forward.2} parent=43 // pred_check
        %p583 = pneg %p128
      $region46: #{bottleneck_forward.2} parent=43 // pred_check_branch
        %585 = sbr.rel (%p583) target = $region48
      $region47: #{bottleneck_forward.2} parent=43 // pred_region
        %s586 = smul.u32 16, %s16
        %p587 = scmp.lt.s32.totalorder %s586, 63
        %s588 = scalar_select %p587, %s586, 63
        %s589 = smul.addr %s588, 4
        %s590 = scalar_lea.vmem %s4, %s589
      $region48: #{bottleneck_forward.2} parent=43 // pred_fallthru
        _
    $region44: #{bottleneck_forward.2} parent=5 // pred_fallthru
      _
  $region6: #{bottleneck_forward.2} parent=0 // loop_footer
    %s14 = sadd.s32 1, %s10
  $region7: #{bottleneck_forward.2} parent=0 // loop_footer_branch
    %9 = sbr.rel target = $region3
  $region8: #{bottleneck_forward.2} parent=0 // loop_exit
    _

// kernel: bottleneck_forward.3
$region0: #{bottleneck_forward.3}
  #allocation0 [shape = 'u32[]', space=smem, size = 0x4, offset = 0x4, fixed_abs, tag = 'smem constant byte address 0x4 - core index']
  #allocation1 [shape = 'u32[144,128]{1,0:T(1,128)}', space=vmem, size = 0x12000, scoped, tag = 'internal scratch']
  #allocation2 [shape = 'bf16[9,2,18,128]{3,2,1,0:T(8,128)(2,1)}', space=vmem, size = 0x1b000, scoped, tag = 'scratch operand']
  %s0 = inlined_call_operand.vmem [shape: bf16[2,18,18,128], index: 0, kind: input, shape index: {}, may-alias: {0,1}]
  %s1 = inlined_call_operand.vmem [shape: bf16[2,18,18,128], index: 1, kind: input, shape index: {}, may-alias: {0,1}]
  %s2 = inlined_call_operand.vmem [shape: bf16[2,1,64,128], index: 2, kind: input, shape index: {}]
  %s3 = inlined_call_operand.vmem [shape: bf16[3,3,128,128], index: 3, kind: input, shape index: {}]
  %s4 = inlined_call_operand.vmem [shape: f32[1,128], index: 4, kind: input, shape index: {}]
  %s5 = inlined_call_operand.vmem [shape: f32[1,128], index: 5, kind: input, shape index: {}]
  %s6 = inlined_call_operand.vmem [shape: bf16[128,128], index: 6, kind: input, shape index: {}]
  %s7 = inlined_call_operand.vmem [shape: f32[1,128], index: 7, kind: input, shape index: {}]
  %s8 = inlined_call_operand.vmem [shape: f32[1,128], index: 8, kind: input, shape index: {}]
  %s9 = inlined_call_operand.vmem [shape: bf16[128,128], index: 9, kind: input, shape index: {}]
  %s10 = inlined_call_operand.vmem [shape: f32[1,128], index: 10, kind: input, shape index: {}]
  %s11 = inlined_call_operand.vmem [shape: f32[1,128], index: 11, kind: input, shape index: {}]
  %s12 = inlined_call_operand.vmem [shape: bf16[2,1,64,128], index: 12, kind: output, shape index: {}]
  %s13 = sld [smem:[#allocation0]]
  $region81: #{bottleneck_forward.3} parent=0
    _
  %s15 = ssub.s32 1, %s13
  %s16 = scalar_select 0, %s15, %s13
  loop: start=0, step=1, limit=4
  $region2: #{bottleneck_forward.3} parent=0 // loop_pre_header
    _
  $region3: #{bottleneck_forward.3} parent=0 // loop_header
    %s18 = sphi 0, %s22
    %p19 = scmp.ge.s32.totalorder %s18, 4
    %s25 = sphi 0, %s37
    %s26 = sphi 0, %s33
    %s27 = sphi 0, %s25
    %s28 = sphi 0, %s26
    %s29 = sphi 0, %s27
    %s30 = sphi 0, %s28
    %s42 = sphi 0, %s44
    %s45 = sphi 0, %s42
    %s46 = sphi 0, %s45
    %s62 = sphi 0, %s46
    %s74 = sphi 0, %s76
    %s77 = sphi 0, %s74
    %s78 = sphi 0, %s77
    %s94 = sphi 0, %s78
    %s102 = sphi 0, %s104
    %s105 = sphi 0, %s102
    %s106 = sphi 0, %s105
    %s122 = sphi 0, %s106
    %s126 = sphi 0, %s126
    %s128 = sphi 0, %s126
    %s129 = sphi 0, %s128
    %s143 = sphi 0, %s129
    %s147 = sphi 0, %s147
    %s149 = sphi 0, %s147
    %s150 = sphi 0, %s149
    %s164 = sphi 0, %s150
    %s168 = sphi 0, %s168
    %s170 = sphi 0, %s168
    %s171 = sphi 0, %s170
    %s185 = sphi 0, %s171
    %s189 = sphi 0, %s189
    %s191 = sphi 0, %s189
    %s192 = sphi 0, %s191
    %s206 = sphi 0, %s192
    %s210 = sphi 0, %s210
    %s212 = sphi 0, %s210
    %s213 = sphi 0, %s212
    %s227 = sphi 0, %s213
    %s231 = sphi 0, %s231
    %s233 = sphi 0, %s231
    %s234 = sphi 0, %s233
    %s248 = sphi 0, %s234
    %s252 = sphi 0, %s252
    %s254 = sphi 0, %s252
    %s255 = sphi 0, %s254
    %s269 = sphi 0, %s255
    %s273 = sphi 0, %s273
    %s275 = sphi 0, %s273
    %s276 = sphi 0, %s275
    %s290 = sphi 0, %s276
    %s294 = sphi 0, %s294
    %s296 = sphi 0, %s294
    %s297 = sphi 0, %s296
    %s311 = sphi 0, %s297
    %s319 = sphi 0, %s321
    %s322 = sphi 0, %s319
    %s323 = sphi 0, %s322
    %s339 = sphi 0, %s323
  $region4: #{bottleneck_forward.3} parent=0 // loop_header_branch
    %21 = sbr.rel (%p19) target = $region8
  $region5: #{bottleneck_forward.3} parent=0 // loop_body
    %s23 = ssub.s32 %s18, 1
    %s24 = ssub.s32 %s18, 2
    %s31 = sadd.s32 1, %s26
    %p32 = scmp.ge.s32.totalorder %s31, 1
    %s33 = scalar_select %p32, 0, %s31
    %s34 = sadd.s32 1, %s25
    %s35 = scalar_select %p32, %s34, %s25
    %p36 = scmp.ge.s32.totalorder %s35, 2
    %s37 = scalar_select %p36, 0, %s35
    %s38 = ssub.s32 %s25, %s37
    %s39 = ssub.s32 %s26, %s33
    %s40 = sor.u32 %s38, %s39
    %p41 = scmp.eq.s32.totalorder %s40, 0
    %s43 = sadd.s32 %s42, 1
    %s44 = scalar_select %p41, %s42, %s43
    %p47 = pneg %p41
    %p48 = scmp.eq.s32.totalorder %s18, 1
    %p49 = por %p47, %p48
    %p50 = scmp.ne.s32.totalorder %s42, %s45
    %p51 = scmp.eq.s32.totalorder %s18, 0
    %p52 = por %p50, %p51
    %p53 = scmp.ne.s32.totalorder %s42, %s45
    %p54 = scmp.eq.s32.totalorder %s23, 1
    %p55 = por %p53, %p54
    %p56 = scmp.ne.s32.totalorder %s45, %s46
    %p57 = scmp.eq.s32.totalorder %s23, 0
    %p58 = por %p56, %p57
    %p59 = scmp.ne.s32.totalorder %s45, %s46
    %p60 = scmp.eq.s32.totalorder %s24, 1
    %p61 = por %p59, %p60
    %p63 = scmp.ne.s32.totalorder %s46, %s62
    %p64 = scmp.eq.s32.totalorder %s24, 0
    %p65 = por %p63, %p64
    %s66 = sadd.s32 %s26, 1
    %s67 = smul.u32 %s66, 8
    %s68 = sadd.s32 %s33, 1
    %s69 = smul.u32 %s68, 8
    %s70 = ssub.s32 %s25, %s37
    %s71 = ssub.s32 %s67, %s69
    %s72 = sor.u32 %s70, %s71
    %p73 = scmp.eq.s32.totalorder %s72, 0
    %s75 = sadd.s32 %s74, 1
    %s76 = scalar_select %p73, %s74, %s75
    %p79 = pneg %p73
    %p80 = scmp.eq.s32.totalorder %s18, 1
    %p81 = por %p79, %p80
    %p82 = scmp.ne.s32.totalorder %s74, %s77
    %p83 = scmp.eq.s32.totalorder %s18, 0
    %p84 = por %p82, %p83
    %p85 = scmp.ne.s32.totalorder %s74, %s77
    %p86 = scmp.eq.s32.totalorder %s23, 1
    %p87 = por %p85, %p86
    %p88 = scmp.ne.s32.totalorder %s77, %s78
    %p89 = scmp.eq.s32.totalorder %s23, 0
    %p90 = por %p88, %p89
    %p91 = scmp.ne.s32.totalorder %s77, %s78
    %p92 = scmp.eq.s32.totalorder %s24, 1
    %p93 = por %p91, %p92
    %p95 = scmp.ne.s32.totalorder %s78, %s94
    %p96 = scmp.eq.s32.totalorder %s24, 0
    %p97 = por %p95, %p96
    %s98 = ssub.s32 %s25, %s37
    %s99 = ssub.s32 %s26, %s33
    %s100 = sor.u32 %s98, %s99
    %p101 = scmp.eq.s32.totalorder %s100, 0
    %s103 = sadd.s32 %s102, 1
    %s104 = scalar_select %p101, %s102, %s103
    %p107 = pneg %p101
    %p108 = scmp.eq.s32.totalorder %s18, 1
    %p109 = por %p107, %p108
    %p110 = scmp.ne.s32.totalorder %s102, %s105
    %p111 = scmp.eq.s32.totalorder %s18, 0
    %p112 = por %p110, %p111
    %p113 = scmp.ne.s32.totalorder %s102, %s105
    %p114 = scmp.eq.s32.totalorder %s23, 1
    %p115 = por %p113, %p114
    %p116 = scmp.ne.s32.totalorder %s105, %s106
    %p117 = scmp.eq.s32.totalorder %s23, 0
    %p118 = por %p116, %p117
    %p119 = scmp.ne.s32.totalorder %s105, %s106
    %p120 = scmp.eq.s32.totalorder %s24, 1
    %p121 = por %p119, %p120
    %p123 = scmp.ne.s32.totalorder %s106, %s122
    %p124 = scmp.eq.s32.totalorder %s24, 0
    %p125 = por %p123, %p124
    %s127 = sadd.s32 %s126, 1
    %p130 = scmp.eq.s32.totalorder %s18, 1
    %p131 = scmp.ne.s32.totalorder %s126, %s128
    %p132 = scmp.eq.s32.totalorder %s18, 0
    %p133 = por %p131, %p132
    %p134 = scmp.ne.s32.totalorder %s126, %s128
    %p135 = scmp.eq.s32.totalorder %s23, 1
    %p136 = por %p134, %p135
    %p137 = scmp.ne.s32.totalorder %s128, %s129
    %p138 = scmp.eq.s32.totalorder %s23, 0
    %p139 = por %p137, %p138
    %p140 = scmp.ne.s32.totalorder %s128, %s129
    %p141 = scmp.eq.s32.totalorder %s24, 1
    %p142 = por %p140, %p141
    %p144 = scmp.ne.s32.totalorder %s129, %s143
    %p145 = scmp.eq.s32.totalorder %s24, 0
    %p146 = por %p144, %p145
    %s148 = sadd.s32 %s147, 1
    %p151 = scmp.eq.s32.totalorder %s18, 1
    %p152 = scmp.ne.s32.totalorder %s147, %s149
    %p153 = scmp.eq.s32.totalorder %s18, 0
    %p154 = por %p152, %p153
    %p155 = scmp.ne.s32.totalorder %s147, %s149
    %p156 = scmp.eq.s32.totalorder %s23, 1
    %p157 = por %p155, %p156
    %p158 = scmp.ne.s32.totalorder %s149, %s150
    %p159 = scmp.eq.s32.totalorder %s23, 0
    %p160 = por %p158, %p159
    %p161 = scmp.ne.s32.totalorder %s149, %s150
    %p162 = scmp.eq.s32.totalorder %s24, 1
    %p163 = por %p161, %p162
    %p165 = scmp.ne.s32.totalorder %s150, %s164
    %p166 = scmp.eq.s32.totalorder %s24, 0
    %p167 = por %p165, %p166
    %s169 = sadd.s32 %s168, 1
    %p172 = scmp.eq.s32.totalorder %s18, 1
    %p173 = scmp.ne.s32.totalorder %s168, %s170
    %p174 = scmp.eq.s32.totalorder %s18, 0
    %p175 = por %p173, %p174
    %p176 = scmp.ne.s32.totalorder %s168, %s170
    %p177 = scmp.eq.s32.totalorder %s23, 1
    %p178 = por %p176, %p177
    %p179 = scmp.ne.s32.totalorder %s170, %s171
    %p180 = scmp.eq.s32.totalorder %s23, 0
    %p181 = por %p179, %p180
    %p182 = scmp.ne.s32.totalorder %s170, %s171
    %p183 = scmp.eq.s32.totalorder %s24, 1
    %p184 = por %p182, %p183
    %p186 = scmp.ne.s32.totalorder %s171, %s185
    %p187 = scmp.eq.s32.totalorder %s24, 0
    %p188 = por %p186, %p187
    %s190 = sadd.s32 %s189, 1
    %p193 = scmp.eq.s32.totalorder %s18, 1
    %p194 = scmp.ne.s32.totalorder %s189, %s191
    %p195 = scmp.eq.s32.totalorder %s18, 0
    %p196 = por %p194, %p195
    %p197 = scmp.ne.s32.totalorder %s189, %s191
    %p198 = scmp.eq.s32.totalorder %s23, 1
    %p199 = por %p197, %p198
    %p200 = scmp.ne.s32.totalorder %s191, %s192
    %p201 = scmp.eq.s32.totalorder %s23, 0
    %p202 = por %p200, %p201
    %p203 = scmp.ne.s32.totalorder %s191, %s192
    %p204 = scmp.eq.s32.totalorder %s24, 1
    %p205 = por %p203, %p204
    %p207 = scmp.ne.s32.totalorder %s192, %s206
    %p208 = scmp.eq.s32.totalorder %s24, 0
    %p209 = por %p207, %p208
    %s211 = sadd.s32 %s210, 1
    %p214 = scmp.eq.s32.totalorder %s18, 1
    %p215 = scmp.ne.s32.totalorder %s210, %s212
    %p216 = scmp.eq.s32.totalorder %s18, 0
    %p217 = por %p215, %p216
    %p218 = scmp.ne.s32.totalorder %s210, %s212
    %p219 = scmp.eq.s32.totalorder %s23, 1
    %p220 = por %p218, %p219
    %p221 = scmp.ne.s32.totalorder %s212, %s213
    %p222 = scmp.eq.s32.totalorder %s23, 0
    %p223 = por %p221, %p222
    %p224 = scmp.ne.s32.totalorder %s212, %s213
    %p225 = scmp.eq.s32.totalorder %s24, 1
    %p226 = por %p224, %p225
    %p228 = scmp.ne.s32.totalorder %s213, %s227
    %p229 = scmp.eq.s32.totalorder %s24, 0
    %p230 = por %p228, %p229
    %s232 = sadd.s32 %s231, 1
    %p235 = scmp.eq.s32.totalorder %s18, 1
    %p236 = scmp.ne.s32.totalorder %s231, %s233
    %p237 = scmp.eq.s32.totalorder %s18, 0
    %p238 = por %p236, %p237
    %p239 = scmp.ne.s32.totalorder %s231, %s233
    %p240 = scmp.eq.s32.totalorder %s23, 1
    %p241 = por %p239, %p240
    %p242 = scmp.ne.s32.totalorder %s233, %s234
    %p243 = scmp.eq.s32.totalorder %s23, 0
    %p244 = por %p242, %p243
    %p245 = scmp.ne.s32.totalorder %s233, %s234
    %p246 = scmp.eq.s32.totalorder %s24, 1
    %p247 = por %p245, %p246
    %p249 = scmp.ne.s32.totalorder %s234, %s248
    %p250 = scmp.eq.s32.totalorder %s24, 0
    %p251 = por %p249, %p250
    %s253 = sadd.s32 %s252, 1
    %p256 = scmp.eq.s32.totalorder %s18, 1
    %p257 = scmp.ne.s32.totalorder %s252, %s254
    %p258 = scmp.eq.s32.totalorder %s18, 0
    %p259 = por %p257, %p258
    %p260 = scmp.ne.s32.totalorder %s252, %s254
    %p261 = scmp.eq.s32.totalorder %s23, 1
    %p262 = por %p260, %p261
    %p263 = scmp.ne.s32.totalorder %s254, %s255
    %p264 = scmp.eq.s32.totalorder %s23, 0
    %p265 = por %p263, %p264
    %p266 = scmp.ne.s32.totalorder %s254, %s255
    %p267 = scmp.eq.s32.totalorder %s24, 1
    %p268 = por %p266, %p267
    %p270 = scmp.ne.s32.totalorder %s255, %s269
    %p271 = scmp.eq.s32.totalorder %s24, 0
    %p272 = por %p270, %p271
    %s274 = sadd.s32 %s273, 1
    %p277 = scmp.eq.s32.totalorder %s18, 1
    %p278 = scmp.ne.s32.totalorder %s273, %s275
    %p279 = scmp.eq.s32.totalorder %s18, 0
    %p280 = por %p278, %p279
    %p281 = scmp.ne.s32.totalorder %s273, %s275
    %p282 = scmp.eq.s32.totalorder %s23, 1
    %p283 = por %p281, %p282
    %p284 = scmp.ne.s32.totalorder %s275, %s276
    %p285 = scmp.eq.s32.totalorder %s23, 0
    %p286 = por %p284, %p285
    %p287 = scmp.ne.s32.totalorder %s275, %s276
    %p288 = scmp.eq.s32.totalorder %s24, 1
    %p289 = por %p287, %p288
    %p291 = scmp.ne.s32.totalorder %s276, %s290
    %p292 = scmp.eq.s32.totalorder %s24, 0
    %p293 = por %p291, %p292
    %s295 = sadd.s32 %s294, 1
    %p298 = scmp.eq.s32.totalorder %s18, 1
    %p299 = scmp.ne.s32.totalorder %s294, %s296
    %p300 = scmp.eq.s32.totalorder %s18, 0
    %p301 = por %p299, %p300
    %p302 = scmp.ne.s32.totalorder %s294, %s296
    %p303 = scmp.eq.s32.totalorder %s23, 1
    %p304 = por %p302, %p303
    %p305 = scmp.ne.s32.totalorder %s296, %s297
    %p306 = scmp.eq.s32.totalorder %s23, 0
    %p307 = por %p305, %p306
    %p308 = scmp.ne.s32.totalorder %s296, %s297
    %p309 = scmp.eq.s32.totalorder %s24, 1
    %p310 = por %p308, %p309
    %p312 = scmp.ne.s32.totalorder %s297, %s311
    %p313 = scmp.eq.s32.totalorder %s24, 0
    %p314 = por %p312, %p313
    %s315 = ssub.s32 %s25, %s37
    %s316 = ssub.s32 %s26, %s33
    %s317 = sor.u32 %s315, %s316
    %p318 = scmp.eq.s32.totalorder %s317, 0
    %s320 = sadd.s32 %s319, 1
    %s321 = scalar_select %p318, %s319, %s320
    %p324 = pneg %p318
    %p325 = scmp.eq.s32.totalorder %s18, 1
    %p326 = por %p324, %p325
    %p327 = scmp.ne.s32.totalorder %s319, %s322
    %p328 = scmp.eq.s32.totalorder %s18, 0
    %p329 = por %p327, %p328
    %p330 = scmp.ne.s32.totalorder %s319, %s322
    %p331 = scmp.eq.s32.totalorder %s23, 1
    %p332 = por %p330, %p331
    %p333 = scmp.ne.s32.totalorder %s322, %s323
    %p334 = scmp.eq.s32.totalorder %s23, 0
    %p335 = por %p333, %p334
    %p336 = scmp.ne.s32.totalorder %s322, %s323
    %p337 = scmp.eq.s32.totalorder %s24, 1
    %p338 = por %p336, %p337
    %p340 = scmp.ne.s32.totalorder %s323, %s339
    %p341 = scmp.eq.s32.totalorder %s24, 0
    %p342 = por %p340, %p341
    %p343 = scmp.le.s32.totalorder 1, %s18
    %p344 = scmp.lt.s32.totalorder %s18, 3
    %p345 = pnand %p343, %p344
    %p346 = pneg %p345
    // Predicated region
    $region9: #{bottleneck_forward.3} parent=5 // pred_check
      _
    $region10: #{bottleneck_forward.3} parent=5 // pred_check_branch
      %348 = sbr.rel (%p345) target = $region12
    $region11: #{bottleneck_forward.3} parent=5 // pred_region
      %s349 = ssub.s32 %s18, 1
      // Predicated region
      $region13: #{bottleneck_forward.3} parent=11 // pred_check
        %p350 = pneg %p139
      $region14: #{bottleneck_forward.3} parent=11 // pred_check_branch
        %352 = sbr.rel (%p350) target = $region16
      $region15: #{bottleneck_forward.3} parent=11 // pred_region
        _
      $region16: #{bottleneck_forward.3} parent=11 // pred_fallthru
        _
      // Predicated region
      $region17: #{bottleneck_forward.3} parent=11 // pred_check
        %p353 = pneg %p160
      $region18: #{bottleneck_forward.3} parent=11 // pred_check_branch
        %355 = sbr.rel (%p353) target = $region20
      $region19: #{bottleneck_forward.3} parent=11 // pred_region
        _
      $region20: #{bottleneck_forward.3} parent=11 // pred_fallthru
        _
      // Predicated region
      $region21: #{bottleneck_forward.3} parent=11 // pred_check
        %p356 = pneg %p181
      $region22: #{bottleneck_forward.3} parent=11 // pred_check_branch
        %358 = sbr.rel (%p356) target = $region24
      $region23: #{bottleneck_forward.3} parent=11 // pred_region
        _
      $region24: #{bottleneck_forward.3} parent=11 // pred_fallthru
        _
      // Predicated region
      $region25: #{bottleneck_forward.3} parent=11 // pred_check
        %p359 = pneg %p202
      $region26: #{bottleneck_forward.3} parent=11 // pred_check_branch
        %361 = sbr.rel (%p359) target = $region28
      $region27: #{bottleneck_forward.3} parent=11 // pred_region
        _
      $region28: #{bottleneck_forward.3} parent=11 // pred_fallthru
        _
      // Predicated region
      $region29: #{bottleneck_forward.3} parent=11 // pred_check
        %p362 = pneg %p223
      $region30: #{bottleneck_forward.3} parent=11 // pred_check_branch
        %364 = sbr.rel (%p362) target = $region32
      $region31: #{bottleneck_forward.3} parent=11 // pred_region
        _
      $region32: #{bottleneck_forward.3} parent=11 // pred_fallthru
        _
      // Predicated region
      $region33: #{bottleneck_forward.3} parent=11 // pred_check
        %p365 = pneg %p244
      $region34: #{bottleneck_forward.3} parent=11 // pred_check_branch
        %367 = sbr.rel (%p365) target = $region36
      $region35: #{bottleneck_forward.3} parent=11 // pred_region
        _
      $region36: #{bottleneck_forward.3} parent=11 // pred_fallthru
        _
      // Predicated region
      $region37: #{bottleneck_forward.3} parent=11 // pred_check
        %p368 = pneg %p265
      $region38: #{bottleneck_forward.3} parent=11 // pred_check_branch
        %370 = sbr.rel (%p368) target = $region40
      $region39: #{bottleneck_forward.3} parent=11 // pred_region
        _
      $region40: #{bottleneck_forward.3} parent=11 // pred_fallthru
        _
      // Predicated region
      $region41: #{bottleneck_forward.3} parent=11 // pred_check
        %p371 = pneg %p286
      $region42: #{bottleneck_forward.3} parent=11 // pred_check_branch
        %373 = sbr.rel (%p371) target = $region44
      $region43: #{bottleneck_forward.3} parent=11 // pred_region
        _
      $region44: #{bottleneck_forward.3} parent=11 // pred_fallthru
        _
      // Predicated region
      $region45: #{bottleneck_forward.3} parent=11 // pred_check
        %p374 = pneg %p307
      $region46: #{bottleneck_forward.3} parent=11 // pred_check_branch
        %376 = sbr.rel (%p374) target = $region48
      $region47: #{bottleneck_forward.3} parent=11 // pred_region
        _
      $region48: #{bottleneck_forward.3} parent=11 // pred_fallthru
        _
    $region12: #{bottleneck_forward.3} parent=5 // pred_fallthru
      _
    %p377 = scmp.lt.s32.totalorder %s18, 2
    // Predicated region
    $region49: #{bottleneck_forward.3} parent=5 // pred_check
      %p378 = pneg %p377
    $region50: #{bottleneck_forward.3} parent=5 // pred_check_branch
      %380 = sbr.rel (%p378) target = $region52
    $region51: #{bottleneck_forward.3} parent=5 // pred_region
      // Predicated region
      $region53: #{bottleneck_forward.3} parent=51 // pred_check
        %p381 = pneg %p52
      $region54: #{bottleneck_forward.3} parent=51 // pred_check_branch
        %383 = sbr.rel (%p381) target = $region56
      $region55: #{bottleneck_forward.3} parent=51 // pred_region
        %s384 = smul.u32 16, %s26
        %s385 = ssub.s32 18, %s384
        %p386 = scmp.lt.s32.totalorder %s385, 16
        %s387 = scalar_select %p386, %s385, 16
        %s388 = smul.u32 64, %s387
        %s389 = smul.u32 %s388, 3
        %p390 = scmp.lt.s32.totalorder %s25, 1
        %s391 = scalar_select %p390, %s25, 1
        %p392 = scmp.lt.s32.totalorder %s384, 17
        %s393 = scalar_select %p392, %s384, 17
        %s394 = smul.addr %s393, 3
        %s395 = smul.addr %s391, 54
        %s396 = sadd.s32 %s394, %s395
        %s397 = smul.addr %s396, 4
        %s398 = scalar_lea.vmem %s0, %s397
        %s399 = smul.u32 16, %s26
        %s400 = ssub.s32 18, %s399
        %p401 = scmp.lt.s32.totalorder %s400, 16
        %s402 = scalar_select %p401, %s400, 16
        %s403 = smul.u32 64, %s402
        %s404 = smul.u32 %s403, 3
      $region56: #{bottleneck_forward.3} parent=51 // pred_fallthru
        _
      // Predicated region
      $region57: #{bottleneck_forward.3} parent=51 // pred_check
        %p405 = pneg %p84
      $region58: #{bottleneck_forward.3} parent=51 // pred_check_branch
        %407 = sbr.rel (%p405) target = $region60
      $region59: #{bottleneck_forward.3} parent=51 // pred_region
        %s408 = sadd.s32 %s26, 1
        %s409 = smul.u32 %s408, 8
        %s410 = smul.u32 2, %s409
        %p411 = scmp.lt.s32.totalorder %s25, 1
        %s412 = scalar_select %p411, %s25, 1
        %p413 = scmp.lt.s32.totalorder %s410, 17
        %s414 = scalar_select %p413, %s410, 17
        %s415 = smul.addr %s414, 3
        %s416 = smul.addr %s412, 54
        %s417 = sadd.s32 %s415, %s416
        %s418 = smul.addr %s417, 4
        %s419 = scalar_lea.vmem %s1, %s418
        %s420 = sadd.s32 %s26, 1
        %s421 = smul.u32 %s420, 8
        %s422 = smul.u32 2, %s421
      $region60: #{bottleneck_forward.3} parent=51 // pred_fallthru
        _
      // Predicated region
      $region61: #{bottleneck_forward.3} parent=51 // pred_check
        %p423 = pneg %p112
      $region62: #{bottleneck_forward.3} parent=51 // pred_check_branch
        %425 = sbr.rel (%p423) target = $region64
      $region63: #{bottleneck_forward.3} parent=51 // pred_region
        %p426 = scmp.lt.s32.totalorder %s25, 1
        %s427 = scalar_select %p426, %s25, 1
        %p428 = scmp.lt.s32.totalorder %s26, 0
        %s429 = scalar_select %p428, %s26, 0
        %s430 = smul.addr %s429, 8
        %s431 = smul.addr %s427, 8
        %s432 = sadd.s32 %s430, %s431
        %s433 = smul.addr %s432, 4
        %s434 = scalar_lea.vmem %s2, %s433
      $region64: #{bottleneck_forward.3} parent=51 // pred_fallthru
        _
    $region52: #{bottleneck_forward.3} parent=5 // pred_fallthru
      _
    %p435 = scmp.le.s32.totalorder 1, %s18
    %p436 = scmp.lt.s32.totalorder %s18, 3
    %p437 = pnand %p435, %p436
    %p438 = pneg %p437
    // Predicated region
    $region65: #{bottleneck_forward.3} parent=5 // pred_check
      _
    $region66: #{bottleneck_forward.3} parent=5 // pred_check_branch
      %440 = sbr.rel (%p437) target = $region68
    $region67: #{bottleneck_forward.3} parent=5 // pred_region
      %s441 = ssub.s32 %s18, 1
      %s442 = smul.u32 16, %s28
      %s443 = ssub.s32 18, %s442
      %p444 = scmp.lt.s32.totalorder %s443, 16
      %s445 = scalar_select %p444, %s443, 16
      %s446 = smul.u32 64, %s445
      %s447 = smul.u32 %s446, 3
      %p448 = scmp.lt.s32.totalorder %s27, 1
      %s449 = scalar_select %p448, %s27, 1
      %p450 = scmp.lt.s32.totalorder %s442, 17
      %s451 = scalar_select %p450, %s442, 17
      %s452 = smul.addr %s451, 3
      %s453 = smul.addr %s449, 54
      %s454 = sadd.s32 %s452, %s453
      %s455 = smul.addr %s454, 4
      %s456 = scalar_lea.vmem %s0, %s455
      %p457 = pneg %p58
      %p458 = pneg %p55
      %s459 = sadd.s32 %s28, 1
      %s460 = smul.u32 %s459, 8
      %s461 = smul.u32 2, %s460
      %p462 = scmp.lt.s32.totalorder %s27, 1
      %s463 = scalar_select %p462, %s27, 1
      %p464 = scmp.lt.s32.totalorder %s461, 17
      %s465 = scalar_select %p464, %s461, 17
      %s466 = smul.addr %s465, 3
      %s467 = smul.addr %s463, 54
      %s468 = sadd.s32 %s466, %s467
      %s469 = smul.addr %s468, 4
      %s470 = scalar_lea.vmem %s1, %s469
      %p471 = pneg %p90
      %p472 = pneg %p87
      %p473 = scmp.lt.s32.totalorder %s27, 1
      %s474 = scalar_select %p473, %s27, 1
      %p475 = scmp.lt.s32.totalorder %s28, 0
      %s476 = scalar_select %p475, %s28, 0
      %s477 = smul.addr %s476, 8
      %s478 = smul.addr %s474, 8
      %s479 = sadd.s32 %s477, %s478
      %s480 = smul.addr %s479, 4
      %s481 = scalar_lea.vmem %s2, %s480
      %p482 = pneg %p118
      %p483 = pneg %p115
      %p484 = pneg %p139
      %p485 = pneg %p136
      %p486 = pneg %p160
      %p487 = pneg %p157
      %p488 = pneg %p181
      %p489 = pneg %p178
      %p490 = pneg %p202
      %p491 = pneg %p199
      %p492 = pneg %p223
      %p493 = pneg %p220
      %p494 = pneg %p244
      %p495 = pneg %p241
      %p496 = pneg %p265
      %p497 = pneg %p262
      %p498 = pneg %p286
      %p499 = pneg %p283
      %p500 = pneg %p307
      %p501 = pneg %p304
      %p502 = pneg %p335
      %p503 = pneg %p332
      %p504 = scmp.lt.s32.totalorder %s27, 1
      %s505 = scalar_select %p504, %s27, 1
      %p506 = scmp.lt.s32.totalorder %s28, 0
      %s507 = scalar_select %p506, %s28, 0
      %s508 = smul.addr %s507, 8
      %s509 = smul.addr %s505, 8
      %s510 = sadd.s32 %s508, %s509
      %s511 = smul.addr %s510, 4
      %s512 = scalar_lea.vmem %s12, %s511
      %s513 = smul.u32 16, %s28
      %s514 = ssub.s32 18, %s513
      %p515 = scmp.lt.s32.totalorder %s514, 16
      %s516 = scalar_select %p515, %s514, 16
      %s517 = smul.u32 64, %s516
      %s518 = smul.u32 %s517, 3
      %p519 = scmp.lt.s32.totalorder %s27, 1
      %s520 = scalar_select %p519, %s27, 1
      %p521 = scmp.lt.s32.totalorder %s513, 17
      %s522 = scalar_select %p521, %s513, 17
      %s523 = smul.addr %s522, 3
      %s524 = smul.addr %s520, 54
      %s525 = sadd.s32 %s523, %s524
      %s526 = smul.addr %s525, 4
      %s527 = scalar_lea.vmem %s0, %s526
      %s528 = smul.u32 16, %s28
      %s529 = ssub.s32 18, %s528
      %p530 = scmp.lt.s32.totalorder %s529, 16
      %s531 = scalar_select %p530, %s529, 16
      %s532 = smul.u32 64, %s531
      %s533 = smul.u32 %s532, 3
      %s534 = sadd.s32 %s28, 1
      %s535 = smul.u32 %s534, 8
      %s536 = smul.u32 2, %s535
      %p537 = scmp.lt.s32.totalorder %s27, 1
      %s538 = scalar_select %p537, %s27, 1
      %p539 = scmp.lt.s32.totalorder %s536, 17
      %s540 = scalar_select %p539, %s536, 17
      %s541 = smul.addr %s540, 3
      %s542 = smul.addr %s538, 54
      %s543 = sadd.s32 %s541, %s542
      %s544 = smul.addr %s543, 4
      %s545 = scalar_lea.vmem %s1, %s544
      %s546 = sadd.s32 %s28, 1
      %s547 = smul.u32 %s546, 8
      %s548 = smul.u32 2, %s547
      %p549 = scmp.lt.s32.totalorder %s27, 1
      %s550 = scalar_select %p549, %s27, 1
      %p551 = scmp.lt.s32.totalorder %s28, 0
      %s552 = scalar_select %p551, %s28, 0
      %s553 = smul.addr %s552, 8
      %s554 = smul.addr %s550, 8
      %s555 = sadd.s32 %s553, %s554
      %s556 = smul.addr %s555, 4
      %s557 = scalar_lea.vmem %s2, %s556
      %p558 = scmp.lt.s32.totalorder %s27, 1
      %s559 = scalar_select %p558, %s27, 1
      %p560 = scmp.lt.s32.totalorder %s28, 0
      %s561 = scalar_select %p560, %s28, 0
      %s562 = smul.addr %s561, 8
      %s563 = smul.addr %s559, 8
      %s564 = sadd.s32 %s562, %s563
      %s565 = smul.addr %s564, 4
      %s566 = scalar_lea.vmem %s12, %s565
      %v568 = vld [vmem:[%s527] sm:$0xf]
      %v569 = vld [vmem:[%s527 + $0x4] sm:$0xf]
      %v570 = vld [vmem:[%s527 + $0x8] sm:$0x1]
      %v571 = vld [vmem:[%s527 + $0xc] sm:$0xf]
      %v572 = vld [vmem:[%s527 + $0x10] sm:$0xf]
      %v573 = vld [vmem:[%s527 + $0x14] sm:$0x1]
      %v574 = vld [vmem:[%s527 + $0x18] sm:$0xf]
      %v575 = vld [vmem:[%s527 + $0x1c] sm:$0xf]
      %v576 = vld [vmem:[%s527 + $0x20] sm:$0x1]
      %v577 = vld [vmem:[%s527 + $0x24] sm:$0xf]
      %v578 = vld [vmem:[%s527 + $0x28] sm:$0xf]
      %v579 = vld [vmem:[%s527 + $0x2c] sm:$0x1]
      %v580 = vld [vmem:[%s527 + $0x30] sm:$0xf]
      %v581 = vld [vmem:[%s527 + $0x34] sm:$0xf]
      %v582 = vld [vmem:[%s527 + $0x38] sm:$0x1]
      %v583 = vld [vmem:[%s527 + $0x3c] sm:$0xf]
      %v584 = vld [vmem:[%s527 + $0x40] sm:$0xf]
      %v585 = vld [vmem:[%s527 + $0x44] sm:$0x1]
      %v586 = vld [vmem:[%s527 + $0x48] sm:$0xf]
      %v587 = vld [vmem:[%s527 + $0x4c] sm:$0xf]
      %v588 = vld [vmem:[%s527 + $0x50] sm:$0x1]
      %v589 = vld [vmem:[%s527 + $0x54] sm:$0xf]
      %v590 = vld [vmem:[%s527 + $0x58] sm:$0xf]
      %v591 = vld [vmem:[%s527 + $0x5c] sm:$0x1]
      %v592 = vld [vmem:[%s527 + $0x60] sm:$0xf]
      %v593 = vld [vmem:[%s527 + $0x64] sm:$0xf]
      %v594 = vld [vmem:[%s527 + $0x68] sm:$0x1]
      %v595 = vld [vmem:[%s527 + $0x6c] sm:$0xf]
      %v596 = vld [vmem:[%s527 + $0x70] sm:$0xf]
      %v597 = vld [vmem:[%s527 + $0x74] sm:$0x1]
      %v598 = vld [vmem:[%s527 + $0x78] sm:$0xf]
      %v599 = vld [vmem:[%s527 + $0x7c] sm:$0xf]
      %v600 = vld [vmem:[%s527 + $0x80] sm:$0x1]
      %v601 = vld [vmem:[%s527 + $0x84] sm:$0xf]
      %v602 = vld [vmem:[%s527 + $0x88] sm:$0xf]
      %v603 = vld [vmem:[%s527 + $0x8c] sm:$0x1]
      %v604 = vld [vmem:[%s527 + $0x90] sm:$0xf]
      %v605 = vld [vmem:[%s527 + $0x94] sm:$0xf]
      %v606 = vld [vmem:[%s527 + $0x98] sm:$0x1]
      %v607 = vld [vmem:[%s527 + $0x9c] sm:$0xf]
      %v608 = vld [vmem:[%s527 + $0xa0] sm:$0xf]
      %v609 = vld [vmem:[%s527 + $0xa4] sm:$0x1]
      %v610 = vld [vmem:[%s527 + $0xa8] sm:$0xf]
      %v611 = vld [vmem:[%s527 + $0xac] sm:$0xf]
      %v612 = vld [vmem:[%s527 + $0xb0] sm:$0x1]
      %v613 = vld [vmem:[%s527 + $0xb4] sm:$0xf]
      %v614 = vld [vmem:[%s527 + $0xb8] sm:$0xf]
      %v615 = vld [vmem:[%s527 + $0xbc] sm:$0x1]
      %616 = vst [vmem:[#allocation2] sm:$0xf] %v568
      %617 = vst [vmem:[#allocation2 + $0x4] sm:$0xf] %v569
      %618 = vst [vmem:[#allocation2 + $0x8] sm:$0x1] %v570
      %619 = vst [vmem:[#allocation2 + $0xc] sm:$0xf] %v571
      %620 = vst [vmem:[#allocation2 + $0x10] sm:$0xf] %v572
      %621 = vst [vmem:[#allocation2 + $0x14] sm:$0x1] %v573
      %622 = vst [vmem:[#allocation2 + $0x18] sm:$0xf] %v574
      %623 = vst [vmem:[#allocation2 + $0x1c] sm:$0xf] %v575
      %624 = vst [vmem:[#allocation2 + $0x20] sm:$0x1] %v576
      %625 = vst [vmem:[#allocation2 + $0x24] sm:$0xf] %v577
      %626 = vst [vmem:[#allocation2 + $0x28] sm:$0xf] %v578
      %627 = vst [vmem:[#allocation2 + $0x2c] sm:$0x1] %v579
      %628 = vst [vmem:[#allocation2 + $0x30] sm:$0xf] %v580
      %629 = vst [vmem:[#allocation2 + $0x34] sm:$0xf] %v581
      %630 = vst [vmem:[#allocation2 + $0x38] sm:$0x1] %v582
      %631 = vst [vmem:[#allocation2 + $0x3c] sm:$0xf] %v583
      %632 = vst [vmem:[#allocation2 + $0x40] sm:$0xf] %v584
      %633 = vst [vmem:[#allocation2 + $0x44] sm:$0x1] %v585
      %634 = vst [vmem:[#allocation2 + $0x48] sm:$0xf] %v586
      %635 = vst [vmem:[#allocation2 + $0x4c] sm:$0xf] %v587
      %636 = vst [vmem:[#allocation2 + $0x50] sm:$0x1] %v588
      %637 = vst [vmem:[#allocation2 + $0x54] sm:$0xf] %v589
      %638 = vst [vmem:[#allocation2 + $0x58] sm:$0xf] %v590
      %639 = vst [vmem:[#allocation2 + $0x5c] sm:$0x1] %v591
      %640 = vst [vmem:[#allocation2 + $0x60] sm:$0xf] %v592
      %641 = vst [vmem:[#allocation2 + $0x64] sm:$0xf] %v593
      %642 = vst [vmem:[#allocation2 + $0x68] sm:$0x1] %v594
      %643 = vst [vmem:[#allocation2 + $0x6c] sm:$0xf] %v595
      %644 = vst [vmem:[#allocation2 + $0x70] sm:$0xf] %v596
      %645 = vst [vmem:[#allocation2 + $0x74] sm:$0x1] %v597
      %646 = vst [vmem:[#allocation2 + $0x78] sm:$0xf] %v598
      %647 = vst [vmem:[#allocation2 + $0x7c] sm:$0xf] %v599
      %648 = vst [vmem:[#allocation2 + $0x80] sm:$0x1] %v600
      %649 = vst [vmem:[#allocation2 + $0x84] sm:$0xf] %v601
      %650 = vst [vmem:[#allocation2 + $0x88] sm:$0xf] %v602
      %651 = vst [vmem:[#allocation2 + $0x8c] sm:$0x1] %v603
      %652 = vst [vmem:[#allocation2 + $0x90] sm:$0xf] %v604
      %653 = vst [vmem:[#allocation2 + $0x94] sm:$0xf] %v605
      %654 = vst [vmem:[#allocation2 + $0x98] sm:$0x1] %v606
      %655 = vst [vmem:[#allocation2 + $0x9c] sm:$0xf] %v607
      %656 = vst [vmem:[#allocation2 + $0xa0] sm:$0xf] %v608
      %657 = vst [vmem:[#allocation2 + $0xa4] sm:$0x1] %v609
      %658 = vst [vmem:[#allocation2 + $0xa8] sm:$0xf] %v610
      %659 = vst [vmem:[#allocation2 + $0xac] sm:$0xf] %v611
      %660 = vst [vmem:[#allocation2 + $0xb0] sm:$0x1] %v612
      %661 = vst [vmem:[#allocation2 + $0xb4] sm:$0xf] %v613
      %662 = vst [vmem:[#allocation2 + $0xb8] sm:$0xf] %v614
      %663 = vst [vmem:[#allocation2 + $0xbc] sm:$0x1] %v615
      %v664 = vld [vmem:[%s545] sm:$0xf]
      %v665 = vld [vmem:[%s545 + $0x4] sm:$0xf]
      %v666 = vld [vmem:[%s545 + $0x8] sm:$0x1]
      %v667 = vld [vmem:[%s545 + $0xc] sm:$0xf]
      %v668 = vld [vmem:[%s545 + $0x10] sm:$0xf]
      %v669 = vld [vmem:[%s545 + $0x14] sm:$0x1]
      %s670 = scalar_lea.vmem [#allocation2], 192
      %671 = vst [vmem:[%s670] sm:$0xf] %v664
      %672 = vst [vmem:[%s670 + $0x4] sm:$0xf] %v665
      %673 = vst [vmem:[%s670 + $0x8] sm:$0x1] %v666
      %674 = vst [vmem:[%s670 + $0xc] sm:$0xf] %v667
      %675 = vst [vmem:[%s670 + $0x10] sm:$0xf] %v668
      %676 = vst [vmem:[%s670 + $0x14] sm:$0x1] %v669
      %v677 = vld [vmem:[#allocation2] sm:$0xf]
      %v678 = vld [vmem:[#allocation2 + $0x18] sm:$0xf]
      %v679 = vld [vmem:[#allocation2 + $0x30] sm:$0xf]
      %v680 = vld [vmem:[#allocation2 + $0x48] sm:$0xf]
      %v681 = vld [vmem:[#allocation2 + $0x60] sm:$0xf]
      %v682 = vld [vmem:[#allocation2 + $0x78] sm:$0xf]
      %v683 = vld [vmem:[#allocation2 + $0x90] sm:$0xf]
      %v684 = vld [vmem:[#allocation2 + $0xa8] sm:$0xf]
      %v685 = vld [vmem:[%s3] sm:$0xf]
      %v686 = vld [vmem:[%s3 + $0x4] sm:$0xf]
      %v687 = vld [vmem:[%s3 + $0x8] sm:$0xf]
      %v688 = vld [vmem:[%s3 + $0xc] sm:$0xf]
      %v689 = vld [vmem:[%s3 + $0x10] sm:$0xf]
      %v690 = vld [vmem:[%s3 + $0x14] sm:$0xf]
      %v691 = vld [vmem:[%s3 + $0x18] sm:$0xf]
      %v692 = vld [vmem:[%s3 + $0x1c] sm:$0xf]
      %v693 = vld [vmem:[%s3 + $0x20] sm:$0xf]
      %v694 = vld [vmem:[%s3 + $0x24] sm:$0xf]
      %v695 = vld [vmem:[%s3 + $0x28] sm:$0xf]
      %v696 = vld [vmem:[%s3 + $0x2c] sm:$0xf]
      %v697 = vld [vmem:[%s3 + $0x30] sm:$0xf]
      %v698 = vld [vmem:[%s3 + $0x34] sm:$0xf]
      %v699 = vld [vmem:[%s3 + $0x38] sm:$0xf]
      %v700 = vld [vmem:[%s3 + $0x3c] sm:$0xf]
      %v701 = vld [vmem:[#allocation2 + $0x4] sm:$0xf]
      %v702 = vld [vmem:[#allocation2 + $0x8] sm:$0x1]
      %v703 = vld [vmem:[#allocation2 + $0x1c] sm:$0xf]
      %v704 = vld [vmem:[#allocation2 + $0x20] sm:$0x1]
      %v705 = vld [vmem:[#allocation2 + $0x34] sm:$0xf]
      %v706 = vld [vmem:[#allocation2 + $0x38] sm:$0x1]
      %v707 = vld [vmem:[#allocation2 + $0x4c] sm:$0xf]
      %v708 = vld [vmem:[#allocation2 + $0x50] sm:$0x1]
      %v709 = vld [vmem:[#allocation2 + $0x64] sm:$0xf]
      %v710 = vld [vmem:[#allocation2 + $0x68] sm:$0x1]
      %v711 = vld [vmem:[#allocation2 + $0x7c] sm:$0xf]
      %v712 = vld [vmem:[#allocation2 + $0x80] sm:$0x1]
      %v713 = vld [vmem:[#allocation2 + $0x94] sm:$0xf]
      %v714 = vld [vmem:[#allocation2 + $0x98] sm:$0x1]
      %v715 = vld [vmem:[#allocation2 + $0xac] sm:$0xf]
      %v716 = vld [vmem:[#allocation2 + $0xb0] sm:$0x1]
      %vm717 = vsmask.f32 3328
      %vm718 = vsmask.f32 7440
      %vm719 = vmor %vm717, %vm718
      %v721 = vshrl.u32 %v701, 16
      %v723 = vrot.slane %v721, 4
      %v724 = vshll.u32 %v701, 16
      %v726 = vrot.slane %v724, 5
      %v727 = vor.u32 %v723, %v726
      %v728 = vrot.slane %v727, 4
      %v730 = vshll.u32 %v702, 16
      %v732 = vrot.slane %v730, 5
      %v733 = vsel %vm719, %v728, %v732
      %v735 = vshrl.u32 %v703, 16
      %v737 = vrot.slane %v735, 4
      %v738 = vshll.u32 %v703, 16
      %v740 = vrot.slane %v738, 5
      %v741 = vor.u32 %v737, %v740
      %v742 = vrot.slane %v741, 4
      %v744 = vshll.u32 %v704, 16
      %v746 = vrot.slane %v744, 5
      %v747 = vsel %vm719, %v742, %v746
      %v749 = vshrl.u32 %v705, 16
      %v751 = vrot.slane %v749, 4
      %v752 = vshll.u32 %v705, 16
      %v754 = vrot.slane %v752, 5
      %v755 = vor.u32 %v751, %v754
      %v756 = vrot.slane %v755, 4
      %v758 = vshll.u32 %v706, 16
      %v760 = vrot.slane %v758, 5
      %v761 = vsel %vm719, %v756, %v760
      %v763 = vshrl.u32 %v707, 16
      %v765 = vrot.slane %v763, 4
      %v766 = vshll.u32 %v707, 16
      %v768 = vrot.slane %v766, 5
      %v769 = vor.u32 %v765, %v768
      %v770 = vrot.slane %v769, 4
      %v772 = vshll.u32 %v708, 16
      %v774 = vrot.slane %v772, 5
      %v775 = vsel %vm719, %v770, %v774
      %v777 = vshrl.u32 %v709, 16
      %v779 = vrot.slane %v777, 4
      %v780 = vshll.u32 %v709, 16
      %v782 = vrot.slane %v780, 5
      %v783 = vor.u32 %v779, %v782
      %v784 = vrot.slane %v783, 4
      %v786 = vshll.u32 %v710, 16
      %v788 = vrot.slane %v786, 5
      %v789 = vsel %vm719, %v784, %v788
      %v791 = vshrl.u32 %v711, 16
      %v793 = vrot.slane %v791, 4
      %v794 = vshll.u32 %v711, 16
      %v796 = vrot.slane %v794, 5
      %v797 = vor.u32 %v793, %v796
      %v798 = vrot.slane %v797, 4
      %v800 = vshll.u32 %v712, 16
      %v802 = vrot.slane %v800, 5
      %v803 = vsel %vm719, %v798, %v802
      %v805 = vshrl.u32 %v713, 16
      %v807 = vrot.slane %v805, 4
      %v808 = vshll.u32 %v713, 16
      %v810 = vrot.slane %v808, 5
      %v811 = vor.u32 %v807, %v810
      %v812 = vrot.slane %v811, 4
      %v814 = vshll.u32 %v714, 16
      %v816 = vrot.slane %v814, 5
      %v817 = vsel %vm719, %v812, %v816
      %v819 = vshrl.u32 %v715, 16
      %v821 = vrot.slane %v819, 4
      %v822 = vshll.u32 %v715, 16
      %v824 = vrot.slane %v822, 5
      %v825 = vor.u32 %v821, %v824
      %v826 = vrot.slane %v825, 4
      %v828 = vshll.u32 %v716, 16
      %v830 = vrot.slane %v828, 5
      %v831 = vsel %vm719, %v826, %v830
      %s832 = scalar_lea.vmem %s3, 64
      %v833 = vld [vmem:[%s832] sm:$0xf]
      %v834 = vld [vmem:[%s832 + $0x4] sm:$0xf]
      %v835 = vld [vmem:[%s832 + $0x8] sm:$0xf]
      %v836 = vld [vmem:[%s832 + $0xc] sm:$0xf]
      %v837 = vld [vmem:[%s832 + $0x10] sm:$0xf]
      %v838 = vld [vmem:[%s832 + $0x14] sm:$0xf]
      %v839 = vld [vmem:[%s832 + $0x18] sm:$0xf]
      %v840 = vld [vmem:[%s832 + $0x1c] sm:$0xf]
      %v841 = vld [vmem:[%s832 + $0x20] sm:$0xf]
      %v842 = vld [vmem:[%s832 + $0x24] sm:$0xf]
      %v843 = vld [vmem:[%s832 + $0x28] sm:$0xf]
      %v844 = vld [vmem:[%s832 + $0x2c] sm:$0xf]
      %v845 = vld [vmem:[%s832 + $0x30] sm:$0xf]
      %v846 = vld [vmem:[%s832 + $0x34] sm:$0xf]
      %v847 = vld [vmem:[%s832 + $0x38] sm:$0xf]
      %v848 = vld [vmem:[%s832 + $0x3c] sm:$0xf]
      %v849 = vunpack.c.l.b16 %v733
      %v850 = vunpack.c.l.b16 %v747
      %v851 = vunpack.c.l.b16 %v761
      %v852 = vunpack.c.l.b16 %v775
      %v853 = vunpack.c.l.b16 %v789
      %v854 = vunpack.c.l.b16 %v803
      %v855 = vunpack.c.l.b16 %v817
      %v856 = vunpack.c.l.b16 %v831
      %v857 = vpack.c.b16 %v850, %v849
      %v858 = vpack.c.b16 %v852, %v851
      %v859 = vpack.c.b16 %v854, %v853
      %v860 = vpack.c.b16 %v856, %v855
      %v881 = vunpack.c.l.b16 %v833
      %v882 = vunpack.c.l.b16 %v834
      %v883 = vunpack.c.l.b16 %v835
      %v884 = vunpack.c.l.b16 %v836
      %v885 = vunpack.c.l.b16 %v837
      %v886 = vunpack.c.l.b16 %v838
      %v887 = vunpack.c.l.b16 %v839
      %v888 = vunpack.c.l.b16 %v840
      %v889 = vunpack.c.l.b16 %v841
      %v890 = vunpack.c.l.b16 %v842
      %v891 = vunpack.c.l.b16 %v843
      %v892 = vunpack.c.l.b16 %v844
      %v893 = vunpack.c.l.b16 %v845
      %v894 = vunpack.c.l.b16 %v846
      %v895 = vunpack.c.l.b16 %v847
      %v896 = vunpack.c.l.b16 %v848
      %v897 = vpack.c.b16 %v882, %v881
      %v898 = vpack.c.b16 %v884, %v883
      %v899 = vpack.c.b16 %v886, %v885
      %v900 = vpack.c.b16 %v888, %v887
      %v901 = vpack.c.b16 %v890, %v889
      %v902 = vpack.c.b16 %v892, %v891
      %v903 = vpack.c.b16 %v894, %v893
      %v904 = vpack.c.b16 %v896, %v895
      %913 = vmatprep.subr.bf16.mxu0 0
      %914 = vmatpush1.bf16.msra.mxu0 %v904
      %915 = vmatprep.subr.bf16.mxu0 0
      %916 = vmatpush1.bf16.msra.mxu0 %v903
      %917 = vmatprep.subr.bf16.mxu0 0
      %918 = vmatpush1.bf16.msra.mxu0 %v902
      %919 = vmatprep.subr.bf16.mxu0 0
      %920 = vmatpush1.bf16.msra.mxu0 %v901
      %921 = vmatprep.subr.bf16.mxu0 0
      %922 = vmatpush1.bf16.msra.mxu0 %v900
      %923 = vmatprep.subr.bf16.mxu0 0
      %924 = vmatpush1.bf16.msra.mxu0 %v899
      %925 = vmatprep.subr.bf16.mxu0 0
      %926 = vmatpush1.bf16.msra.mxu0 %v898
      %927 = vmatprep.subr.bf16.mxu0 0
      %928 = vmatpush1.bf16.msra.mxu0 %v897
      %929 = vmatprep.subr.bf16.mxu0 0
      %930 = vmatpush2.bf16.msra.mxu0 0
      %931 = vmatprep.subr.bf16.mxu0 0
      %932 = vmatpush2.bf16.msra.mxu0 0
      %933 = vmatprep.subr.bf16.mxu0 0
      %934 = vmatpush2.bf16.msra.mxu0 0
      %935 = vmatprep.subr.bf16.mxu0 0
      %936 = vmatpush2.bf16.msra.mxu0 0
      %937 = vmatprep.subr.bf16.mxu0 0
      %938 = vmatpush2.bf16.msra.mxu0 0
      %939 = vmatprep.subr.bf16.mxu0 0
      %940 = vmatpush2.bf16.msra.mxu0 0
      %941 = vmatprep.subr.bf16.mxu0 0
      %942 = vmatpush2.bf16.msra.mxu0 0
      %943 = vmatprep.subr.bf16.mxu0 0
      %944 = vmatpush2.bf16.msra.mxu0 0
      %945 = vmatprep.mubr.bf16.mxu0 0
      %946 = vmatmul.mubr.bf16.gmra.mxu0 %v857
      %v947 = vpop.f32.mrf.mxu0
      %v948 = vadd.f32 0.0, %v947
      %v949 = vpop.f32.mrf.mxu0
      %v950 = vpop.f32.mrf.mxu0
      %v951 = vadd.f32 0.0, %v950
      %v952 = vpop.f32.mrf.mxu0
      %953 = vmatprep.mubr.bf16.mxu0 0
      %954 = vmatmul.mubr.bf16.gmra.mxu0 %v858
      %v955 = vpop.f32.mrf.mxu0
      %v956 = vadd.f32 0.0, %v955
      %v957 = vpop.f32.mrf.mxu0
      %v958 = vpop.f32.mrf.mxu0
      %v959 = vadd.f32 0.0, %v958
      %v960 = vpop.f32.mrf.mxu0
      %961 = vmatprep.mubr.bf16.mxu0 0
      %962 = vmatmul.mubr.bf16.gmra.mxu0 %v859
      %v963 = vpop.f32.mrf.mxu0
      %v964 = vadd.f32 0.0, %v963
      %v965 = vpop.f32.mrf.mxu0
      %v966 = vpop.f32.mrf.mxu0
      %v967 = vadd.f32 0.0, %v966
      %v968 = vpop.f32.mrf.mxu0
      %969 = vmatprep.mubr.bf16.mxu0 0
      %970 = vmatmul.mubr.bf16.gmra.mxu0 %v860
      %v971 = vpop.f32.mrf.mxu0
      %v972 = vadd.f32 0.0, %v971
      %v973 = vpop.f32.mrf.mxu0
      %v974 = vpop.f32.mrf.mxu0
      %v975 = vadd.f32 0.0, %v974
      %v976 = vpop.f32.mrf.mxu0
      %977 = vdwg.mxu0
      %v986 = vunpack.c.l.b16 %v677
      %v987 = vunpack.c.l.b16 %v678
      %v988 = vunpack.c.l.b16 %v679
      %v989 = vunpack.c.l.b16 %v680
      %v990 = vunpack.c.l.b16 %v681
      %v991 = vunpack.c.l.b16 %v682
      %v992 = vunpack.c.l.b16 %v683
      %v993 = vunpack.c.l.b16 %v684
      %v994 = vpack.c.b16 %v987, %v986
      %v995 = vpack.c.b16 %v989, %v988
      %v996 = vpack.c.b16 %v991, %v990
      %v997 = vpack.c.b16 %v993, %v992
      %v1018 = vunpack.c.l.b16 %v685
      %v1019 = vunpack.c.l.b16 %v686
      %v1020 = vunpack.c.l.b16 %v687
      %v1021 = vunpack.c.l.b16 %v688
      %v1022 = vunpack.c.l.b16 %v689
      %v1023 = vunpack.c.l.b16 %v690
      %v1024 = vunpack.c.l.b16 %v691
      %v1025 = vunpack.c.l.b16 %v692
      %v1026 = vunpack.c.l.b16 %v693
      %v1027 = vunpack.c.l.b16 %v694
      %v1028 = vunpack.c.l.b16 %v695
      %v1029 = vunpack.c.l.b16 %v696
      %v1030 = vunpack.c.l.b16 %v697
      %v1031 = vunpack.c.l.b16 %v698
      %v1032 = vunpack.c.l.b16 %v699
      %v1033 = vunpack.c.l.b16 %v700
      %v1034 = vpack.c.b16 %v1019, %v1018
      %v1035 = vpack.c.b16 %v1021, %v1020
      %v1036 = vpack.c.b16 %v1023, %v1022
      %v1037 = vpack.c.b16 %v1025, %v1024
      %v1038 = vpack.c.b16 %v1027, %v1026
      %v1039 = vpack.c.b16 %v1029, %v1028
      %v1040 = vpack.c.b16 %v1031, %v1030
      %v1041 = vpack.c.b16 %v1033, %v1032
      %1050 = vmatprep.subr.bf16.mxu0 0
      %1051 = vmatpush1.bf16.msra.mxu0 %v1041
      %1052 = vmatprep.subr.bf16.mxu0 0
      %1053 = vmatpush1.bf16.msra.mxu0 %v1040
      %1054 = vmatprep.subr.bf16.mxu0 0
      %1055 = vmatpush1.bf16.msra.mxu0 %v1039
      %1056 = vmatprep.subr.bf16.mxu0 0
      %1057 = vmatpush1.bf16.msra.mxu0 %v1038
      %1058 = vmatprep.subr.bf16.mxu0 0
      %1059 = vmatpush1.bf16.msra.mxu0 %v1037
      %1060 = vmatprep.subr.bf16.mxu0 0
      %1061 = vmatpush1.bf16.msra.mxu0 %v1036
      %1062 = vmatprep.subr.bf16.mxu0 0
      %1063 = vmatpush1.bf16.msra.mxu0 %v1035
      %1064 = vmatprep.subr.bf16.mxu0 0
      %1065 = vmatpush1.bf16.msra.mxu0 %v1034
      %1066 = vmatprep.subr.bf16.mxu0 0
      %1067 = vmatpush2.bf16.msra.mxu0 0
      %1068 = vmatprep.subr.bf16.mxu0 0
      %1069 = vmatpush2.bf16.msra.mxu0 0
      %1070 = vmatprep.subr.bf16.mxu0 0
      %1071 = vmatpush2.bf16.msra.mxu0 0
      %1072 = vmatprep.subr.bf16.mxu0 0
      %1073 = vmatpush2.bf16.msra.mxu0 0
      %1074 = vmatprep.subr.bf16.mxu0 0
      %1075 = vmatpush2.bf16.msra.mxu0 0
      %1076 = vmatprep.subr.bf16.mxu0 0
      %1077 = vmatpush2.bf16.msra.mxu0 0
      %1078 = vmatprep.subr.bf16.mxu0 0
      %1079 = vmatpush2.bf16.msra.mxu0 0
      %1080 = vmatprep.subr.bf16.mxu0 0
      %1081 = vmatpush2.bf16.msra.mxu0 0
      %1082 = vmatprep.mubr.bf16.mxu0 0
      %1083 = vmatmul.mubr.bf16.gmra.mxu0 %v994
      %v1084 = vpop.f32.mrf.mxu0
      %v1085 = vadd.f32 %v948, %v1084
      %v1086 = vpop.f32.mrf.mxu0
      %v1087 = vpop.f32.mrf.mxu0
      %v1088 = vadd.f32 %v951, %v1087
      %v1089 = vpop.f32.mrf.mxu0
      %1090 = vmatprep.mubr.bf16.mxu0 0
      %1091 = vmatmul.mubr.bf16.gmra.mxu0 %v995
      %v1092 = vpop.f32.mrf.mxu0
      %v1093 = vadd.f32 %v956, %v1092
      %v1094 = vpop.f32.mrf.mxu0
      %v1095 = vpop.f32.mrf.mxu0
      %v1096 = vadd.f32 %v959, %v1095
      %v1097 = vpop.f32.mrf.mxu0
      %1098 = vmatprep.mubr.bf16.mxu0 0
      %1099 = vmatmul.mubr.bf16.gmra.mxu0 %v996
      %v1100 = vpop.f32.mrf.mxu0
      %v1101 = vadd.f32 %v964, %v1100
      %v1102 = vpop.f32.mrf.mxu0
      %v1103 = vpop.f32.mrf.mxu0
      %v1104 = vadd.f32 %v967, %v1103
      %v1105 = vpop.f32.mrf.mxu0
      %1106 = vmatprep.mubr.bf16.mxu0 0
      %1107 = vmatmul.mubr.bf16.gmra.mxu0 %v997
      %v1108 = vpop.f32.mrf.mxu0
      %v1109 = vadd.f32 %v972, %v1108
      %v1110 = vpop.f32.mrf.mxu0
      %v1111 = vpop.f32.mrf.mxu0
      %v1112 = vadd.f32 %v975, %v1111
      %v1113 = vpop.f32.mrf.mxu0
      %1114 = vdwg.mxu0
      %v1115 = vld [vmem:[#allocation2] sm:$0xf]
      %v1116 = vld [vmem:[#allocation2 + $0x4] sm:$0x1]
      %v1117 = vld [vmem:[#allocation2 + $0x18] sm:$0xf]
      %v1118 = vld [vmem:[#allocation2 + $0x1c] sm:$0x1]
      %v1119 = vld [vmem:[#allocation2 + $0x30] sm:$0xf]
      %v1120 = vld [vmem:[#allocation2 + $0x34] sm:$0x1]
      %v1121 = vld [vmem:[#allocation2 + $0x48] sm:$0xf]
      %v1122 = vld [vmem:[#allocation2 + $0x4c] sm:$0x1]
      %v1123 = vld [vmem:[#allocation2 + $0x60] sm:$0xf]
      %v1124 = vld [vmem:[#allocation2 + $0x64] sm:$0x1]
      %v1125 = vld [vmem:[#allocation2 + $0x78] sm:$0xf]
      %v1126 = vld [vmem:[#allocation2 + $0x7c] sm:$0x1]
      %v1127 = vld [vmem:[#allocation2 + $0x90] sm:$0xf]
      %v1128 = vld [vmem:[#allocation2 + $0x94] sm:$0x1]
      %v1129 = vld [vmem:[#allocation2 + $0xa8] sm:$0xf]
      %v1130 = vld [vmem:[#allocation2 + $0xac] sm:$0x1]
      %v1132 = vshrl.u32 %v1115, 16
      %v1134 = vrot.slane %v1132, 4
      %v1135 = vshll.u32 %v1115, 16
      %v1137 = vrot.slane %v1135, 5
      %v1138 = vor.u32 %v1134, %v1137
      %v1139 = vrot.slane %v1138, 4
      %v1141 = vshll.u32 %v1116, 16
      %v1143 = vrot.slane %v1141, 5
      %v1144 = vsel %vm719, %v1139, %v1143
      %v1146 = vshrl.u32 %v1117, 16
      %v1148 = vrot.slane %v1146, 4
      %v1149 = vshll.u32 %v1117, 16
      %v1151 = vrot.slane %v1149, 5
      %v1152 = vor.u32 %v1148, %v1151
      %v1153 = vrot.slane %v1152, 4
      %v1155 = vshll.u32 %v1118, 16
      %v1157 = vrot.slane %v1155, 5
      %v1158 = vsel %vm719, %v1153, %v1157
      %v1160 = vshrl.u32 %v1119, 16
      %v1162 = vrot.slane %v1160, 4
      %v1163 = vshll.u32 %v1119, 16
      %v1165 = vrot.slane %v1163, 5
      %v1166 = vor.u32 %v1162, %v1165
      %v1167 = vrot.slane %v1166, 4
      %v1169 = vshll.u32 %v1120, 16
      %v1171 = vrot.slane %v1169, 5
      %v1172 = vsel %vm719, %v1167, %v1171
      %v1174 = vshrl.u32 %v1121, 16
      %v1176 = vrot.slane %v1174, 4
      %v1177 = vshll.u32 %v1121, 16
      %v1179 = vrot.slane %v1177, 5
      %v1180 = vor.u32 %v1176, %v1179
      %v1181 = vrot.slane %v1180, 4
      %v1183 = vshll.u32 %v1122, 16
      %v1185 = vrot.slane %v1183, 5
      %v1186 = vsel %vm719, %v1181, %v1185
      %v1188 = vshrl.u32 %v1123, 16
      %v1190 = vrot.slane %v1188, 4
      %v1191 = vshll.u32 %v1123, 16
      %v1193 = vrot.slane %v1191, 5
      %v1194 = vor.u32 %v1190, %v1193
      %v1195 = vrot.slane %v1194, 4
      %v1197 = vshll.u32 %v1124, 16
      %v1199 = vrot.slane %v1197, 5
      %v1200 = vsel %vm719, %v1195, %v1199
      %v1202 = vshrl.u32 %v1125, 16
      %v1204 = vrot.slane %v1202, 4
      %v1205 = vshll.u32 %v1125, 16
      %v1207 = vrot.slane %v1205, 5
      %v1208 = vor.u32 %v1204, %v1207
      %v1209 = vrot.slane %v1208, 4
      %v1211 = vshll.u32 %v1126, 16
      %v1213 = vrot.slane %v1211, 5
      %v1214 = vsel %vm719, %v1209, %v1213
      %v1216 = vshrl.u32 %v1127, 16
      %v1218 = vrot.slane %v1216, 4
      %v1219 = vshll.u32 %v1127, 16
      %v1221 = vrot.slane %v1219, 5
      %v1222 = vor.u32 %v1218, %v1221
      %v1223 = vrot.slane %v1222, 4
      %v1225 = vshll.u32 %v1128, 16
      %v1227 = vrot.slane %v1225, 5
      %v1228 = vsel %vm719, %v1223, %v1227
      %v1230 = vshrl.u32 %v1129, 16
      %v1232 = vrot.slane %v1230, 4
      %v1233 = vshll.u32 %v1129, 16
      %v1235 = vrot.slane %v1233, 5
      %v1236 = vor.u32 %v1232, %v1235
      %v1237 = vrot.slane %v1236, 4
      %v1239 = vshll.u32 %v1130, 16
      %v1241 = vrot.slane %v1239, 5
      %v1242 = vsel %vm719, %v1237, %v1241
      %s1243 = scalar_lea.vmem %s3, 128
      %v1244 = vld [vmem:[%s1243] sm:$0xf]
      %v1245 = vld [vmem:[%s1243 + $0x4] sm:$0xf]
      %v1246 = vld [vmem:[%s1243 + $0x8] sm:$0xf]
      %v1247 = vld [vmem:[%s1243 + $0xc] sm:$0xf]
      %v1248 = vld [vmem:[%s1243 + $0x10] sm:$0xf]
      %v1249 = vld [vmem:[%s1243 + $0x14] sm:$0xf]
      %v1250 = vld [vmem:[%s1243 + $0x18] sm:$0xf]
      %v1251 = vld [vmem:[%s1243 + $0x1c] sm:$0xf]
      %v1252 = vld [vmem:[%s1243 + $0x20] sm:$0xf]
      %v1253 = vld [vmem:[%s1243 + $0x24] sm:$0xf]
      %v1254 = vld [vmem:[%s1243 + $0x28] sm:$0xf]
      %v1255 = vld [vmem:[%s1243 + $0x2c] sm:$0xf]
      %v1256 = vld [vmem:[%s1243 + $0x30] sm:$0xf]
      %v1257 = vld [vmem:[%s1243 + $0x34] sm:$0xf]
      %v1258 = vld [vmem:[%s1243 + $0x38] sm:$0xf]
      %v1259 = vld [vmem:[%s1243 + $0x3c] sm:$0xf]
      %v1260 = vunpack.c.l.b16 %v1144
      %v1261 = vunpack.c.l.b16 %v1158
      %v1262 = vunpack.c.l.b16 %v1172
      %v1263 = vunpack.c.l.b16 %v1186
      %v1264 = vunpack.c.l.b16 %v1200
      %v1265 = vunpack.c.l.b16 %v1214
      %v1266 = vunpack.c.l.b16 %v1228
      %v1267 = vunpack.c.l.b16 %v1242
      %v1268 = vpack.c.b16 %v1261, %v1260
      %v1269 = vpack.c.b16 %v1263, %v1262
      %v1270 = vpack.c.b16 %v1265, %v1264
      %v1271 = vpack.c.b16 %v1267, %v1266
      %v1292 = vunpack.c.l.b16 %v1244
      %v1293 = vunpack.c.l.b16 %v1245
      %v1294 = vunpack.c.l.b16 %v1246
      %v1295 = vunpack.c.l.b16 %v1247
      %v1296 = vunpack.c.l.b16 %v1248
      %v1297 = vunpack.c.l.b16 %v1249
      %v1298 = vunpack.c.l.b16 %v1250
      %v1299 = vunpack.c.l.b16 %v1251
      %v1300 = vunpack.c.l.b16 %v1252
      %v1301 = vunpack.c.l.b16 %v1253
      %v1302 = vunpack.c.l.b16 %v1254
      %v1303 = vunpack.c.l.b16 %v1255
      %v1304 = vunpack.c.l.b16 %v1256
      %v1305 = vunpack.c.l.b16 %v1257
      %v1306 = vunpack.c.l.b16 %v1258
      %v1307 = vunpack.c.l.b16 %v1259
      %v1308 = vpack.c.b16 %v1293, %v1292
      %v1309 = vpack.c.b16 %v1295, %v1294
      %v1310 = vpack.c.b16 %v1297, %v1296
      %v1311 = vpack.c.b16 %v1299, %v1298
      %v1312 = vpack.c.b16 %v1301, %v1300
      %v1313 = vpack.c.b16 %v1303, %v1302
      %v1314 = vpack.c.b16 %v1305, %v1304
      %v1315 = vpack.c.b16 %v1307, %v1306
      %1324 = vmatprep.subr.bf16.mxu0 0
      %1325 = vmatpush1.bf16.msra.mxu0 %v1315
      %1326 = vmatprep.subr.bf16.mxu0 0
      %1327 = vmatpush1.bf16.msra.mxu0 %v1314
      %1328 = vmatprep.subr.bf16.mxu0 0
      %1329 = vmatpush1.bf16.msra.mxu0 %v1313
      %1330 = vmatprep.subr.bf16.mxu0 0
      %1331 = vmatpush1.bf16.msra.mxu0 %v1312
      %1332 = vmatprep.subr.bf16.mxu0 0
      %1333 = vmatpush1.bf16.msra.mxu0 %v1311
      %1334 = vmatprep.subr.bf16.mxu0 0
      %1335 = vmatpush1.bf16.msra.mxu0 %v1310
      %1336 = vmatprep.subr.bf16.mxu0 0
      %1337 = vmatpush1.bf16.msra.mxu0 %v1309
      %1338 = vmatprep.subr.bf16.mxu0 0
      %1339 = vmatpush1.bf16.msra.mxu0 %v1308
      %1340 = vmatprep.subr.bf16.mxu0 0
      %1341 = vmatpush2.bf16.msra.mxu0 0
      %1342 = vmatprep.subr.bf16.mxu0 0
      %1343 = vmatpush2.bf16.msra.mxu0 0
      %1344 = vmatprep.subr.bf16.mxu0 0
      %1345 = vmatpush2.bf16.msra.mxu0 0
      %1346 = vmatprep.subr.bf16.mxu0 0
      %1347 = vmatpush2.bf16.msra.mxu0 0
      %1348 = vmatprep.subr.bf16.mxu0 0
      %1349 = vmatpush2.bf16.msra.mxu0 0
      %1350 = vmatprep.subr.bf16.mxu0 0
      %1351 = vmatpush2.bf16.msra.mxu0 0
      %1352 = vmatprep.subr.bf16.mxu0 0
      %1353 = vmatpush2.bf16.msra.mxu0 0
      %1354 = vmatprep.subr.bf16.mxu0 0
      %1355 = vmatpush2.bf16.msra.mxu0 0
      %1356 = vmatprep.mubr.bf16.mxu0 0
      %1357 = vmatmul.mubr.bf16.gmra.mxu0 %v1268
      %v1358 = vpop.f32.mrf.mxu0
      %v1359 = vadd.f32 0.0, %v1358
      %v1360 = vpop.f32.mrf.mxu0
      %v1361 = vpop.f32.mrf.mxu0
      %v1362 = vadd.f32 0.0, %v1361
      %v1363 = vpop.f32.mrf.mxu0
      %1364 = vmatprep.mubr.bf16.mxu0 0
      %1365 = vmatmul.mubr.bf16.gmra.mxu0 %v1269
      %v1366 = vpop.f32.mrf.mxu0
      %v1367 = vadd.f32 0.0, %v1366
      %v1368 = vpop.f32.mrf.mxu0
      %v1369 = vpop.f32.mrf.mxu0
      %v1370 = vadd.f32 0.0, %v1369
      %v1371 = vpop.f32.mrf.mxu0
      %1372 = vmatprep.mubr.bf16.mxu0 0
      %1373 = vmatmul.mubr.bf16.gmra.mxu0 %v1270
      %v1374 = vpop.f32.mrf.mxu0
      %v1375 = vadd.f32 0.0, %v1374
      %v1376 = vpop.f32.mrf.mxu0
      %v1377 = vpop.f32.mrf.mxu0
      %v1378 = vadd.f32 0.0, %v1377
      %v1379 = vpop.f32.mrf.mxu0
      %1380 = vmatprep.mubr.bf16.mxu0 0
      %1381 = vmatmul.mubr.bf16.gmra.mxu0 %v1271
      %v1382 = vpop.f32.mrf.mxu0
      %v1383 = vadd.f32 0.0, %v1382
      %v1384 = vpop.f32.mrf.mxu0
      %v1385 = vpop.f32.mrf.mxu0
      %v1386 = vadd.f32 0.0, %v1385
      %v1387 = vpop.f32.mrf.mxu0
      %1388 = vdwg.mxu0
      %v1389 = vadd.f32 %v1085, %v1359
      %v1390 = vadd.f32 %v1088, %v1362
      %v1391 = vadd.f32 %v1093, %v1367
      %v1392 = vadd.f32 %v1096, %v1370
      %v1393 = vadd.f32 %v1101, %v1375
      %v1394 = vadd.f32 %v1104, %v1378
      %v1395 = vadd.f32 %v1109, %v1383
      %v1396 = vadd.f32 %v1112, %v1386
      %s1397 = scalar_lea.vmem [#allocation2], 12
      %v1398 = vld [vmem:[%s1397] sm:$0xf]
      %v1399 = vld [vmem:[%s1397 + $0x18] sm:$0xf]
      %v1400 = vld [vmem:[%s1397 + $0x30] sm:$0xf]
      %v1401 = vld [vmem:[%s1397 + $0x48] sm:$0xf]
      %v1402 = vld [vmem:[%s1397 + $0x60] sm:$0xf]
      %v1403 = vld [vmem:[%s1397 + $0x78] sm:$0xf]
      %v1404 = vld [vmem:[%s1397 + $0x90] sm:$0xf]
      %v1405 = vld [vmem:[%s1397 + $0xa8] sm:$0xf]
      %s1406 = scalar_lea.vmem %s3, 192
      %v1407 = vld [vmem:[%s1406] sm:$0xf]
      %v1408 = vld [vmem:[%s1406 + $0x4] sm:$0xf]
      %v1409 = vld [vmem:[%s1406 + $0x8] sm:$0xf]
      %v1410 = vld [vmem:[%s1406 + $0xc] sm:$0xf]
      %v1411 = vld [vmem:[%s1406 + $0x10] sm:$0xf]
      %v1412 = vld [vmem:[%s1406 + $0x14] sm:$0xf]
      %v1413 = vld [vmem:[%s1406 + $0x18] sm:$0xf]
      %v1414 = vld [vmem:[%s1406 + $0x1c] sm:$0xf]
      %v1415 = vld [vmem:[%s1406 + $0x20] sm:$0xf]
      %v1416 = vld [vmem:[%s1406 + $0x24] sm:$0xf]
      %v1417 = vld [vmem:[%s1406 + $0x28] sm:$0xf]
      %v1418 = vld [vmem:[%s1406 + $0x2c] sm:$0xf]
      %v1419 = vld [vmem:[%s1406 + $0x30] sm:$0xf]
      %v1420 = vld [vmem:[%s1406 + $0x34] sm:$0xf]
      %v1421 = vld [vmem:[%s1406 + $0x38] sm:$0xf]
      %v1422 = vld [vmem:[%s1406 + $0x3c] sm:$0xf]
      %v1431 = vunpack.c.l.b16 %v1398
      %v1432 = vunpack.c.l.b16 %v1399
      %v1433 = vunpack.c.l.b16 %v1400
      %v1434 = vunpack.c.l.b16 %v1401
      %v1435 = vunpack.c.l.b16 %v1402
      %v1436 = vunpack.c.l.b16 %v1403
      %v1437 = vunpack.c.l.b16 %v1404
      %v1438 = vunpack.c.l.b16 %v1405
      %v1439 = vpack.c.b16 %v1432, %v1431
      %v1440 = vpack.c.b16 %v1434, %v1433
      %v1441 = vpack.c.b16 %v1436, %v1435
      %v1442 = vpack.c.b16 %v1438, %v1437
      %v1463 = vunpack.c.l.b16 %v1407
      %v1464 = vunpack.c.l.b16 %v1408
      %v1465 = vunpack.c.l.b16 %v1409
      %v1466 = vunpack.c.l.b16 %v1410
      %v1467 = vunpack.c.l.b16 %v1411
      %v1468 = vunpack.c.l.b16 %v1412
      %v1469 = vunpack.c.l.b16 %v1413
      %v1470 = vunpack.c.l.b16 %v1414
      %v1471 = vunpack.c.l.b16 %v1415
      %v1472 = vunpack.c.l.b16 %v1416
      %v1473 = vunpack.c.l.b16 %v1417
      %v1474 = vunpack.c.l.b16 %v1418
      %v1475 = vunpack.c.l.b16 %v1419
      %v1476 = vunpack.c.l.b16 %v1420
      %v1477 = vunpack.c.l.b16 %v1421
      %v1478 = vunpack.c.l.b16 %v1422
      %v1479 = vpack.c.b16 %v1464, %v1463
      %v1480 = vpack.c.b16 %v1466, %v1465
      %v1481 = vpack.c.b16 %v1468, %v1467
      %v1482 = vpack.c.b16 %v1470, %v1469
      %v1483 = vpack.c.b16 %v1472, %v1471
      %v1484 = vpack.c.b16 %v1474, %v1473
      %v1485 = vpack.c.b16 %v1476, %v1475
      %v1486 = vpack.c.b16 %v1478, %v1477
      %1495 = vmatprep.subr.bf16.mxu0 0
      %1496 = vmatpush1.bf16.msra.mxu0 %v1486
      %1497 = vmatprep.subr.bf16.mxu0 0
      %1498 = vmatpush1.bf16.msra.mxu0 %v1485
      %1499 = vmatprep.subr.bf16.mxu0 0
      %1500 = vmatpush1.bf16.msra.mxu0 %v1484
      %1501 = vmatprep.subr.bf16.mxu0 0
      %1502 = vmatpush1.bf16.msra.mxu0 %v1483
      %1503 = vmatprep.subr.bf16.mxu0 0
      %1504 = vmatpush1.bf16.msra.mxu0 %v1482
      %1505 = vmatprep.subr.bf16.mxu0 0
      %1506 = vmatpush1.bf16.msra.mxu0 %v1481
      %1507 = vmatprep.subr.bf16.mxu0 0
      %1508 = vmatpush1.bf16.msra.mxu0 %v1480
      %1509 = vmatprep.subr.bf16.mxu0 0
      %1510 = vmatpush1.bf16.msra.mxu0 %v1479
      %1511 = vmatprep.subr.bf16.mxu0 0
      %1512 = vmatpush2.bf16.msra.mxu0 0
      %1513 = vmatprep.subr.bf16.mxu0 0
      %1514 = vmatpush2.bf16.msra.mxu0 0
      %1515 = vmatprep.subr.bf16.mxu0 0
      %1516 = vmatpush2.bf16.msra.mxu0 0
      %1517 = vmatprep.subr.bf16.mxu0 0
      %1518 = vmatpush2.bf16.msra.mxu0 0
      %1519 = vmatprep.subr.bf16.mxu0 0
      %1520 = vmatpush2.bf16.msra.mxu0 0
      %1521 = vmatprep.subr.bf16.mxu0 0
      %1522 = vmatpush2.bf16.msra.mxu0 0
      %1523 = vmatprep.subr.bf16.mxu0 0
      %1524 = vmatpush2.bf16.msra.mxu0 0
      %1525 = vmatprep.subr.bf16.mxu0 0
      %1526 = vmatpush2.bf16.msra.mxu0 0
      %1527 = vmatprep.mubr.bf16.mxu0 0
      %1528 = vmatmul.mubr.bf16.gmra.mxu0 %v1439
      %v1529 = vpop.f32.mrf.mxu0
      %v1530 = vadd.f32 0.0, %v1529
      %v1531 = vpop.f32.mrf.mxu0
      %v1532 = vpop.f32.mrf.mxu0
      %v1533 = vadd.f32 0.0, %v1532
      %v1534 = vpop.f32.mrf.mxu0
      %1535 = vmatprep.mubr.bf16.mxu0 0
      %1536 = vmatmul.mubr.bf16.gmra.mxu0 %v1440
      %v1537 = vpop.f32.mrf.mxu0
      %v1538 = vadd.f32 0.0, %v1537
      %v1539 = vpop.f32.mrf.mxu0
      %v1540 = vpop.f32.mrf.mxu0
      %v1541 = vadd.f32 0.0, %v1540
      %v1542 = vpop.f32.mrf.mxu0
      %1543 = vmatprep.mubr.bf16.mxu0 0
      %1544 = vmatmul.mubr.bf16.gmra.mxu0 %v1441
      %v1545 = vpop.f32.mrf.mxu0
      %v1546 = vadd.f32 0.0, %v1545
      %v1547 = vpop.f32.mrf.mxu0
      %v1548 = vpop.f32.mrf.mxu0
      %v1549 = vadd.f32 0.0, %v1548
      %v1550 = vpop.f32.mrf.mxu0
      %1551 = vmatprep.mubr.bf16.mxu0 0
      %1552 = vmatmul.mubr.bf16.gmra.mxu0 %v1442
      %v1553 = vpop.f32.mrf.mxu0
      %v1554 = vadd.f32 0.0, %v1553
      %v1555 = vpop.f32.mrf.mxu0
      %v1556 = vpop.f32.mrf.mxu0
      %v1557 = vadd.f32 0.0, %v1556
      %v1558 = vpop.f32.mrf.mxu0
      %1559 = vdwg.mxu0
      %v1560 = vadd.f32 %v1389, %v1530
      %v1561 = vadd.f32 %v1390, %v1533
      %v1562 = vadd.f32 %v1391, %v1538
      %v1563 = vadd.f32 %v1392, %v1541
      %v1564 = vadd.f32 %v1393, %v1546
      %v1565 = vadd.f32 %v1394, %v1549
      %v1566 = vadd.f32 %v1395, %v1554
      %v1567 = vadd.f32 %v1396, %v1557
      %v1568 = vld [vmem:[%s1397 + $0x4] sm:$0xf]
      %v1569 = vld [vmem:[%s1397 + $0x8] sm:$0x1]
      %v1570 = vld [vmem:[%s1397 + $0x1c] sm:$0xf]
      %v1571 = vld [vmem:[%s1397 + $0x20] sm:$0x1]
      %v1572 = vld [vmem:[%s1397 + $0x34] sm:$0xf]
      %v1573 = vld [vmem:[%s1397 + $0x38] sm:$0x1]
      %v1574 = vld [vmem:[%s1397 + $0x4c] sm:$0xf]
      %v1575 = vld [vmem:[%s1397 + $0x50] sm:$0x1]
      %v1576 = vld [vmem:[%s1397 + $0x64] sm:$0xf]
      %v1577 = vld [vmem:[%s1397 + $0x68] sm:$0x1]
      %v1578 = vld [vmem:[%s1397 + $0x7c] sm:$0xf]
      %v1579 = vld [vmem:[%s1397 + $0x80] sm:$0x1]
      %v1580 = vld [vmem:[%s1397 + $0x94] sm:$0xf]
      %v1581 = vld [vmem:[%s1397 + $0x98] sm:$0x1]
      %v1582 = vld [vmem:[%s1397 + $0xac] sm:$0xf]
      %v1583 = vld [vmem:[%s1397 + $0xb0] sm:$0x1]
      %v1585 = vshrl.u32 %v1568, 16
      %v1587 = vrot.slane %v1585, 4
      %v1588 = vshll.u32 %v1568, 16
      %v1590 = vrot.slane %v1588, 5
      %v1591 = vor.u32 %v1587, %v1590
      %v1592 = vrot.slane %v1591, 4
      %v1594 = vshll.u32 %v1569, 16
      %v1596 = vrot.slane %v1594, 5
      %v1597 = vsel %vm719, %v1592, %v1596
      %v1599 = vshrl.u32 %v1570, 16
      %v1601 = vrot.slane %v1599, 4
      %v1602 = vshll.u32 %v1570, 16
      %v1604 = vrot.slane %v1602, 5
      %v1605 = vor.u32 %v1601, %v1604
      %v1606 = vrot.slane %v1605, 4
      %v1608 = vshll.u32 %v1571, 16
      %v1610 = vrot.slane %v1608, 5
      %v1611 = vsel %vm719, %v1606, %v1610
      %v1613 = vshrl.u32 %v1572, 16
      %v1615 = vrot.slane %v1613, 4
      %v1616 = vshll.u32 %v1572, 16
      %v1618 = vrot.slane %v1616, 5
      %v1619 = vor.u32 %v1615, %v1618
      %v1620 = vrot.slane %v1619, 4
      %v1622 = vshll.u32 %v1573, 16
      %v1624 = vrot.slane %v1622, 5
      %v1625 = vsel %vm719, %v1620, %v1624
      %v1627 = vshrl.u32 %v1574, 16
      %v1629 = vrot.slane %v1627, 4
      %v1630 = vshll.u32 %v1574, 16
      %v1632 = vrot.slane %v1630, 5
      %v1633 = vor.u32 %v1629, %v1632
      %v1634 = vrot.slane %v1633, 4
      %v1636 = vshll.u32 %v1575, 16
      %v1638 = vrot.slane %v1636, 5
      %v1639 = vsel %vm719, %v1634, %v1638
      %v1641 = vshrl.u32 %v1576, 16
      %v1643 = vrot.slane %v1641, 4
      %v1644 = vshll.u32 %v1576, 16
      %v1646 = vrot.slane %v1644, 5
      %v1647 = vor.u32 %v1643, %v1646
      %v1648 = vrot.slane %v1647, 4
      %v1650 = vshll.u32 %v1577, 16
      %v1652 = vrot.slane %v1650, 5
      %v1653 = vsel %vm719, %v1648, %v1652
      %v1655 = vshrl.u32 %v1578, 16
      %v1657 = vrot.slane %v1655, 4
      %v1658 = vshll.u32 %v1578, 16
      %v1660 = vrot.slane %v1658, 5
      %v1661 = vor.u32 %v1657, %v1660
      %v1662 = vrot.slane %v1661, 4
      %v1664 = vshll.u32 %v1579, 16
      %v1666 = vrot.slane %v1664, 5
      %v1667 = vsel %vm719, %v1662, %v1666
      %v1669 = vshrl.u32 %v1580, 16
      %v1671 = vrot.slane %v1669, 4
      %v1672 = vshll.u32 %v1580, 16
      %v1674 = vrot.slane %v1672, 5
      %v1675 = vor.u32 %v1671, %v1674
      %v1676 = vrot.slane %v1675, 4
      %v1678 = vshll.u32 %v1581, 16
      %v1680 = vrot.slane %v1678, 5
      %v1681 = vsel %vm719, %v1676, %v1680
      %v1683 = vshrl.u32 %v1582, 16
      %v1685 = vrot.slane %v1683, 4
      %v1686 = vshll.u32 %v1582, 16
      %v1688 = vrot.slane %v1686, 5
      %v1689 = vor.u32 %v1685, %v1688
      %v1690 = vrot.slane %v1689, 4
      %v1692 = vshll.u32 %v1583, 16
      %v1694 = vrot.slane %v1692, 5
      %v1695 = vsel %vm719, %v1690, %v1694
      %s1696 = scalar_lea.vmem %s3, 256
      %v1697 = vld [vmem:[%s1696] sm:$0xf]
      %v1698 = vld [vmem:[%s1696 + $0x4] sm:$0xf]
      %v1699 = vld [vmem:[%s1696 + $0x8] sm:$0xf]
      %v1700 = vld [vmem:[%s1696 + $0xc] sm:$0xf]
      %v1701 = vld [vmem:[%s1696 + $0x10] sm:$0xf]
      %v1702 = vld [vmem:[%s1696 + $0x14] sm:$0xf]
      %v1703 = vld [vmem:[%s1696 + $0x18] sm:$0xf]
      %v1704 = vld [vmem:[%s1696 + $0x1c] sm:$0xf]
      %v1705 = vld [vmem:[%s1696 + $0x20] sm:$0xf]
      %v1706 = vld [vmem:[%s1696 + $0x24] sm:$0xf]
      %v1707 = vld [vmem:[%s1696 + $0x28] sm:$0xf]
      %v1708 = vld [vmem:[%s1696 + $0x2c] sm:$0xf]
      %v1709 = vld [vmem:[%s1696 + $0x30] sm:$0xf]
      %v1710 = vld [vmem:[%s1696 + $0x34] sm:$0xf]
      %v1711 = vld [vmem:[%s1696 + $0x38] sm:$0xf]
      %v1712 = vld [vmem:[%s1696 + $0x3c] sm:$0xf]
      %v1713 = vunpack.c.l.b16 %v1597
      %v1714 = vunpack.c.l.b16 %v1611
      %v1715 = vunpack.c.l.b16 %v1625
      %v1716 = vunpack.c.l.b16 %v1639
      %v1717 = vunpack.c.l.b16 %v1653
      %v1718 = vunpack.c.l.b16 %v1667
      %v1719 = vunpack.c.l.b16 %v1681
      %v1720 = vunpack.c.l.b16 %v1695
      %v1721 = vpack.c.b16 %v1714, %v1713
      %v1722 = vpack.c.b16 %v1716, %v1715
      %v1723 = vpack.c.b16 %v1718, %v1717
      %v1724 = vpack.c.b16 %v1720, %v1719
      %v1745 = vunpack.c.l.b16 %v1697
      %v1746 = vunpack.c.l.b16 %v1698
      %v1747 = vunpack.c.l.b16 %v1699
      %v1748 = vunpack.c.l.b16 %v1700
      %v1749 = vunpack.c.l.b16 %v1701
      %v1750 = vunpack.c.l.b16 %v1702
      %v1751 = vunpack.c.l.b16 %v1703
      %v1752 = vunpack.c.l.b16 %v1704
      %v1753 = vunpack.c.l.b16 %v1705
      %v1754 = vunpack.c.l.b16 %v1706
      %v1755 = vunpack.c.l.b16 %v1707
      %v1756 = vunpack.c.l.b16 %v1708
      %v1757 = vunpack.c.l.b16 %v1709
      %v1758 = vunpack.c.l.b16 %v1710
      %v1759 = vunpack.c.l.b16 %v1711
      %v1760 = vunpack.c.l.b16 %v1712
      %v1761 = vpack.c.b16 %v1746, %v1745
      %v1762 = vpack.c.b16 %v1748, %v1747
      %v1763 = vpack.c.b16 %v1750, %v1749
      %v1764 = vpack.c.b16 %v1752, %v1751
      %v1765 = vpack.c.b16 %v1754, %v1753
      %v1766 = vpack.c.b16 %v1756, %v1755
      %v1767 = vpack.c.b16 %v1758, %v1757
      %v1768 = vpack.c.b16 %v1760, %v1759
      %1777 = vmatprep.subr.bf16.mxu0 0
      %1778 = vmatpush1.bf16.msra.mxu0 %v1768
      %1779 = vmatprep.subr.bf16.mxu0 0
      %1780 = vmatpush1.bf16.msra.mxu0 %v1767
      %1781 = vmatprep.subr.bf16.mxu0 0
      %1782 = vmatpush1.bf16.msra.mxu0 %v1766
      %1783 = vmatprep.subr.bf16.mxu0 0
      %1784 = vmatpush1.bf16.msra.mxu0 %v1765
      %1785 = vmatprep.subr.bf16.mxu0 0
      %1786 = vmatpush1.bf16.msra.mxu0 %v1764
      %1787 = vmatprep.subr.bf16.mxu0 0
      %1788 = vmatpush1.bf16.msra.mxu0 %v1763
      %1789 = vmatprep.subr.bf16.mxu0 0
      %1790 = vmatpush1.bf16.msra.mxu0 %v1762
      %1791 = vmatprep.subr.bf16.mxu0 0
      %1792 = vmatpush1.bf16.msra.mxu0 %v1761
      %1793 = vmatprep.subr.bf16.mxu0 0
      %1794 = vmatpush2.bf16.msra.mxu0 0
      %1795 = vmatprep.subr.bf16.mxu0 0
      %1796 = vmatpush2.bf16.msra.mxu0 0
      %1797 = vmatprep.subr.bf16.mxu0 0
      %1798 = vmatpush2.bf16.msra.mxu0 0
      %1799 = vmatprep.subr.bf16.mxu0 0
      %1800 = vmatpush2.bf16.msra.mxu0 0
      %1801 = vmatprep.subr.bf16.mxu0 0
      %1802 = vmatpush2.bf16.msra.mxu0 0
      %1803 = vmatprep.subr.bf16.mxu0 0
      %1804 = vmatpush2.bf16.msra.mxu0 0
      %1805 = vmatprep.subr.bf16.mxu0 0
      %1806 = vmatpush2.bf16.msra.mxu0 0
      %1807 = vmatprep.subr.bf16.mxu0 0
      %1808 = vmatpush2.bf16.msra.mxu0 0
      %1809 = vmatprep.mubr.bf16.mxu0 0
      %1810 = vmatmul.mubr.bf16.gmra.mxu0 %v1721
      %v1811 = vpop.f32.mrf.mxu0
      %v1812 = vadd.f32 0.0, %v1811
      %v1813 = vpop.f32.mrf.mxu0
      %v1814 = vpop.f32.mrf.mxu0
      %v1815 = vadd.f32 0.0, %v1814
      %v1816 = vpop.f32.mrf.mxu0
      %1817 = vmatprep.mubr.bf16.mxu0 0
      %1818 = vmatmul.mubr.bf16.gmra.mxu0 %v1722
      %v1819 = vpop.f32.mrf.mxu0
      %v1820 = vadd.f32 0.0, %v1819
      %v1821 = vpop.f32.mrf.mxu0
      %v1822 = vpop.f32.mrf.mxu0
      %v1823 = vadd.f32 0.0, %v1822
      %v1824 = vpop.f32.mrf.mxu0
      %1825 = vmatprep.mubr.bf16.mxu0 0
      %1826 = vmatmul.mubr.bf16.gmra.mxu0 %v1723
      %v1827 = vpop.f32.mrf.mxu0
      %v1828 = vadd.f32 0.0, %v1827
      %v1829 = vpop.f32.mrf.mxu0
      %v1830 = vpop.f32.mrf.mxu0
      %v1831 = vadd.f32 0.0, %v1830
      %v1832 = vpop.f32.mrf.mxu0
      %1833 = vmatprep.mubr.bf16.mxu0 0
      %1834 = vmatmul.mubr.bf16.gmra.mxu0 %v1724
      %v1835 = vpop.f32.mrf.mxu0
      %v1836 = vadd.f32 0.0, %v1835
      %v1837 = vpop.f32.mrf.mxu0
      %v1838 = vpop.f32.mrf.mxu0
      %v1839 = vadd.f32 0.0, %v1838
      %v1840 = vpop.f32.mrf.mxu0
      %1841 = vdwg.mxu0
      %v1842 = vadd.f32 %v1560, %v1812
      %v1843 = vadd.f32 %v1561, %v1815
      %v1844 = vadd.f32 %v1562, %v1820
      %v1845 = vadd.f32 %v1563, %v1823
      %v1846 = vadd.f32 %v1564, %v1828
      %v1847 = vadd.f32 %v1565, %v1831
      %v1848 = vadd.f32 %v1566, %v1836
      %v1849 = vadd.f32 %v1567, %v1839
      %v1850 = vld [vmem:[%s1397] sm:$0xf]
      %v1851 = vld [vmem:[%s1397 + $0x4] sm:$0x1]
      %v1852 = vld [vmem:[%s1397 + $0x18] sm:$0xf]
      %v1853 = vld [vmem:[%s1397 + $0x1c] sm:$0x1]
      %v1854 = vld [vmem:[%s1397 + $0x30] sm:$0xf]
      %v1855 = vld [vmem:[%s1397 + $0x34] sm:$0x1]
      %v1856 = vld [vmem:[%s1397 + $0x48] sm:$0xf]
      %v1857 = vld [vmem:[%s1397 + $0x4c] sm:$0x1]
      %v1858 = vld [vmem:[%s1397 + $0x60] sm:$0xf]
      %v1859 = vld [vmem:[%s1397 + $0x64] sm:$0x1]
      %v1860 = vld [vmem:[%s1397 + $0x78] sm:$0xf]
      %v1861 = vld [vmem:[%s1397 + $0x7c] sm:$0x1]
      %v1862 = vld [vmem:[%s1397 + $0x90] sm:$0xf]
      %v1863 = vld [vmem:[%s1397 + $0x94] sm:$0x1]
      %v1864 = vld [vmem:[%s1397 + $0xa8] sm:$0xf]
      %v1865 = vld [vmem:[%s1397 + $0xac] sm:$0x1]
      %v1867 = vshrl.u32 %v1850, 16
      %v1869 = vrot.slane %v1867, 4
      %v1870 = vshll.u32 %v1850, 16
      %v1872 = vrot.slane %v1870, 5
      %v1873 = vor.u32 %v1869, %v1872
      %v1874 = vrot.slane %v1873, 4
      %v1876 = vshll.u32 %v1851, 16
      %v1878 = vrot.slane %v1876, 5
      %v1879 = vsel %vm719, %v1874, %v1878
      %v1881 = vshrl.u32 %v1852, 16
      %v1883 = vrot.slane %v1881, 4
      %v1884 = vshll.u32 %v1852, 16
      %v1886 = vrot.slane %v1884, 5
      %v1887 = vor.u32 %v1883, %v1886
      %v1888 = vrot.slane %v1887, 4
      %v1890 = vshll.u32 %v1853, 16
      %v1892 = vrot.slane %v1890, 5
      %v1893 = vsel %vm719, %v1888, %v1892
      %v1895 = vshrl.u32 %v1854, 16
      %v1897 = vrot.slane %v1895, 4
      %v1898 = vshll.u32 %v1854, 16
      %v1900 = vrot.slane %v1898, 5
      %v1901 = vor.u32 %v1897, %v1900
      %v1902 = vrot.slane %v1901, 4
      %v1904 = vshll.u32 %v1855, 16
      %v1906 = vrot.slane %v1904, 5
      %v1907 = vsel %vm719, %v1902, %v1906
      %v1909 = vshrl.u32 %v1856, 16
      %v1911 = vrot.slane %v1909, 4
      %v1912 = vshll.u32 %v1856, 16
      %v1914 = vrot.slane %v1912, 5
      %v1915 = vor.u32 %v1911, %v1914
      %v1916 = vrot.slane %v1915, 4
      %v1918 = vshll.u32 %v1857, 16
      %v1920 = vrot.slane %v1918, 5
      %v1921 = vsel %vm719, %v1916, %v1920
      %v1923 = vshrl.u32 %v1858, 16
      %v1925 = vrot.slane %v1923, 4
      %v1926 = vshll.u32 %v1858, 16
      %v1928 = vrot.slane %v1926, 5
      %v1929 = vor.u32 %v1925, %v1928
      %v1930 = vrot.slane %v1929, 4
      %v1932 = vshll.u32 %v1859, 16
      %v1934 = vrot.slane %v1932, 5
      %v1935 = vsel %vm719, %v1930, %v1934
      %v1937 = vshrl.u32 %v1860, 16
      %v1939 = vrot.slane %v1937, 4
      %v1940 = vshll.u32 %v1860, 16
      %v1942 = vrot.slane %v1940, 5
      %v1943 = vor.u32 %v1939, %v1942
      %v1944 = vrot.slane %v1943, 4
      %v1946 = vshll.u32 %v1861, 16
      %v1948 = vrot.slane %v1946, 5
      %v1949 = vsel %vm719, %v1944, %v1948
      %v1951 = vshrl.u32 %v1862, 16
      %v1953 = vrot.slane %v1951, 4
      %v1954 = vshll.u32 %v1862, 16
      %v1956 = vrot.slane %v1954, 5
      %v1957 = vor.u32 %v1953, %v1956
      %v1958 = vrot.slane %v1957, 4
      %v1960 = vshll.u32 %v1863, 16
      %v1962 = vrot.slane %v1960, 5
      %v1963 = vsel %vm719, %v1958, %v1962
      %v1965 = vshrl.u32 %v1864, 16
      %v1967 = vrot.slane %v1965, 4
      %v1968 = vshll.u32 %v1864, 16
      %v1970 = vrot.slane %v1968, 5
      %v1971 = vor.u32 %v1967, %v1970
      %v1972 = vrot.slane %v1971, 4
      %v1974 = vshll.u32 %v1865, 16
      %v1976 = vrot.slane %v1974, 5
      %v1977 = vsel %vm719, %v1972, %v1976
      %s1978 = scalar_lea.vmem %s3, 320
      %v1979 = vld [vmem:[%s1978] sm:$0xf]
      %v1980 = vld [vmem:[%s1978 + $0x4] sm:$0xf]
      %v1981 = vld [vmem:[%s1978 + $0x8] sm:$0xf]
      %v1982 = vld [vmem:[%s1978 + $0xc] sm:$0xf]
      %v1983 = vld [vmem:[%s1978 + $0x10] sm:$0xf]
      %v1984 = vld [vmem:[%s1978 + $0x14] sm:$0xf]
      %v1985 = vld [vmem:[%s1978 + $0x18] sm:$0xf]
      %v1986 = vld [vmem:[%s1978 + $0x1c] sm:$0xf]
      %v1987 = vld [vmem:[%s1978 + $0x20] sm:$0xf]
      %v1988 = vld [vmem:[%s1978 + $0x24] sm:$0xf]
      %v1989 = vld [vmem:[%s1978 + $0x28] sm:$0xf]
      %v1990 = vld [vmem:[%s1978 + $0x2c] sm:$0xf]
      %v1991 = vld [vmem:[%s1978 + $0x30] sm:$0xf]
      %v1992 = vld [vmem:[%s1978 + $0x34] sm:$0xf]
      %v1993 = vld [vmem:[%s1978 + $0x38] sm:$0xf]
      %v1994 = vld [vmem:[%s1978 + $0x3c] sm:$0xf]
      %v1995 = vunpack.c.l.b16 %v1879
      %v1996 = vunpack.c.l.b16 %v1893
      %v1997 = vunpack.c.l.b16 %v1907
      %v1998 = vunpack.c.l.b16 %v1921
      %v1999 = vunpack.c.l.b16 %v1935
      %v2000 = vunpack.c.l.b16 %v1949
      %v2001 = vunpack.c.l.b16 %v1963
      %v2002 = vunpack.c.l.b16 %v1977
      %v2003 = vpack.c.b16 %v1996, %v1995
      %v2004 = vpack.c.b16 %v1998, %v1997
      %v2005 = vpack.c.b16 %v2000, %v1999
      %v2006 = vpack.c.b16 %v2002, %v2001
      %v2027 = vunpack.c.l.b16 %v1979
      %v2028 = vunpack.c.l.b16 %v1980
      %v2029 = vunpack.c.l.b16 %v1981
      %v2030 = vunpack.c.l.b16 %v1982
      %v2031 = vunpack.c.l.b16 %v1983
      %v2032 = vunpack.c.l.b16 %v1984
      %v2033 = vunpack.c.l.b16 %v1985
      %v2034 = vunpack.c.l.b16 %v1986
      %v2035 = vunpack.c.l.b16 %v1987
      %v2036 = vunpack.c.l.b16 %v1988
      %v2037 = vunpack.c.l.b16 %v1989
      %v2038 = vunpack.c.l.b16 %v1990
      %v2039 = vunpack.c.l.b16 %v1991
      %v2040 = vunpack.c.l.b16 %v1992
      %v2041 = vunpack.c.l.b16 %v1993
      %v2042 = vunpack.c.l.b16 %v1994
      %v2043 = vpack.c.b16 %v2028, %v2027
      %v2044 = vpack.c.b16 %v2030, %v2029
      %v2045 = vpack.c.b16 %v2032, %v2031
      %v2046 = vpack.c.b16 %v2034, %v2033
      %v2047 = vpack.c.b16 %v2036, %v2035
      %v2048 = vpack.c.b16 %v2038, %v2037
      %v2049 = vpack.c.b16 %v2040, %v2039
      %v2050 = vpack.c.b16 %v2042, %v2041
      %2059 = vmatprep.subr.bf16.mxu0 0
      %2060 = vmatpush1.bf16.msra.mxu0 %v2050
      %2061 = vmatprep.subr.bf16.mxu0 0
      %2062 = vmatpush1.bf16.msra.mxu0 %v2049
      %2063 = vmatprep.subr.bf16.mxu0 0
      %2064 = vmatpush1.bf16.msra.mxu0 %v2048
      %2065 = vmatprep.subr.bf16.mxu0 0
      %2066 = vmatpush1.bf16.msra.mxu0 %v2047
      %2067 = vmatprep.subr.bf16.mxu0 0
      %2068 = vmatpush1.bf16.msra.mxu0 %v2046
      %2069 = vmatprep.subr.bf16.mxu0 0
      %2070 = vmatpush1.bf16.msra.mxu0 %v2045
      %2071 = vmatprep.subr.bf16.mxu0 0
      %2072 = vmatpush1.bf16.msra.mxu0 %v2044
      %2073 = vmatprep.subr.bf16.mxu0 0
      %2074 = vmatpush1.bf16.msra.mxu0 %v2043
      %2075 = vmatprep.subr.bf16.mxu0 0
      %2076 = vmatpush2.bf16.msra.mxu0 0
      %2077 = vmatprep.subr.bf16.mxu0 0
      %2078 = vmatpush2.bf16.msra.mxu0 0
      %2079 = vmatprep.subr.bf16.mxu0 0
      %2080 = vmatpush2.bf16.msra.mxu0 0
      %2081 = vmatprep.subr.bf16.mxu0 0
      %2082 = vmatpush2.bf16.msra.mxu0 0
      %2083 = vmatprep.subr.bf16.mxu0 0
      %2084 = vmatpush2.bf16.msra.mxu0 0
      %2085 = vmatprep.subr.bf16.mxu0 0
      %2086 = vmatpush2.bf16.msra.mxu0 0
      %2087 = vmatprep.subr.bf16.mxu0 0
      %2088 = vmatpush2.bf16.msra.mxu0 0
      %2089 = vmatprep.subr.bf16.mxu0 0
      %2090 = vmatpush2.bf16.msra.mxu0 0
      %2091 = vmatprep.mubr.bf16.mxu0 0
      %2092 = vmatmul.mubr.bf16.gmra.mxu0 %v2003
      %v2093 = vpop.f32.mrf.mxu0
      %v2094 = vadd.f32 0.0, %v2093
      %v2095 = vpop.f32.mrf.mxu0
      %v2096 = vpop.f32.mrf.mxu0
      %v2097 = vadd.f32 0.0, %v2096
      %v2098 = vpop.f32.mrf.mxu0
      %2099 = vmatprep.mubr.bf16.mxu0 0
      %2100 = vmatmul.mubr.bf16.gmra.mxu0 %v2004
      %v2101 = vpop.f32.mrf.mxu0
      %v2102 = vadd.f32 0.0, %v2101
      %v2103 = vpop.f32.mrf.mxu0
      %v2104 = vpop.f32.mrf.mxu0
      %v2105 = vadd.f32 0.0, %v2104
      %v2106 = vpop.f32.mrf.mxu0
      %2107 = vmatprep.mubr.bf16.mxu0 0
      %2108 = vmatmul.mubr.bf16.gmra.mxu0 %v2005
      %v2109 = vpop.f32.mrf.mxu0
      %v2110 = vadd.f32 0.0, %v2109
      %v2111 = vpop.f32.mrf.mxu0
      %v2112 = vpop.f32.mrf.mxu0
      %v2113 = vadd.f32 0.0, %v2112
      %v2114 = vpop.f32.mrf.mxu0
      %2115 = vmatprep.mubr.bf16.mxu0 0
      %2116 = vmatmul.mubr.bf16.gmra.mxu0 %v2006
      %v2117 = vpop.f32.mrf.mxu0
      %v2118 = vadd.f32 0.0, %v2117
      %v2119 = vpop.f32.mrf.mxu0
      %v2120 = vpop.f32.mrf.mxu0
      %v2121 = vadd.f32 0.0, %v2120
      %v2122 = vpop.f32.mrf.mxu0
      %2123 = vdwg.mxu0
      %v2124 = vadd.f32 %v1842, %v2094
      %v2125 = vadd.f32 %v1843, %v2097
      %v2126 = vadd.f32 %v1844, %v2102
      %v2127 = vadd.f32 %v1845, %v2105
      %v2128 = vadd.f32 %v1846, %v2110
      %v2129 = vadd.f32 %v1847, %v2113
      %v2130 = vadd.f32 %v1848, %v2118
      %v2131 = vadd.f32 %v1849, %v2121
      %s2132 = scalar_lea.vmem [#allocation2], 24
      %v2133 = vld [vmem:[%s2132] sm:$0xf]
      %v2134 = vld [vmem:[%s2132 + $0x18] sm:$0xf]
      %v2135 = vld [vmem:[%s2132 + $0x30] sm:$0xf]
      %v2136 = vld [vmem:[%s2132 + $0x48] sm:$0xf]
      %v2137 = vld [vmem:[%s2132 + $0x60] sm:$0xf]
      %v2138 = vld [vmem:[%s2132 + $0x78] sm:$0xf]
      %v2139 = vld [vmem:[%s2132 + $0x90] sm:$0xf]
      %v2140 = vld [vmem:[%s2132 + $0xa8] sm:$0xf]
      %s2141 = scalar_lea.vmem %s3, 384
      %v2142 = vld [vmem:[%s2141] sm:$0xf]
      %v2143 = vld [vmem:[%s2141 + $0x4] sm:$0xf]
      %v2144 = vld [vmem:[%s2141 + $0x8] sm:$0xf]
      %v2145 = vld [vmem:[%s2141 + $0xc] sm:$0xf]
      %v2146 = vld [vmem:[%s2141 + $0x10] sm:$0xf]
      %v2147 = vld [vmem:[%s2141 + $0x14] sm:$0xf]
      %v2148 = vld [vmem:[%s2141 + $0x18] sm:$0xf]
      %v2149 = vld [vmem:[%s2141 + $0x1c] sm:$0xf]
      %v2150 = vld [vmem:[%s2141 + $0x20] sm:$0xf]
      %v2151 = vld [vmem:[%s2141 + $0x24] sm:$0xf]
      %v2152 = vld [vmem:[%s2141 + $0x28] sm:$0xf]
      %v2153 = vld [vmem:[%s2141 + $0x2c] sm:$0xf]
      %v2154 = vld [vmem:[%s2141 + $0x30] sm:$0xf]
      %v2155 = vld [vmem:[%s2141 + $0x34] sm:$0xf]
      %v2156 = vld [vmem:[%s2141 + $0x38] sm:$0xf]
      %v2157 = vld [vmem:[%s2141 + $0x3c] sm:$0xf]
      %v2166 = vunpack.c.l.b16 %v2133
      %v2167 = vunpack.c.l.b16 %v2134
      %v2168 = vunpack.c.l.b16 %v2135
      %v2169 = vunpack.c.l.b16 %v2136
      %v2170 = vunpack.c.l.b16 %v2137
      %v2171 = vunpack.c.l.b16 %v2138
      %v2172 = vunpack.c.l.b16 %v2139
      %v2173 = vunpack.c.l.b16 %v2140
      %v2174 = vpack.c.b16 %v2167, %v2166
      %v2175 = vpack.c.b16 %v2169, %v2168
      %v2176 = vpack.c.b16 %v2171, %v2170
      %v2177 = vpack.c.b16 %v2173, %v2172
      %v2198 = vunpack.c.l.b16 %v2142
      %v2199 = vunpack.c.l.b16 %v2143
      %v2200 = vunpack.c.l.b16 %v2144
      %v2201 = vunpack.c.l.b16 %v2145
      %v2202 = vunpack.c.l.b16 %v2146
      %v2203 = vunpack.c.l.b16 %v2147
      %v2204 = vunpack.c.l.b16 %v2148
      %v2205 = vunpack.c.l.b16 %v2149
      %v2206 = vunpack.c.l.b16 %v2150
      %v2207 = vunpack.c.l.b16 %v2151
      %v2208 = vunpack.c.l.b16 %v2152
      %v2209 = vunpack.c.l.b16 %v2153
      %v2210 = vunpack.c.l.b16 %v2154
      %v2211 = vunpack.c.l.b16 %v2155
      %v2212 = vunpack.c.l.b16 %v2156
      %v2213 = vunpack.c.l.b16 %v2157
      %v2214 = vpack.c.b16 %v2199, %v2198
      %v2215 = vpack.c.b16 %v2201, %v2200
      %v2216 = vpack.c.b16 %v2203, %v2202
      %v2217 = vpack.c.b16 %v2205, %v2204
      %v2218 = vpack.c.b16 %v2207, %v2206
      %v2219 = vpack.c.b16 %v2209, %v2208
      %v2220 = vpack.c.b16 %v2211, %v2210
      %v2221 = vpack.c.b16 %v2213, %v2212
      %2230 = vmatprep.subr.bf16.mxu0 0
      %2231 = vmatpush1.bf16.msra.mxu0 %v2221
      %2232 = vmatprep.subr.bf16.mxu0 0
      %2233 = vmatpush1.bf16.msra.mxu0 %v2220
      %2234 = vmatprep.subr.bf16.mxu0 0
      %2235 = vmatpush1.bf16.msra.mxu0 %v2219
      %2236 = vmatprep.subr.bf16.mxu0 0
      %2237 = vmatpush1.bf16.msra.mxu0 %v2218
      %2238 = vmatprep.subr.bf16.mxu0 0
      %2239 = vmatpush1.bf16.msra.mxu0 %v2217
      %2240 = vmatprep.subr.bf16.mxu0 0
      %2241 = vmatpush1.bf16.msra.mxu0 %v2216
      %2242 = vmatprep.subr.bf16.mxu0 0
      %2243 = vmatpush1.bf16.msra.mxu0 %v2215
      %2244 = vmatprep.subr.bf16.mxu0 0
      %2245 = vmatpush1.bf16.msra.mxu0 %v2214
      %2246 = vmatprep.subr.bf16.mxu0 0
      %2247 = vmatpush2.bf16.msra.mxu0 0
      %2248 = vmatprep.subr.bf16.mxu0 0
      %2249 = vmatpush2.bf16.msra.mxu0 0
      %2250 = vmatprep.subr.bf16.mxu0 0
      %2251 = vmatpush2.bf16.msra.mxu0 0
      %2252 = vmatprep.subr.bf16.mxu0 0
      %2253 = vmatpush2.bf16.msra.mxu0 0
      %2254 = vmatprep.subr.bf16.mxu0 0
      %2255 = vmatpush2.bf16.msra.mxu0 0
      %2256 = vmatprep.subr.bf16.mxu0 0
      %2257 = vmatpush2.bf16.msra.mxu0 0
      %2258 = vmatprep.subr.bf16.mxu0 0
      %2259 = vmatpush2.bf16.msra.mxu0 0
      %2260 = vmatprep.subr.bf16.mxu0 0
      %2261 = vmatpush2.bf16.msra.mxu0 0
      %2262 = vmatprep.mubr.bf16.mxu0 0
      %2263 = vmatmul.mubr.bf16.gmra.mxu0 %v2174
      %v2264 = vpop.f32.mrf.mxu0
      %v2265 = vadd.f32 0.0, %v2264
      %v2266 = vpop.f32.mrf.mxu0
      %v2267 = vpop.f32.mrf.mxu0
      %v2268 = vadd.f32 0.0, %v2267
      %v2269 = vpop.f32.mrf.mxu0
      %2270 = vmatprep.mubr.bf16.mxu0 0
      %2271 = vmatmul.mubr.bf16.gmra.mxu0 %v2175
      %v2272 = vpop.f32.mrf.mxu0
      %v2273 = vadd.f32 0.0, %v2272
      %v2274 = vpop.f32.mrf.mxu0
      %v2275 = vpop.f32.mrf.mxu0
      %v2276 = vadd.f32 0.0, %v2275
      %v2277 = vpop.f32.mrf.mxu0
      %2278 = vmatprep.mubr.bf16.mxu0 0
      %2279 = vmatmul.mubr.bf16.gmra.mxu0 %v2176
      %v2280 = vpop.f32.mrf.mxu0
      %v2281 = vadd.f32 0.0, %v2280
      %v2282 = vpop.f32.mrf.mxu0
      %v2283 = vpop.f32.mrf.mxu0
      %v2284 = vadd.f32 0.0, %v2283
      %v2285 = vpop.f32.mrf.mxu0
      %2286 = vmatprep.mubr.bf16.mxu0 0
      %2287 = vmatmul.mubr.bf16.gmra.mxu0 %v2177
      %v2288 = vpop.f32.mrf.mxu0
      %v2289 = vadd.f32 0.0, %v2288
      %v2290 = vpop.f32.mrf.mxu0
      %v2291 = vpop.f32.mrf.mxu0
      %v2292 = vadd.f32 0.0, %v2291
      %v2293 = vpop.f32.mrf.mxu0
      %2294 = vdwg.mxu0
      %v2295 = vadd.f32 %v2124, %v2265
      %v2296 = vadd.f32 %v2125, %v2268
      %v2297 = vadd.f32 %v2126, %v2273
      %v2298 = vadd.f32 %v2127, %v2276
      %v2299 = vadd.f32 %v2128, %v2281
      %v2300 = vadd.f32 %v2129, %v2284
      %v2301 = vadd.f32 %v2130, %v2289
      %v2302 = vadd.f32 %v2131, %v2292
      %v2303 = vld [vmem:[%s2132 + $0x4] sm:$0xf]
      %v2304 = vld [vmem:[%s2132 + $0x8] sm:$0x1]
      %v2305 = vld [vmem:[%s2132 + $0x1c] sm:$0xf]
      %v2306 = vld [vmem:[%s2132 + $0x20] sm:$0x1]
      %v2307 = vld [vmem:[%s2132 + $0x34] sm:$0xf]
      %v2308 = vld [vmem:[%s2132 + $0x38] sm:$0x1]
      %v2309 = vld [vmem:[%s2132 + $0x4c] sm:$0xf]
      %v2310 = vld [vmem:[%s2132 + $0x50] sm:$0x1]
      %v2311 = vld [vmem:[%s2132 + $0x64] sm:$0xf]
      %v2312 = vld [vmem:[%s2132 + $0x68] sm:$0x1]
      %v2313 = vld [vmem:[%s2132 + $0x7c] sm:$0xf]
      %v2314 = vld [vmem:[%s2132 + $0x80] sm:$0x1]
      %v2315 = vld [vmem:[%s2132 + $0x94] sm:$0xf]
      %v2316 = vld [vmem:[%s2132 + $0x98] sm:$0x1]
      %v2317 = vld [vmem:[%s2132 + $0xac] sm:$0xf]
      %v2318 = vld [vmem:[%s2132 + $0xb0] sm:$0x1]
      %v2320 = vshrl.u32 %v2303, 16
      %v2322 = vrot.slane %v2320, 4
      %v2323 = vshll.u32 %v2303, 16
      %v2325 = vrot.slane %v2323, 5
      %v2326 = vor.u32 %v2322, %v2325
      %v2327 = vrot.slane %v2326, 4
      %v2329 = vshll.u32 %v2304, 16
      %v2331 = vrot.slane %v2329, 5
      %v2332 = vsel %vm719, %v2327, %v2331
      %v2334 = vshrl.u32 %v2305, 16
      %v2336 = vrot.slane %v2334, 4
      %v2337 = vshll.u32 %v2305, 16
      %v2339 = vrot.slane %v2337, 5
      %v2340 = vor.u32 %v2336, %v2339
      %v2341 = vrot.slane %v2340, 4
      %v2343 = vshll.u32 %v2306, 16
      %v2345 = vrot.slane %v2343, 5
      %v2346 = vsel %vm719, %v2341, %v2345
      %v2348 = vshrl.u32 %v2307, 16
      %v2350 = vrot.slane %v2348, 4
      %v2351 = vshll.u32 %v2307, 16
      %v2353 = vrot.slane %v2351, 5
      %v2354 = vor.u32 %v2350, %v2353
      %v2355 = vrot.slane %v2354, 4
      %v2357 = vshll.u32 %v2308, 16
      %v2359 = vrot.slane %v2357, 5
      %v2360 = vsel %vm719, %v2355, %v2359
      %v2362 = vshrl.u32 %v2309, 16
      %v2364 = vrot.slane %v2362, 4
      %v2365 = vshll.u32 %v2309, 16
      %v2367 = vrot.slane %v2365, 5
      %v2368 = vor.u32 %v2364, %v2367
      %v2369 = vrot.slane %v2368, 4
      %v2371 = vshll.u32 %v2310, 16
      %v2373 = vrot.slane %v2371, 5
      %v2374 = vsel %vm719, %v2369, %v2373
      %v2376 = vshrl.u32 %v2311, 16
      %v2378 = vrot.slane %v2376, 4
      %v2379 = vshll.u32 %v2311, 16
      %v2381 = vrot.slane %v2379, 5
      %v2382 = vor.u32 %v2378, %v2381
      %v2383 = vrot.slane %v2382, 4
      %v2385 = vshll.u32 %v2312, 16
      %v2387 = vrot.slane %v2385, 5
      %v2388 = vsel %vm719, %v2383, %v2387
      %v2390 = vshrl.u32 %v2313, 16
      %v2392 = vrot.slane %v2390, 4
      %v2393 = vshll.u32 %v2313, 16
      %v2395 = vrot.slane %v2393, 5
      %v2396 = vor.u32 %v2392, %v2395
      %v2397 = vrot.slane %v2396, 4
      %v2399 = vshll.u32 %v2314, 16
      %v2401 = vrot.slane %v2399, 5
      %v2402 = vsel %vm719, %v2397, %v2401
      %v2404 = vshrl.u32 %v2315, 16
      %v2406 = vrot.slane %v2404, 4
      %v2407 = vshll.u32 %v2315, 16
      %v2409 = vrot.slane %v2407, 5
      %v2410 = vor.u32 %v2406, %v2409
      %v2411 = vrot.slane %v2410, 4
      %v2413 = vshll.u32 %v2316, 16
      %v2415 = vrot.slane %v2413, 5
      %v2416 = vsel %vm719, %v2411, %v2415
      %v2418 = vshrl.u32 %v2317, 16
      %v2420 = vrot.slane %v2418, 4
      %v2421 = vshll.u32 %v2317, 16
      %v2423 = vrot.slane %v2421, 5
      %v2424 = vor.u32 %v2420, %v2423
      %v2425 = vrot.slane %v2424, 4
      %v2427 = vshll.u32 %v2318, 16
      %v2429 = vrot.slane %v2427, 5
      %v2430 = vsel %vm719, %v2425, %v2429
      %s2431 = scalar_lea.vmem %s3, 448
      %v2432 = vld [vmem:[%s2431] sm:$0xf]
      %v2433 = vld [vmem:[%s2431 + $0x4] sm:$0xf]
      %v2434 = vld [vmem:[%s2431 + $0x8] sm:$0xf]
      %v2435 = vld [vmem:[%s2431 + $0xc] sm:$0xf]
      %v2436 = vld [vmem:[%s2431 + $0x10] sm:$0xf]
      %v2437 = vld [vmem:[%s2431 + $0x14] sm:$0xf]
      %v2438 = vld [vmem:[%s2431 + $0x18] sm:$0xf]
      %v2439 = vld [vmem:[%s2431 + $0x1c] sm:$0xf]
      %v2440 = vld [vmem:[%s2431 + $0x20] sm:$0xf]
      %v2441 = vld [vmem:[%s2431 + $0x24] sm:$0xf]
      %v2442 = vld [vmem:[%s2431 + $0x28] sm:$0xf]
      %v2443 = vld [vmem:[%s2431 + $0x2c] sm:$0xf]
      %v2444 = vld [vmem:[%s2431 + $0x30] sm:$0xf]
      %v2445 = vld [vmem:[%s2431 + $0x34] sm:$0xf]
      %v2446 = vld [vmem:[%s2431 + $0x38] sm:$0xf]
      %v2447 = vld [vmem:[%s2431 + $0x3c] sm:$0xf]
      %v2448 = vunpack.c.l.b16 %v2332
      %v2449 = vunpack.c.l.b16 %v2346
      %v2450 = vunpack.c.l.b16 %v2360
      %v2451 = vunpack.c.l.b16 %v2374
      %v2452 = vunpack.c.l.b16 %v2388
      %v2453 = vunpack.c.l.b16 %v2402
      %v2454 = vunpack.c.l.b16 %v2416
      %v2455 = vunpack.c.l.b16 %v2430
      %v2456 = vpack.c.b16 %v2449, %v2448
      %v2457 = vpack.c.b16 %v2451, %v2450
      %v2458 = vpack.c.b16 %v2453, %v2452
      %v2459 = vpack.c.b16 %v2455, %v2454
      %v2480 = vunpack.c.l.b16 %v2432
      %v2481 = vunpack.c.l.b16 %v2433
      %v2482 = vunpack.c.l.b16 %v2434
      %v2483 = vunpack.c.l.b16 %v2435
      %v2484 = vunpack.c.l.b16 %v2436
      %v2485 = vunpack.c.l.b16 %v2437
      %v2486 = vunpack.c.l.b16 %v2438
      %v2487 = vunpack.c.l.b16 %v2439
      %v2488 = vunpack.c.l.b16 %v2440
      %v2489 = vunpack.c.l.b16 %v2441
      %v2490 = vunpack.c.l.b16 %v2442
      %v2491 = vunpack.c.l.b16 %v2443
      %v2492 = vunpack.c.l.b16 %v2444
      %v2493 = vunpack.c.l.b16 %v2445
      %v2494 = vunpack.c.l.b16 %v2446
      %v2495 = vunpack.c.l.b16 %v2447
      %v2496 = vpack.c.b16 %v2481, %v2480
      %v2497 = vpack.c.b16 %v2483, %v2482
      %v2498 = vpack.c.b16 %v2485, %v2484
      %v2499 = vpack.c.b16 %v2487, %v2486
      %v2500 = vpack.c.b16 %v2489, %v2488
      %v2501 = vpack.c.b16 %v2491, %v2490
      %v2502 = vpack.c.b16 %v2493, %v2492
      %v2503 = vpack.c.b16 %v2495, %v2494
      %2512 = vmatprep.subr.bf16.mxu0 0
      %2513 = vmatpush1.bf16.msra.mxu0 %v2503
      %2514 = vmatprep.subr.bf16.mxu0 0
      %2515 = vmatpush1.bf16.msra.mxu0 %v2502
      %2516 = vmatprep.subr.bf16.mxu0 0
      %2517 = vmatpush1.bf16.msra.mxu0 %v2501
      %2518 = vmatprep.subr.bf16.mxu0 0
      %2519 = vmatpush1.bf16.msra.mxu0 %v2500
      %2520 = vmatprep.subr.bf16.mxu0 0
      %2521 = vmatpush1.bf16.msra.mxu0 %v2499
      %2522 = vmatprep.subr.bf16.mxu0 0
      %2523 = vmatpush1.bf16.msra.mxu0 %v2498
      %2524 = vmatprep.subr.bf16.mxu0 0
      %2525 = vmatpush1.bf16.msra.mxu0 %v2497
      %2526 = vmatprep.subr.bf16.mxu0 0
      %2527 = vmatpush1.bf16.msra.mxu0 %v2496
      %2528 = vmatprep.subr.bf16.mxu0 0
      %2529 = vmatpush2.bf16.msra.mxu0 0
      %2530 = vmatprep.subr.bf16.mxu0 0
      %2531 = vmatpush2.bf16.msra.mxu0 0
      %2532 = vmatprep.subr.bf16.mxu0 0
      %2533 = vmatpush2.bf16.msra.mxu0 0
      %2534 = vmatprep.subr.bf16.mxu0 0
      %2535 = vmatpush2.bf16.msra.mxu0 0
      %2536 = vmatprep.subr.bf16.mxu0 0
      %2537 = vmatpush2.bf16.msra.mxu0 0
      %2538 = vmatprep.subr.bf16.mxu0 0
      %2539 = vmatpush2.bf16.msra.mxu0 0
      %2540 = vmatprep.subr.bf16.mxu0 0
      %2541 = vmatpush2.bf16.msra.mxu0 0
      %2542 = vmatprep.subr.bf16.mxu0 0
      %2543 = vmatpush2.bf16.msra.mxu0 0
      %2544 = vmatprep.mubr.bf16.mxu0 0
      %2545 = vmatmul.mubr.bf16.gmra.mxu0 %v2456
      %v2546 = vpop.f32.mrf.mxu0
      %v2547 = vadd.f32 0.0, %v2546
      %v2548 = vpop.f32.mrf.mxu0
      %v2549 = vpop.f32.mrf.mxu0
      %v2550 = vadd.f32 0.0, %v2549
      %v2551 = vpop.f32.mrf.mxu0
      %2552 = vmatprep.mubr.bf16.mxu0 0
      %2553 = vmatmul.mubr.bf16.gmra.mxu0 %v2457
      %v2554 = vpop.f32.mrf.mxu0
      %v2555 = vadd.f32 0.0, %v2554
      %v2556 = vpop.f32.mrf.mxu0
      %v2557 = vpop.f32.mrf.mxu0
      %v2558 = vadd.f32 0.0, %v2557
      %v2559 = vpop.f32.mrf.mxu0
      %2560 = vmatprep.mubr.bf16.mxu0 0
      %2561 = vmatmul.mubr.bf16.gmra.mxu0 %v2458
      %v2562 = vpop.f32.mrf.mxu0
      %v2563 = vadd.f32 0.0, %v2562
      %v2564 = vpop.f32.mrf.mxu0
      %v2565 = vpop.f32.mrf.mxu0
      %v2566 = vadd.f32 0.0, %v2565
      %v2567 = vpop.f32.mrf.mxu0
      %2568 = vmatprep.mubr.bf16.mxu0 0
      %2569 = vmatmul.mubr.bf16.gmra.mxu0 %v2459
      %v2570 = vpop.f32.mrf.mxu0
      %v2571 = vadd.f32 0.0, %v2570
      %v2572 = vpop.f32.mrf.mxu0
      %v2573 = vpop.f32.mrf.mxu0
      %v2574 = vadd.f32 0.0, %v2573
      %v2575 = vpop.f32.mrf.mxu0
      %2576 = vdwg.mxu0
      %v2577 = vadd.f32 %v2295, %v2547
      %v2578 = vadd.f32 %v2296, %v2550
      %v2579 = vadd.f32 %v2297, %v2555
      %v2580 = vadd.f32 %v2298, %v2558
      %v2581 = vadd.f32 %v2299, %v2563
      %v2582 = vadd.f32 %v2300, %v2566
      %v2583 = vadd.f32 %v2301, %v2571
      %v2584 = vadd.f32 %v2302, %v2574
      %v2585 = vld [vmem:[%s2132] sm:$0xf]
      %v2586 = vld [vmem:[%s2132 + $0x4] sm:$0x1]
      %v2587 = vld [vmem:[%s2132 + $0x18] sm:$0xf]
      %v2588 = vld [vmem:[%s2132 + $0x1c] sm:$0x1]
      %v2589 = vld [vmem:[%s2132 + $0x30] sm:$0xf]
      %v2590 = vld [vmem:[%s2132 + $0x34] sm:$0x1]
      %v2591 = vld [vmem:[%s2132 + $0x48] sm:$0xf]
      %v2592 = vld [vmem:[%s2132 + $0x4c] sm:$0x1]
      %v2593 = vld [vmem:[%s2132 + $0x60] sm:$0xf]
      %v2594 = vld [vmem:[%s2132 + $0x64] sm:$0x1]
      %v2595 = vld [vmem:[%s2132 + $0x78] sm:$0xf]
      %v2596 = vld [vmem:[%s2132 + $0x7c] sm:$0x1]
      %v2597 = vld [vmem:[%s2132 + $0x90] sm:$0xf]
      %v2598 = vld [vmem:[%s2132 + $0x94] sm:$0x1]
      %v2599 = vld [vmem:[%s2132 + $0xa8] sm:$0xf]
      %v2600 = vld [vmem:[%s2132 + $0xac] sm:$0x1]
      %v2602 = vshrl.u32 %v2585, 16
      %v2604 = vrot.slane %v2602, 4
      %v2605 = vshll.u32 %v2585, 16
      %v2607 = vrot.slane %v2605, 5
      %v2608 = vor.u32 %v2604, %v2607
      %v2609 = vrot.slane %v2608, 4
      %v2611 = vshll.u32 %v2586, 16
      %v2613 = vrot.slane %v2611, 5
      %v2614 = vsel %vm719, %v2609, %v2613
      %v2616 = vshrl.u32 %v2587, 16
      %v2618 = vrot.slane %v2616, 4
      %v2619 = vshll.u32 %v2587, 16
      %v2621 = vrot.slane %v2619, 5
      %v2622 = vor.u32 %v2618, %v2621
      %v2623 = vrot.slane %v2622, 4
      %v2625 = vshll.u32 %v2588, 16
      %v2627 = vrot.slane %v2625, 5
      %v2628 = vsel %vm719, %v2623, %v2627
      %v2630 = vshrl.u32 %v2589, 16
      %v2632 = vrot.slane %v2630, 4
      %v2633 = vshll.u32 %v2589, 16
      %v2635 = vrot.slane %v2633, 5
      %v2636 = vor.u32 %v2632, %v2635
      %v2637 = vrot.slane %v2636, 4
      %v2639 = vshll.u32 %v2590, 16
      %v2641 = vrot.slane %v2639, 5
      %v2642 = vsel %vm719, %v2637, %v2641
      %v2644 = vshrl.u32 %v2591, 16
      %v2646 = vrot.slane %v2644, 4
      %v2647 = vshll.u32 %v2591, 16
      %v2649 = vrot.slane %v2647, 5
      %v2650 = vor.u32 %v2646, %v2649
      %v2651 = vrot.slane %v2650, 4
      %v2653 = vshll.u32 %v2592, 16
      %v2655 = vrot.slane %v2653, 5
      %v2656 = vsel %vm719, %v2651, %v2655
      %v2658 = vshrl.u32 %v2593, 16
      %v2660 = vrot.slane %v2658, 4
      %v2661 = vshll.u32 %v2593, 16
      %v2663 = vrot.slane %v2661, 5
      %v2664 = vor.u32 %v2660, %v2663
      %v2665 = vrot.slane %v2664, 4
      %v2667 = vshll.u32 %v2594, 16
      %v2669 = vrot.slane %v2667, 5
      %v2670 = vsel %vm719, %v2665, %v2669
      %v2672 = vshrl.u32 %v2595, 16
      %v2674 = vrot.slane %v2672, 4
      %v2675 = vshll.u32 %v2595, 16
      %v2677 = vrot.slane %v2675, 5
      %v2678 = vor.u32 %v2674, %v2677
      %v2679 = vrot.slane %v2678, 4
      %v2681 = vshll.u32 %v2596, 16
      %v2683 = vrot.slane %v2681, 5
      %v2684 = vsel %vm719, %v2679, %v2683
      %v2686 = vshrl.u32 %v2597, 16
      %v2688 = vrot.slane %v2686, 4
      %v2689 = vshll.u32 %v2597, 16
      %v2691 = vrot.slane %v2689, 5
      %v2692 = vor.u32 %v2688, %v2691
      %v2693 = vrot.slane %v2692, 4
      %v2695 = vshll.u32 %v2598, 16
      %v2697 = vrot.slane %v2695, 5
      %v2698 = vsel %vm719, %v2693, %v2697
      %v2700 = vshrl.u32 %v2599, 16
      %v2702 = vrot.slane %v2700, 4
      %v2703 = vshll.u32 %v2599, 16
      %v2705 = vrot.slane %v2703, 5
      %v2706 = vor.u32 %v2702, %v2705
      %v2707 = vrot.slane %v2706, 4
      %v2709 = vshll.u32 %v2600, 16
      %v2711 = vrot.slane %v2709, 5
      %v2712 = vsel %vm719, %v2707, %v2711
      %s2713 = scalar_lea.vmem %s3, 512
      %v2714 = vld [vmem:[%s2713] sm:$0xf]
      %v2715 = vld [vmem:[%s2713 + $0x4] sm:$0xf]
      %v2716 = vld [vmem:[%s2713 + $0x8] sm:$0xf]
      %v2717 = vld [vmem:[%s2713 + $0xc] sm:$0xf]
      %v2718 = vld [vmem:[%s2713 + $0x10] sm:$0xf]
      %v2719 = vld [vmem:[%s2713 + $0x14] sm:$0xf]
      %v2720 = vld [vmem:[%s2713 + $0x18] sm:$0xf]
      %v2721 = vld [vmem:[%s2713 + $0x1c] sm:$0xf]
      %v2722 = vld [vmem:[%s2713 + $0x20] sm:$0xf]
      %v2723 = vld [vmem:[%s2713 + $0x24] sm:$0xf]
      %v2724 = vld [vmem:[%s2713 + $0x28] sm:$0xf]
      %v2725 = vld [vmem:[%s2713 + $0x2c] sm:$0xf]
      %v2726 = vld [vmem:[%s2713 + $0x30] sm:$0xf]
      %v2727 = vld [vmem:[%s2713 + $0x34] sm:$0xf]
      %v2728 = vld [vmem:[%s2713 + $0x38] sm:$0xf]
      %v2729 = vld [vmem:[%s2713 + $0x3c] sm:$0xf]
      %v2730 = vunpack.c.l.b16 %v2614
      %v2731 = vunpack.c.l.b16 %v2628
      %v2732 = vunpack.c.l.b16 %v2642
      %v2733 = vunpack.c.l.b16 %v2656
      %v2734 = vunpack.c.l.b16 %v2670
      %v2735 = vunpack.c.l.b16 %v2684
      %v2736 = vunpack.c.l.b16 %v2698
      %v2737 = vunpack.c.l.b16 %v2712
      %v2738 = vpack.c.b16 %v2731, %v2730
      %v2739 = vpack.c.b16 %v2733, %v2732
      %v2740 = vpack.c.b16 %v2735, %v2734
      %v2741 = vpack.c.b16 %v2737, %v2736
      %v2762 = vunpack.c.l.b16 %v2714
      %v2763 = vunpack.c.l.b16 %v2715
      %v2764 = vunpack.c.l.b16 %v2716
      %v2765 = vunpack.c.l.b16 %v2717
      %v2766 = vunpack.c.l.b16 %v2718
      %v2767 = vunpack.c.l.b16 %v2719
      %v2768 = vunpack.c.l.b16 %v2720
      %v2769 = vunpack.c.l.b16 %v2721
      %v2770 = vunpack.c.l.b16 %v2722
      %v2771 = vunpack.c.l.b16 %v2723
      %v2772 = vunpack.c.l.b16 %v2724
      %v2773 = vunpack.c.l.b16 %v2725
      %v2774 = vunpack.c.l.b16 %v2726
      %v2775 = vunpack.c.l.b16 %v2727
      %v2776 = vunpack.c.l.b16 %v2728
      %v2777 = vunpack.c.l.b16 %v2729
      %v2778 = vpack.c.b16 %v2763, %v2762
      %v2779 = vpack.c.b16 %v2765, %v2764
      %v2780 = vpack.c.b16 %v2767, %v2766
      %v2781 = vpack.c.b16 %v2769, %v2768
      %v2782 = vpack.c.b16 %v2771, %v2770
      %v2783 = vpack.c.b16 %v2773, %v2772
      %v2784 = vpack.c.b16 %v2775, %v2774
      %v2785 = vpack.c.b16 %v2777, %v2776
      %2794 = vmatprep.subr.bf16.mxu0 0
      %2795 = vmatpush1.bf16.msra.mxu0 %v2785
      %2796 = vmatprep.subr.bf16.mxu0 0
      %2797 = vmatpush1.bf16.msra.mxu0 %v2784
      %2798 = vmatprep.subr.bf16.mxu0 0
      %2799 = vmatpush1.bf16.msra.mxu0 %v2783
      %2800 = vmatprep.subr.bf16.mxu0 0
      %2801 = vmatpush1.bf16.msra.mxu0 %v2782
      %2802 = vmatprep.subr.bf16.mxu0 0
      %2803 = vmatpush1.bf16.msra.mxu0 %v2781
      %2804 = vmatprep.subr.bf16.mxu0 0
      %2805 = vmatpush1.bf16.msra.mxu0 %v2780
      %2806 = vmatprep.subr.bf16.mxu0 0
      %2807 = vmatpush1.bf16.msra.mxu0 %v2779
      %2808 = vmatprep.subr.bf16.mxu0 0
      %2809 = vmatpush1.bf16.msra.mxu0 %v2778
      %2810 = vmatprep.subr.bf16.mxu0 0
      %2811 = vmatpush2.bf16.msra.mxu0 0
      %2812 = vmatprep.subr.bf16.mxu0 0
      %2813 = vmatpush2.bf16.msra.mxu0 0
      %2814 = vmatprep.subr.bf16.mxu0 0
      %2815 = vmatpush2.bf16.msra.mxu0 0
      %2816 = vmatprep.subr.bf16.mxu0 0
      %2817 = vmatpush2.bf16.msra.mxu0 0
      %2818 = vmatprep.subr.bf16.mxu0 0
      %2819 = vmatpush2.bf16.msra.mxu0 0
      %2820 = vmatprep.subr.bf16.mxu0 0
      %2821 = vmatpush2.bf16.msra.mxu0 0
      %2822 = vmatprep.subr.bf16.mxu0 0
      %2823 = vmatpush2.bf16.msra.mxu0 0
      %2824 = vmatprep.subr.bf16.mxu0 0
      %2825 = vmatpush2.bf16.msra.mxu0 0
      %2826 = vmatprep.mubr.bf16.mxu0 0
      %2827 = vmatmul.mubr.bf16.gmra.mxu0 %v2738
      %v2828 = vpop.f32.mrf.mxu0
      %v2829 = vadd.f32 0.0, %v2828
      %v2830 = vpop.f32.mrf.mxu0
      %v2831 = vpop.f32.mrf.mxu0
      %v2832 = vadd.f32 0.0, %v2831
      %v2833 = vpop.f32.mrf.mxu0
      %2834 = vmatprep.mubr.bf16.mxu0 0
      %2835 = vmatmul.mubr.bf16.gmra.mxu0 %v2739
      %v2836 = vpop.f32.mrf.mxu0
      %v2837 = vadd.f32 0.0, %v2836
      %v2838 = vpop.f32.mrf.mxu0
      %v2839 = vpop.f32.mrf.mxu0
      %v2840 = vadd.f32 0.0, %v2839
      %v2841 = vpop.f32.mrf.mxu0
      %2842 = vmatprep.mubr.bf16.mxu0 0
      %2843 = vmatmul.mubr.bf16.gmra.mxu0 %v2740
      %v2844 = vpop.f32.mrf.mxu0
      %v2845 = vadd.f32 0.0, %v2844
      %v2846 = vpop.f32.mrf.mxu0
      %v2847 = vpop.f32.mrf.mxu0
      %v2848 = vadd.f32 0.0, %v2847
      %v2849 = vpop.f32.mrf.mxu0
      %2850 = vmatprep.mubr.bf16.mxu0 0
      %2851 = vmatmul.mubr.bf16.gmra.mxu0 %v2741
      %v2852 = vpop.f32.mrf.mxu0
      %v2853 = vadd.f32 0.0, %v2852
      %v2854 = vpop.f32.mrf.mxu0
      %v2855 = vpop.f32.mrf.mxu0
      %v2856 = vadd.f32 0.0, %v2855
      %v2857 = vpop.f32.mrf.mxu0
      %2858 = vdwg.mxu0
      %v2859 = vadd.f32 %v2577, %v2829
      %v2860 = vadd.f32 %v2578, %v2832
      %v2861 = vadd.f32 %v2579, %v2837
      %v2862 = vadd.f32 %v2580, %v2840
      %v2863 = vadd.f32 %v2581, %v2845
      %v2864 = vadd.f32 %v2582, %v2848
      %v2865 = vadd.f32 %v2583, %v2853
      %v2866 = vadd.f32 %v2584, %v2856
      %v2867 = vld [vmem:[%s4] sm:$0x1]
      %v2869 = vlaneseq
      %v2870 = vshrl.u32 %v2869, 7
      %v2871 = vsub.s32 0, %v2870
      %v2872 = vrot.slane %v2867, %v2871
      %v2874 = vmul.f32 %v2859, %v2872
      %v2875 = vmul.f32 %v2860, %v2872
      %v2876 = vmul.f32 %v2861, %v2872
      %v2877 = vmul.f32 %v2862, %v2872
      %v2878 = vmul.f32 %v2863, %v2872
      %v2879 = vmul.f32 %v2864, %v2872
      %v2880 = vmul.f32 %v2865, %v2872
      %v2881 = vmul.f32 %v2866, %v2872
      %v2882 = vld [vmem:[%s5] sm:$0x1]
      %v2884 = vlaneseq
      %v2885 = vshrl.u32 %v2884, 7
      %v2886 = vsub.s32 0, %v2885
      %v2887 = vrot.slane %v2882, %v2886
      %v2889 = vadd.f32 %v2874, %v2887
      %v2890 = vadd.f32 %v2875, %v2887
      %v2891 = vadd.f32 %v2876, %v2887
      %v2892 = vadd.f32 %v2877, %v2887
      %v2893 = vadd.f32 %v2878, %v2887
      %v2894 = vadd.f32 %v2879, %v2887
      %v2895 = vadd.f32 %v2880, %v2887
      %v2896 = vadd.f32 %v2881, %v2887
      %v2897 = vmax.f32 %v2889, 0.0
      %v2898 = vmax.f32 %v2890, 0.0
      %v2899 = vmax.f32 %v2891, 0.0
      %v2900 = vmax.f32 %v2892, 0.0
      %v2901 = vmax.f32 %v2893, 0.0
      %v2902 = vmax.f32 %v2894, 0.0
      %v2903 = vmax.f32 %v2895, 0.0
      %v2904 = vmax.f32 %v2896, 0.0
      %v2905 = vpack.c.bf16 %v2898, %v2897
      %v2906 = vpack.c.bf16 %v2900, %v2899
      %v2907 = vpack.c.bf16 %v2902, %v2901
      %v2908 = vpack.c.bf16 %v2904, %v2903
      %v2909 = vld [vmem:[%s6] sm:$0xf]
      %v2910 = vld [vmem:[%s6 + $0x4] sm:$0xf]
      %v2911 = vld [vmem:[%s6 + $0x8] sm:$0xf]
      %v2912 = vld [vmem:[%s6 + $0xc] sm:$0xf]
      %v2913 = vld [vmem:[%s6 + $0x10] sm:$0xf]
      %v2914 = vld [vmem:[%s6 + $0x14] sm:$0xf]
      %v2915 = vld [vmem:[%s6 + $0x18] sm:$0xf]
      %v2916 = vld [vmem:[%s6 + $0x1c] sm:$0xf]
      %v2917 = vld [vmem:[%s6 + $0x20] sm:$0xf]
      %v2918 = vld [vmem:[%s6 + $0x24] sm:$0xf]
      %v2919 = vld [vmem:[%s6 + $0x28] sm:$0xf]
      %v2920 = vld [vmem:[%s6 + $0x2c] sm:$0xf]
      %v2921 = vld [vmem:[%s6 + $0x30] sm:$0xf]
      %v2922 = vld [vmem:[%s6 + $0x34] sm:$0xf]
      %v2923 = vld [vmem:[%s6 + $0x38] sm:$0xf]
      %v2924 = vld [vmem:[%s6 + $0x3c] sm:$0xf]
      %v2941 = vunpack.c.l.b16 %v2909
      %v2942 = vunpack.c.l.b16 %v2910
      %v2943 = vunpack.c.l.b16 %v2911
      %v2944 = vunpack.c.l.b16 %v2912
      %v2945 = vunpack.c.l.b16 %v2913
      %v2946 = vunpack.c.l.b16 %v2914
      %v2947 = vunpack.c.l.b16 %v2915
      %v2948 = vunpack.c.l.b16 %v2916
      %v2949 = vunpack.c.l.b16 %v2917
      %v2950 = vunpack.c.l.b16 %v2918
      %v2951 = vunpack.c.l.b16 %v2919
      %v2952 = vunpack.c.l.b16 %v2920
      %v2953 = vunpack.c.l.b16 %v2921
      %v2954 = vunpack.c.l.b16 %v2922
      %v2955 = vunpack.c.l.b16 %v2923
      %v2956 = vunpack.c.l.b16 %v2924
      %v2957 = vpack.c.b16 %v2942, %v2941
      %v2958 = vpack.c.b16 %v2944, %v2943
      %v2959 = vpack.c.b16 %v2946, %v2945
      %v2960 = vpack.c.b16 %v2948, %v2947
      %v2961 = vpack.c.b16 %v2950, %v2949
      %v2962 = vpack.c.b16 %v2952, %v2951
      %v2963 = vpack.c.b16 %v2954, %v2953
      %v2964 = vpack.c.b16 %v2956, %v2955
      %2973 = vmatprep.subr.bf16.mxu0 0
      %2974 = vmatpush1.bf16.msra.mxu0 %v2964
      %2975 = vmatprep.subr.bf16.mxu0 0
      %2976 = vmatpush1.bf16.msra.mxu0 %v2963
      %2977 = vmatprep.subr.bf16.mxu0 0
      %2978 = vmatpush1.bf16.msra.mxu0 %v2962
      %2979 = vmatprep.subr.bf16.mxu0 0
      %2980 = vmatpush1.bf16.msra.mxu0 %v2961
      %2981 = vmatprep.subr.bf16.mxu0 0
      %2982 = vmatpush1.bf16.msra.mxu0 %v2960
      %2983 = vmatprep.subr.bf16.mxu0 0
      %2984 = vmatpush1.bf16.msra.mxu0 %v2959
      %2985 = vmatprep.subr.bf16.mxu0 0
      %2986 = vmatpush1.bf16.msra.mxu0 %v2958
      %2987 = vmatprep.subr.bf16.mxu0 0
      %2988 = vmatpush1.bf16.msra.mxu0 %v2957
      %2989 = vmatprep.subr.bf16.mxu0 0
      %2990 = vmatpush2.bf16.msra.mxu0 0
      %2991 = vmatprep.subr.bf16.mxu0 0
      %2992 = vmatpush2.bf16.msra.mxu0 0
      %2993 = vmatprep.subr.bf16.mxu0 0
      %2994 = vmatpush2.bf16.msra.mxu0 0
      %2995 = vmatprep.subr.bf16.mxu0 0
      %2996 = vmatpush2.bf16.msra.mxu0 0
      %2997 = vmatprep.subr.bf16.mxu0 0
      %2998 = vmatpush2.bf16.msra.mxu0 0
      %2999 = vmatprep.subr.bf16.mxu0 0
      %3000 = vmatpush2.bf16.msra.mxu0 0
      %3001 = vmatprep.subr.bf16.mxu0 0
      %3002 = vmatpush2.bf16.msra.mxu0 0
      %3003 = vmatprep.subr.bf16.mxu0 0
      %3004 = vmatpush2.bf16.msra.mxu0 0
      %3005 = vmatprep.mubr.bf16.mxu0 0
      %3006 = vmatmul.mubr.bf16.gmra.mxu0 %v2905
      %v3007 = vpop.f32.mrf.mxu0
      %v3008 = vadd.f32 0.0, %v3007
      %v3009 = vpop.f32.mrf.mxu0
      %v3010 = vpop.f32.mrf.mxu0
      %v3011 = vadd.f32 0.0, %v3010
      %v3012 = vpop.f32.mrf.mxu0
      %3013 = vmatprep.mubr.bf16.mxu0 0
      %3014 = vmatmul.mubr.bf16.gmra.mxu0 %v2906
      %v3015 = vpop.f32.mrf.mxu0
      %v3016 = vadd.f32 0.0, %v3015
      %v3017 = vpop.f32.mrf.mxu0
      %v3018 = vpop.f32.mrf.mxu0
      %v3019 = vadd.f32 0.0, %v3018
      %v3020 = vpop.f32.mrf.mxu0
      %3021 = vmatprep.mubr.bf16.mxu0 0
      %3022 = vmatmul.mubr.bf16.gmra.mxu0 %v2907
      %v3023 = vpop.f32.mrf.mxu0
      %v3024 = vadd.f32 0.0, %v3023
      %v3025 = vpop.f32.mrf.mxu0
      %v3026 = vpop.f32.mrf.mxu0
      %v3027 = vadd.f32 0.0, %v3026
      %v3028 = vpop.f32.mrf.mxu0
      %3029 = vmatprep.mubr.bf16.mxu0 0
      %3030 = vmatmul.mubr.bf16.gmra.mxu0 %v2908
      %v3031 = vpop.f32.mrf.mxu0
      %v3032 = vadd.f32 0.0, %v3031
      %v3033 = vpop.f32.mrf.mxu0
      %v3034 = vpop.f32.mrf.mxu0
      %v3035 = vadd.f32 0.0, %v3034
      %v3036 = vpop.f32.mrf.mxu0
      %3037 = vdwg.mxu0
      %v3038 = vld [vmem:[%s7] sm:$0x1]
      %v3040 = vlaneseq
      %v3041 = vshrl.u32 %v3040, 7
      %v3042 = vsub.s32 0, %v3041
      %v3043 = vrot.slane %v3038, %v3042
      %v3045 = vmul.f32 %v3008, %v3043
      %v3046 = vmul.f32 %v3011, %v3043
      %v3047 = vmul.f32 %v3016, %v3043
      %v3048 = vmul.f32 %v3019, %v3043
      %v3049 = vmul.f32 %v3024, %v3043
      %v3050 = vmul.f32 %v3027, %v3043
      %v3051 = vmul.f32 %v3032, %v3043
      %v3052 = vmul.f32 %v3035, %v3043
      %v3053 = vld [vmem:[%s8] sm:$0x1]
      %v3055 = vlaneseq
      %v3056 = vshrl.u32 %v3055, 7
      %v3057 = vsub.s32 0, %v3056
      %v3058 = vrot.slane %v3053, %v3057
      %v3060 = vadd.f32 %v3045, %v3058
      %v3061 = vadd.f32 %v3046, %v3058
      %v3062 = vadd.f32 %v3047, %v3058
      %v3063 = vadd.f32 %v3048, %v3058
      %v3064 = vadd.f32 %v3049, %v3058
      %v3065 = vadd.f32 %v3050, %v3058
      %v3066 = vadd.f32 %v3051, %v3058
      %v3067 = vadd.f32 %v3052, %v3058
      %v3068 = vld [vmem:[%s557] sm:$0xf]
      %v3069 = vld [vmem:[%s557 + $0x4] sm:$0xf]
      %v3070 = vld [vmem:[%s557 + $0x8] sm:$0xf]
      %v3071 = vld [vmem:[%s557 + $0xc] sm:$0xf]
      %v3072 = vld [vmem:[%s557 + $0x10] sm:$0xf]
      %v3073 = vld [vmem:[%s557 + $0x14] sm:$0xf]
      %v3074 = vld [vmem:[%s557 + $0x18] sm:$0xf]
      %v3075 = vld [vmem:[%s557 + $0x1c] sm:$0xf]
      %v3076 = vld [vmem:[%s9] sm:$0xf]
      %v3077 = vld [vmem:[%s9 + $0x4] sm:$0xf]
      %v3078 = vld [vmem:[%s9 + $0x8] sm:$0xf]
      %v3079 = vld [vmem:[%s9 + $0xc] sm:$0xf]
      %v3080 = vld [vmem:[%s9 + $0x10] sm:$0xf]
      %v3081 = vld [vmem:[%s9 + $0x14] sm:$0xf]
      %v3082 = vld [vmem:[%s9 + $0x18] sm:$0xf]
      %v3083 = vld [vmem:[%s9 + $0x1c] sm:$0xf]
      %v3084 = vld [vmem:[%s9 + $0x20] sm:$0xf]
      %v3085 = vld [vmem:[%s9 + $0x24] sm:$0xf]
      %v3086 = vld [vmem:[%s9 + $0x28] sm:$0xf]
      %v3087 = vld [vmem:[%s9 + $0x2c] sm:$0xf]
      %v3088 = vld [vmem:[%s9 + $0x30] sm:$0xf]
      %v3089 = vld [vmem:[%s9 + $0x34] sm:$0xf]
      %v3090 = vld [vmem:[%s9 + $0x38] sm:$0xf]
      %v3091 = vld [vmem:[%s9 + $0x3c] sm:$0xf]
      %v3100 = vunpack.c.l.b16 %v3068
      %v3101 = vunpack.c.l.b16 %v3069
      %v3102 = vunpack.c.l.b16 %v3070
      %v3103 = vunpack.c.l.b16 %v3071
      %v3104 = vunpack.c.l.b16 %v3072
      %v3105 = vunpack.c.l.b16 %v3073
      %v3106 = vunpack.c.l.b16 %v3074
      %v3107 = vunpack.c.l.b16 %v3075
      %v3108 = vpack.c.b16 %v3101, %v3100
      %v3109 = vpack.c.b16 %v3103, %v3102
      %v3110 = vpack.c.b16 %v3105, %v3104
      %v3111 = vpack.c.b16 %v3107, %v3106
      %v3132 = vunpack.c.l.b16 %v3076
      %v3133 = vunpack.c.l.b16 %v3077
      %v3134 = vunpack.c.l.b16 %v3078
      %v3135 = vunpack.c.l.b16 %v3079
      %v3136 = vunpack.c.l.b16 %v3080
      %v3137 = vunpack.c.l.b16 %v3081
      %v3138 = vunpack.c.l.b16 %v3082
      %v3139 = vunpack.c.l.b16 %v3083
      %v3140 = vunpack.c.l.b16 %v3084
      %v3141 = vunpack.c.l.b16 %v3085
      %v3142 = vunpack.c.l.b16 %v3086
      %v3143 = vunpack.c.l.b16 %v3087
      %v3144 = vunpack.c.l.b16 %v3088
      %v3145 = vunpack.c.l.b16 %v3089
      %v3146 = vunpack.c.l.b16 %v3090
      %v3147 = vunpack.c.l.b16 %v3091
      %v3148 = vpack.c.b16 %v3133, %v3132
      %v3149 = vpack.c.b16 %v3135, %v3134
      %v3150 = vpack.c.b16 %v3137, %v3136
      %v3151 = vpack.c.b16 %v3139, %v3138
      %v3152 = vpack.c.b16 %v3141, %v3140
      %v3153 = vpack.c.b16 %v3143, %v3142
      %v3154 = vpack.c.b16 %v3145, %v3144
      %v3155 = vpack.c.b16 %v3147, %v3146
      %3164 = vmatprep.subr.bf16.mxu0 0
      %3165 = vmatpush1.bf16.msra.mxu0 %v3155
      %3166 = vmatprep.subr.bf16.mxu0 0
      %3167 = vmatpush1.bf16.msra.mxu0 %v3154
      %3168 = vmatprep.subr.bf16.mxu0 0
      %3169 = vmatpush1.bf16.msra.mxu0 %v3153
      %3170 = vmatprep.subr.bf16.mxu0 0
      %3171 = vmatpush1.bf16.msra.mxu0 %v3152
      %3172 = vmatprep.subr.bf16.mxu0 0
      %3173 = vmatpush1.bf16.msra.mxu0 %v3151
      %3174 = vmatprep.subr.bf16.mxu0 0
      %3175 = vmatpush1.bf16.msra.mxu0 %v3150
      %3176 = vmatprep.subr.bf16.mxu0 0
      %3177 = vmatpush1.bf16.msra.mxu0 %v3149
      %3178 = vmatprep.subr.bf16.mxu0 0
      %3179 = vmatpush1.bf16.msra.mxu0 %v3148
      %3180 = vmatprep.subr.bf16.mxu0 0
      %3181 = vmatpush2.bf16.msra.mxu0 0
      %3182 = vmatprep.subr.bf16.mxu0 0
      %3183 = vmatpush2.bf16.msra.mxu0 0
      %3184 = vmatprep.subr.bf16.mxu0 0
      %3185 = vmatpush2.bf16.msra.mxu0 0
      %3186 = vmatprep.subr.bf16.mxu0 0
      %3187 = vmatpush2.bf16.msra.mxu0 0
      %3188 = vmatprep.subr.bf16.mxu0 0
      %3189 = vmatpush2.bf16.msra.mxu0 0
      %3190 = vmatprep.subr.bf16.mxu0 0
      %3191 = vmatpush2.bf16.msra.mxu0 0
      %3192 = vmatprep.subr.bf16.mxu0 0
      %3193 = vmatpush2.bf16.msra.mxu0 0
      %3194 = vmatprep.subr.bf16.mxu0 0
      %3195 = vmatpush2.bf16.msra.mxu0 0
      %3196 = vmatprep.mubr.bf16.mxu0 0
      %3197 = vmatmul.mubr.bf16.gmra.mxu0 %v3108
      %v3198 = vpop.f32.mrf.mxu0
      %v3199 = vadd.f32 0.0, %v3198
      %v3200 = vpop.f32.mrf.mxu0
      %v3201 = vpop.f32.mrf.mxu0
      %v3202 = vadd.f32 0.0, %v3201
      %v3203 = vpop.f32.mrf.mxu0
      %3204 = vmatprep.mubr.bf16.mxu0 0
      %3205 = vmatmul.mubr.bf16.gmra.mxu0 %v3109
      %v3206 = vpop.f32.mrf.mxu0
      %v3207 = vadd.f32 0.0, %v3206
      %v3208 = vpop.f32.mrf.mxu0
      %v3209 = vpop.f32.mrf.mxu0
      %v3210 = vadd.f32 0.0, %v3209
      %v3211 = vpop.f32.mrf.mxu0
      %3212 = vmatprep.mubr.bf16.mxu0 0
      %3213 = vmatmul.mubr.bf16.gmra.mxu0 %v3110
      %v3214 = vpop.f32.mrf.mxu0
      %v3215 = vadd.f32 0.0, %v3214
      %v3216 = vpop.f32.mrf.mxu0
      %v3217 = vpop.f32.mrf.mxu0
      %v3218 = vadd.f32 0.0, %v3217
      %v3219 = vpop.f32.mrf.mxu0
      %3220 = vmatprep.mubr.bf16.mxu0 0
      %3221 = vmatmul.mubr.bf16.gmra.mxu0 %v3111
      %v3222 = vpop.f32.mrf.mxu0
      %v3223 = vadd.f32 0.0, %v3222
      %v3224 = vpop.f32.mrf.mxu0
      %v3225 = vpop.f32.mrf.mxu0
      %v3226 = vadd.f32 0.0, %v3225
      %v3227 = vpop.f32.mrf.mxu0
      %3228 = vdwg.mxu0
      %v3229 = vld [vmem:[%s10] sm:$0x1]
      %v3231 = vlaneseq
      %v3232 = vshrl.u32 %v3231, 7
      %v3233 = vsub.s32 0, %v3232
      %v3234 = vrot.slane %v3229, %v3233
      %v3236 = vmul.f32 %v3199, %v3234
      %v3237 = vmul.f32 %v3202, %v3234
      %v3238 = vmul.f32 %v3207, %v3234
      %v3239 = vmul.f32 %v3210, %v3234
      %v3240 = vmul.f32 %v3215, %v3234
      %v3241 = vmul.f32 %v3218, %v3234
      %v3242 = vmul.f32 %v3223, %v3234
      %v3243 = vmul.f32 %v3226, %v3234
      %v3244 = vld [vmem:[%s11] sm:$0x1]
      %v3246 = vlaneseq
      %v3247 = vshrl.u32 %v3246, 7
      %v3248 = vsub.s32 0, %v3247
      %v3249 = vrot.slane %v3244, %v3248
      %v3251 = vadd.f32 %v3236, %v3249
      %v3252 = vadd.f32 %v3237, %v3249
      %v3253 = vadd.f32 %v3238, %v3249
      %v3254 = vadd.f32 %v3239, %v3249
      %v3255 = vadd.f32 %v3240, %v3249
      %v3256 = vadd.f32 %v3241, %v3249
      %v3257 = vadd.f32 %v3242, %v3249
      %v3258 = vadd.f32 %v3243, %v3249
      %v3259 = vadd.f32 %v3060, %v3251
      %v3260 = vadd.f32 %v3061, %v3252
      %v3261 = vadd.f32 %v3062, %v3253
      %v3262 = vadd.f32 %v3063, %v3254
      %v3263 = vadd.f32 %v3064, %v3255
      %v3264 = vadd.f32 %v3065, %v3256
      %v3265 = vadd.f32 %v3066, %v3257
      %v3266 = vadd.f32 %v3067, %v3258
      %v3267 = vmax.f32 %v3259, 0.0
      %v3268 = vmax.f32 %v3260, 0.0
      %v3269 = vmax.f32 %v3261, 0.0
      %v3270 = vmax.f32 %v3262, 0.0
      %v3271 = vmax.f32 %v3263, 0.0
      %v3272 = vmax.f32 %v3264, 0.0
      %v3273 = vmax.f32 %v3265, 0.0
      %v3274 = vmax.f32 %v3266, 0.0
      %v3275 = vpack.c.bf16 %v3268, %v3267
      %v3276 = vpack.c.bf16 %v3270, %v3269
      %v3277 = vpack.c.bf16 %v3272, %v3271
      %v3278 = vpack.c.bf16 %v3274, %v3273
      %v3283 = vunpack.c.l.b16 %v3275
      %v3284 = vunpack.c.h.b16 %v3275
      %v3285 = vunpack.c.l.b16 %v3276
      %v3286 = vunpack.c.h.b16 %v3276
      %v3287 = vunpack.c.l.b16 %v3277
      %v3288 = vunpack.c.h.b16 %v3277
      %v3289 = vunpack.c.l.b16 %v3278
      %v3290 = vunpack.c.h.b16 %v3278
      %v3291 = vpack.c.b16 %v3283, %v3283
      %v3292 = vpack.c.b16 %v3284, %v3284
      %v3293 = vpack.c.b16 %v3285, %v3285
      %v3294 = vpack.c.b16 %v3286, %v3286
      %v3295 = vpack.c.b16 %v3287, %v3287
      %v3296 = vpack.c.b16 %v3288, %v3288
      %v3297 = vpack.c.b16 %v3289, %v3289
      %v3298 = vpack.c.b16 %v3290, %v3290
      %3307 = vst [vmem:[%s566] sm:$0xf] %v3291
      %3308 = vst [vmem:[%s566 + $0x4] sm:$0xf] %v3292
      %3309 = vst [vmem:[%s566 + $0x8] sm:$0xf] %v3293
      %3310 = vst [vmem:[%s566 + $0xc] sm:$0xf] %v3294
      %3311 = vst [vmem:[%s566 + $0x10] sm:$0xf] %v3295
      %3312 = vst [vmem:[%s566 + $0x14] sm:$0xf] %v3296
      %3313 = vst [vmem:[%s566 + $0x18] sm:$0xf] %v3297
      %3314 = vst [vmem:[%s566 + $0x1c] sm:$0xf] %v3298
      %p3315 = scmp.lt.s32.totalorder %s27, 1
      %s3316 = scalar_select %p3315, %s27, 1
      %p3317 = scmp.lt.s32.totalorder %s28, 0
      %s3318 = scalar_select %p3317, %s28, 0
      %s3319 = smul.addr %s3318, 8
      %s3320 = smul.addr %s3316, 8
      %s3321 = sadd.s32 %s3319, %s3320
      %s3322 = smul.addr %s3321, 4
      %s3323 = scalar_lea.vmem %s12, %s3322
      // Predicated region
      $region69: #{bottleneck_forward.3} parent=67 // pred_check
        %p3324 = pneg %p332
      $region70: #{bottleneck_forward.3} parent=67 // pred_check_branch
        %3326 = sbr.rel (%p3324) target = $region72
      $region71: #{bottleneck_forward.3} parent=67 // pred_region
        _
      $region72: #{bottleneck_forward.3} parent=67 // pred_fallthru
        _
    $region68: #{bottleneck_forward.3} parent=5 // pred_fallthru
      _
    %p3327 = scmp.le.s32.totalorder 2, %s18
    // Predicated region
    $region73: #{bottleneck_forward.3} parent=5 // pred_check
      %p3328 = pneg %p3327
    $region74: #{bottleneck_forward.3} parent=5 // pred_check_branch
      %3330 = sbr.rel (%p3328) target = $region76
    $region75: #{bottleneck_forward.3} parent=5 // pred_region
      %s3331 = ssub.s32 %s18, 2
      // Predicated region
      $region77: #{bottleneck_forward.3} parent=75 // pred_check
        %p3332 = pneg %p338
      $region78: #{bottleneck_forward.3} parent=75 // pred_check_branch
        %3334 = sbr.rel (%p3332) target = $region80
      $region79: #{bottleneck_forward.3} parent=75 // pred_region
        %p3335 = scmp.lt.s32.totalorder %s29, 1
        %s3336 = scalar_select %p3335, %s29, 1
        %p3337 = scmp.lt.s32.totalorder %s30, 0
        %s3338 = scalar_select %p3337, %s30, 0
        %s3339 = smul.addr %s3338, 8
        %s3340 = smul.addr %s3336, 8
        %s3341 = sadd.s32 %s3339, %s3340
        %s3342 = smul.addr %s3341, 4
        %s3343 = scalar_lea.vmem %s12, %s3342
      $region80: #{bottleneck_forward.3} parent=75 // pred_fallthru
        _
    $region76: #{bottleneck_forward.3} parent=5 // pred_fallthru
      _
  $region6: #{bottleneck_forward.3} parent=0 // loop_footer
    %s22 = sadd.s32 1, %s18
  $region7: #{bottleneck_forward.3} parent=0 // loop_footer_branch
    %17 = sbr.rel target = $region3
  $region8: #{bottleneck_forward.3} parent=0 // loop_exit
    _

</llo_original>
